<compile_context>
chip_gen: v6e
topology: v6e:2x2x1
jax: 0.10.0
libtpu: 0.0.40
codegen_flags: <defaults>
</compile_context>

<pallas_src>
import functools

import numpy as np

import jax
import jax.numpy as jnp
from jax.experimental import pallas as pl
from jax.experimental.pallas import tpu as pltpu

MEMORY_LENGTH = 3          # Cfg.memory_length (not given) -> 3
ACS_DIM = 9
IMG_C, IMG_H, IMG_W = 4, 16, 16
C1_OUT, C2_OUT, FC1_OUT = 16, 32, 128
Q_PAD = 128                # lane-dense padded Q width (>= ACS_DIM)


# ----------------------------------------------------------------------------
# Fused Pallas kernel: conv1 -> conv2 -> fc1 (+extras) -> fc2, all in VMEM.
# ----------------------------------------------------------------------------
def _dqn_fused_kernel(col_ref, mask_ref, prop_ref, prev_ref, dop_ref,
                      w1_ref, b1_ref, w2_ref, b2_ref,
                      wf1c_ref, wf1p_ref, wf1v_ref, wf1d_ref, bf1_ref,
                      wf2_ref, bf2_ref, o_ref, *, batch):
    f32 = jnp.float32

    # conv1 (im2col matmul) evaluated for all 9*16 conv2 "requests" per batch
    # element.  Row order is (conv2 tap t2, conv2 position p2, batch b); the
    # mask zeroes rows that correspond to conv2's spatial zero-padding.
    h1 = jnp.dot(col_ref[...], w1_ref[...], preferred_element_type=f32)
    h1 = jnp.maximum(h1 + b1_ref[...], 0.0) * mask_ref[...]      # [9*16*B, 16]

    # conv2: each of the 9 taps is a contiguous block of 16*B rows of h1,
    # contracted against its own [16, 32] slice of the conv2 weight.
    w2 = w2_ref[...]                                             # [144, 32]
    blk = 16 * batch
    h2 = jnp.dot(h1[0:blk, :], w2[0:C1_OUT, :], preferred_element_type=f32)
    for t in range(1, 9):
        h2 = h2 + jnp.dot(h1[t * blk:(t + 1) * blk, :],
                          w2[t * C1_OUT:(t + 1) * C1_OUT, :],
                          preferred_element_type=f32)
    h2 = jnp.maximum(h2 + b2_ref[...], 0.0)                      # [16*B, 32] rows=(p2,b)

    # fc1: conv features enter as 16 per-position matmuls (static unit-stride
    # row slices of h2); proprio / prev_proprios / dop enter via their own
    # weight blocks, so the feature "concat" happens implicitly in-kernel.
    wf1c = wf1c_ref[...]                                         # [512, 128] rows=(p2,c)
    z = jnp.dot(h2[0:batch, :], wf1c[0:C2_OUT, :], preferred_element_type=f32)
    for p in range(1, 16):
        z = z + jnp.dot(h2[p * batch:(p + 1) * batch, :],
                        wf1c[p * C2_OUT:(p + 1) * C2_OUT, :],
                        preferred_element_type=f32)
    z = z + jnp.dot(prop_ref[...], wf1p_ref[...], preferred_element_type=f32)
    z = z + jnp.dot(prev_ref[...], wf1v_ref[...], preferred_element_type=f32)
    z = z + dop_ref[...] * wf1d_ref[...]                         # [B,1] * [1,128]
    h3 = jnp.maximum(z + bf1_ref[...], 0.0)                      # [B, 128]

    # fc2 into a lane-dense [B, 128] slab (columns >= ACS_DIM are zero);
    # the wrapper slices out the ACS_DIM real Q-values.
    q = jnp.dot(h3, wf2_ref[...], preferred_element_type=f32) + bf2_ref[...]
    o_ref[...] = q.astype(o_ref.dtype)


def _vmem_spec():
    return pl.BlockSpec(memory_space=pltpu.MemorySpace.VMEM)


# ----------------------------------------------------------------------------
# Constant gather maps: conv1 im2col rows in (conv2 tap, conv2 pos, batch)
# request order, plus the zero-padding mask for conv2.
# ----------------------------------------------------------------------------
@functools.lru_cache(maxsize=None)
def _conv_gather_maps(batch):
    t2 = np.arange(9)
    di2, dj2 = t2 // 3, t2 % 3
    p2 = np.arange(16)
    oy2, ox2 = p2 // 4, p2 % 4

    # conv1-output coordinate required by each (tap, position); may be out of
    # range, in which case conv2 sees a zero-padded value (mask = 0).
    y1 = 2 * oy2[None, :] + di2[:, None] - 1                 # [9, 16]
    x1 = 2 * ox2[None, :] + dj2[:, None] - 1
    valid = ((y1 >= 0) & (y1 < 8) & (x1 >= 0) & (x1 < 8)).reshape(144)
    y1c = np.clip(y1, 0, 7).reshape(144, 1)
    x1c = np.clip(x1, 0, 7).reshape(144, 1)

    # conv1 im2col columns k = (di1, dj1, c); coords in the padded 18x18 input.
    k = np.arange(9 * IMG_C)
    di1, dj1, c = k // (3 * IMG_C), (k // IMG_C) % 3, k % IMG_C
    Y = 2 * y1c + di1[None, :]                               # [144, 36]
    X = 2 * x1c + dj1[None, :]
    C = np.broadcast_to(c[None, :], Y.shape)
    flat = (Y * (IMG_W + 2) + X) * IMG_C + C                 # into [18*18*4]

    mask = np.repeat(valid.astype(np.float32), batch).reshape(144 * batch, 1)
    return jnp.asarray(flat.reshape(-1), jnp.int32), jnp.asarray(mask)


# ----------------------------------------------------------------------------
# Deterministic parameter construction (biases stored as (1, N); fc2 padded).
# ----------------------------------------------------------------------------
def init_params(key):
    def dense(k, fan_in, fan_out):
        kw, kb = jax.random.split(k)
        scale = (2.0 / fan_in) ** 0.5
        w = scale * jax.random.normal(kw, (fan_in, fan_out), jnp.float32)
        b = 0.01 * jax.random.normal(kb, (1, fan_out), jnp.float32)
        return w, b

    keys = jax.random.split(key, 7)
    p = {}
    # conv1 im2col weight: rows ordered (di1, dj1, c_in)
    p["conv1_w"], p["conv1_b"] = dense(keys[0], 9 * IMG_C, C1_OUT)
    # conv2 im2col weight: rows ordered (tap t2, c_in)
    p["conv2_w"], p["conv2_b"] = dense(keys[1], 9 * C1_OUT, C2_OUT)
    # fc1, split per input source (conv rows ordered (conv2 position, channel))
    p["fc1_conv_w"], p["fc1_b"] = dense(keys[2], 16 * C2_OUT, FC1_OUT)
    p["fc1_prop_w"], _ = dense(keys[3], 7, FC1_OUT)
    p["fc1_prev_w"], _ = dense(keys[4], MEMORY_LENGTH * 7, FC1_OUT)
    p["fc1_dop_w"], _ = dense(keys[5], 1, FC1_OUT)
    # fc2: 128 -> ACS_DIM, zero-padded to 128 output lanes (lane-dense store)
    w2, b2 = dense(keys[6], FC1_OUT, ACS_DIM)
    p["fc2_w"] = jnp.zeros((FC1_OUT, Q_PAD), jnp.float32).at[:, :ACS_DIM].set(w2)
    p["fc2_b"] = jnp.zeros((1, Q_PAD), jnp.float32).at[:, :ACS_DIM].set(b2)
    return p


# ----------------------------------------------------------------------------
# Forward pass (== DQNAgent.forward / model.forward)
# ----------------------------------------------------------------------------
@jax.jit
def dqn_forward(params, image_nchw, proprio, prev_proprios, dop):
    B = image_nchw.shape[0]
    flat_idx, mask = _conv_gather_maps(B)

    # Input prep on the raw image only (one fused gather); everything after
    # this is a single Pallas kernel with all activations resident in VMEM.
    x = jnp.transpose(image_nchw, (0, 2, 3, 1))                      # NHWC
    xp = jnp.pad(x, ((0, 0), (1, 1), (1, 1), (0, 0)))                # [B,18,18,4]
    col = jnp.take(xp.reshape(B, -1), flat_idx, axis=1)              # [B, 144*36]
    col = col.reshape(B, 144, 9 * IMG_C).transpose(1, 0, 2)          # [144, B, 36]
    col = col.reshape(144 * B, 9 * IMG_C)                            # rows (t2,p2,b)

    flops = 2 * B * (144 * 36 * C1_OUT + 9 * 16 * C1_OUT * C2_OUT
                     + 16 * C2_OUT * FC1_OUT + 7 * FC1_OUT
                     + MEMORY_LENGTH * 7 * FC1_OUT + FC1_OUT * Q_PAD)
    n_elems = (col.size + mask.size + proprio.size + prev_proprios.size
               + dop.size + B * Q_PAD
               + sum(int(np.prod(v.shape)) for v in params.values()))
    bytes_accessed = 4 * int(n_elems)

    q_pad = pl.pallas_call(
        functools.partial(_dqn_fused_kernel, batch=B),
        out_shape=jax.ShapeDtypeStruct((B, Q_PAD), jnp.float32),
        in_specs=[_vmem_spec()] * 16,
        out_specs=_vmem_spec(),
        compiler_params=pltpu.CompilerParams(vmem_limit_bytes=32 * 1024 * 1024),
        cost_estimate=pl.CostEstimate(flops=flops, transcendentals=0,
                                      bytes_accessed=bytes_accessed),
    )(col, mask, proprio, prev_proprios, dop,
      params["conv1_w"], params["conv1_b"],
      params["conv2_w"], params["conv2_b"],
      params["fc1_conv_w"], params["fc1_prop_w"], params["fc1_prev_w"],
      params["fc1_dop_w"], params["fc1_b"],
      params["fc2_w"], params["fc2_b"])
    return q_pad[:, :ACS_DIM]


# ----------------------------------------------------------------------------
# Pure-JAX reference (independent lax.conv implementation) for verification.
# ----------------------------------------------------------------------------
def dqn_reference(params, image_nchw, proprio, prev_proprios, dop):
    B = image_nchw.shape[0]
    x = jnp.transpose(image_nchw, (0, 2, 3, 1))
    w1 = params["conv1_w"].reshape(3, 3, IMG_C, C1_OUT)
    h = jax.lax.conv_general_dilated(x, w1, (2, 2), ((1, 1), (1, 1)),
                                     dimension_numbers=("NHWC", "HWIO", "NHWC"))
    h = jnp.maximum(h + params["conv1_b"].reshape(1, 1, 1, C1_OUT), 0.0)
    w2 = params["conv2_w"].reshape(3, 3, C1_OUT, C2_OUT)
    h = jax.lax.conv_general_dilated(h, w2, (2, 2), ((1, 1), (1, 1)),
                                     dimension_numbers=("NHWC", "HWIO", "NHWC"))
    h = jnp.maximum(h + params["conv2_b"].reshape(1, 1, 1, C2_OUT), 0.0)
    feat = h.reshape(B, -1)                                          # (y, x, c)
    z = (feat @ params["fc1_conv_w"] + proprio @ params["fc1_prop_w"]
         + prev_proprios @ params["fc1_prev_w"] + dop * params["fc1_dop_w"]
         + params["fc1_b"])
    h3 = jnp.maximum(z, 0.0)
    q = h3 @ params["fc2_w"] + params["fc2_b"]
    return q[:, :ACS_DIM]


# ----------------------------------------------------------------------------
if __name__ == "__main__":
    key = jax.random.PRNGKey(0)
    kp, ki, kq, kv, kd = jax.random.split(key, 5)

    params = init_params(kp)

    B = 2
    image = jax.random.normal(ki, (B, IMG_C, IMG_H, IMG_W), jnp.float32)  # NCHW
    proprio = jax.random.normal(kq, (B, 7), jnp.float32)
    prev_proprios = jax.random.normal(kv, (B, MEMORY_LENGTH * 7), jnp.float32)
    dop = jax.random.normal(kd, (B, 1), jnp.float32)

    qvals = dqn_forward(params, image, proprio, prev_proprios, dop)
    qvals = jax.block_until_ready(qvals)
    assert qvals.shape == (B, ACS_DIM) and qvals.dtype == jnp.float32

    ref = dqn_reference(params, image, proprio, prev_proprios, dop)
    assert jnp.allclose(qvals, ref, rtol=1e-3, atol=1e-3)

    print("KERNEL_OK")
</pallas_src>

<mosaic_0001>
module attributes {stable_mosaic.version = 11 : i64} {
  func.func @_dqn_fused_kernel(%arg0: memref<288x36xf32, #tpu.memory_space<vmem>>, %arg1: memref<288x1xf32, #tpu.memory_space<vmem>>, %arg2: memref<2x7xf32, #tpu.memory_space<vmem>>, %arg3: memref<2x21xf32, #tpu.memory_space<vmem>>, %arg4: memref<2x1xf32, #tpu.memory_space<vmem>>, %arg5: memref<36x16xf32, #tpu.memory_space<vmem>>, %arg6: memref<1x16xf32, #tpu.memory_space<vmem>>, %arg7: memref<144x32xf32, #tpu.memory_space<vmem>>, %arg8: memref<1x32xf32, #tpu.memory_space<vmem>>, %arg9: memref<512x128xf32, #tpu.memory_space<vmem>>, %arg10: memref<7x128xf32, #tpu.memory_space<vmem>>, %arg11: memref<21x128xf32, #tpu.memory_space<vmem>>, %arg12: memref<1x128xf32, #tpu.memory_space<vmem>>, %arg13: memref<1x128xf32, #tpu.memory_space<vmem>>, %arg14: memref<128x128xf32, #tpu.memory_space<vmem>>, %arg15: memref<1x128xf32, #tpu.memory_space<vmem>>, %arg16: memref<2x128xf32, #tpu.memory_space<vmem>>) attributes {dimension_semantics = [], scalar_prefetch = 0 : i64, scratch_operands = 0 : i64, tpu.core_type = #tpu.core_type<tc>} {
    %c0 = arith.constant 0 : index
    %c0_0 = arith.constant 0 : index
    %0 = vector.load %arg0[%c0, %c0_0] : memref<288x36xf32, #tpu.memory_space<vmem>>, vector<288x36xf32>
    %c0_1 = arith.constant 0 : index
    %c0_2 = arith.constant 0 : index
    %1 = vector.load %arg5[%c0_1, %c0_2] : memref<36x16xf32, #tpu.memory_space<vmem>>, vector<36x16xf32>
    %cst = arith.constant dense<0.000000e+00> : vector<288x16xf32>
    %2 = tpu.matmul %0, %1, %cst {dimension_numbers = #tpu.dot_dimension_numbers<[1], [0], [0], [1], [0, 0, 1, 1], [], []>} : vector<288x36xf32>, vector<36x16xf32>, vector<288x16xf32> -> vector<288x16xf32>
    %c0_3 = arith.constant 0 : index
    %c0_4 = arith.constant 0 : index
    %3 = vector.load %arg6[%c0_3, %c0_4] : memref<1x16xf32, #tpu.memory_space<vmem>>, vector<1x16xf32>
    %4 = vector.broadcast %3 : vector<1x16xf32> to vector<288x16xf32>
    %5 = arith.addf %2, %4 : vector<288x16xf32>
    %cst_5 = arith.constant 0.000000e+00 : f32
    %6 = vector.broadcast %cst_5 : f32 to vector<288x16xf32>
    %7 = arith.maximumf %5, %6 : vector<288x16xf32>
    %c0_6 = arith.constant 0 : index
    %c0_7 = arith.constant 0 : index
    %8 = vector.load %arg1[%c0_6, %c0_7] : memref<288x1xf32, #tpu.memory_space<vmem>>, vector<288x1xf32>
    %9 = vector.broadcast %8 : vector<288x1xf32> to vector<288x16xf32>
    %10 = arith.mulf %7, %9 : vector<288x16xf32>
    %c0_8 = arith.constant 0 : index
    %c0_9 = arith.constant 0 : index
    %11 = vector.load %arg7[%c0_8, %c0_9] : memref<144x32xf32, #tpu.memory_space<vmem>>, vector<144x32xf32>
    %12 = vector.extract_strided_slice %10 {offsets = [0, 0], sizes = [32, 16], strides = [1, 1]} : vector<288x16xf32> to vector<32x16xf32>
    %13 = vector.extract_strided_slice %11 {offsets = [0, 0], sizes = [16, 32], strides = [1, 1]} : vector<144x32xf32> to vector<16x32xf32>
    %cst_10 = arith.constant dense<0.000000e+00> : vector<32x32xf32>
    %14 = tpu.matmul %12, %13, %cst_10 {dimension_numbers = #tpu.dot_dimension_numbers<[1], [0], [0], [1], [0, 0, 1, 1], [], []>} : vector<32x16xf32>, vector<16x32xf32>, vector<32x32xf32> -> vector<32x32xf32>
    %15 = vector.extract_strided_slice %10 {offsets = [32, 0], sizes = [32, 16], strides = [1, 1]} : vector<288x16xf32> to vector<32x16xf32>
    %16 = vector.extract_strided_slice %11 {offsets = [16, 0], sizes = [16, 32], strides = [1, 1]} : vector<144x32xf32> to vector<16x32xf32>
    %cst_11 = arith.constant dense<0.000000e+00> : vector<32x32xf32>
    %17 = tpu.matmul %15, %16, %cst_11 {dimension_numbers = #tpu.dot_dimension_numbers<[1], [0], [0], [1], [0, 0, 1, 1], [], []>} : vector<32x16xf32>, vector<16x32xf32>, vector<32x32xf32> -> vector<32x32xf32>
    %18 = arith.addf %14, %17 : vector<32x32xf32>
    %19 = vector.extract_strided_slice %10 {offsets = [64, 0], sizes = [32, 16], strides = [1, 1]} : vector<288x16xf32> to vector<32x16xf32>
    %20 = vector.extract_strided_slice %11 {offsets = [32, 0], sizes = [16, 32], strides = [1, 1]} : vector<144x32xf32> to vector<16x32xf32>
    %cst_12 = arith.constant dense<0.000000e+00> : vector<32x32xf32>
    %21 = tpu.matmul %19, %20, %cst_12 {dimension_numbers = #tpu.dot_dimension_numbers<[1], [0], [0], [1], [0, 0, 1, 1], [], []>} : vector<32x16xf32>, vector<16x32xf32>, vector<32x32xf32> -> vector<32x32xf32>
    %22 = arith.addf %18, %21 : vector<32x32xf32>
    %23 = vector.extract_strided_slice %10 {offsets = [96, 0], sizes = [32, 16], strides = [1, 1]} : vector<288x16xf32> to vector<32x16xf32>
    %24 = vector.extract_strided_slice %11 {offsets = [48, 0], sizes = [16, 32], strides = [1, 1]} : vector<144x32xf32> to vector<16x32xf32>
    %cst_13 = arith.constant dense<0.000000e+00> : vector<32x32xf32>
    %25 = tpu.matmul %23, %24, %cst_13 {dimension_numbers = #tpu.dot_dimension_numbers<[1], [0], [0], [1], [0, 0, 1, 1], [], []>} : vector<32x16xf32>, vector<16x32xf32>, vector<32x32xf32> -> vector<32x32xf32>
    %26 = arith.addf %22, %25 : vector<32x32xf32>
    %27 = vector.extract_strided_slice %10 {offsets = [128, 0], sizes = [32, 16], strides = [1, 1]} : vector<288x16xf32> to vector<32x16xf32>
    %28 = vector.extract_strided_slice %11 {offsets = [64, 0], sizes = [16, 32], strides = [1, 1]} : vector<144x32xf32> to vector<16x32xf32>
    %cst_14 = arith.constant dense<0.000000e+00> : vector<32x32xf32>
    %29 = tpu.matmul %27, %28, %cst_14 {dimension_numbers = #tpu.dot_dimension_numbers<[1], [0], [0], [1], [0, 0, 1, 1], [], []>} : vector<32x16xf32>, vector<16x32xf32>, vector<32x32xf32> -> vector<32x32xf32>
    %30 = arith.addf %26, %29 : vector<32x32xf32>
    %31 = vector.extract_strided_slice %10 {offsets = [160, 0], sizes = [32, 16], strides = [1, 1]} : vector<288x16xf32> to vector<32x16xf32>
    %32 = vector.extract_strided_slice %11 {offsets = [80, 0], sizes = [16, 32], strides = [1, 1]} : vector<144x32xf32> to vector<16x32xf32>
    %cst_15 = arith.constant dense<0.000000e+00> : vector<32x32xf32>
    %33 = tpu.matmul %31, %32, %cst_15 {dimension_numbers = #tpu.dot_dimension_numbers<[1], [0], [0], [1], [0, 0, 1, 1], [], []>} : vector<32x16xf32>, vector<16x32xf32>, vector<32x32xf32> -> vector<32x32xf32>
    %34 = arith.addf %30, %33 : vector<32x32xf32>
    %35 = vector.extract_strided_slice %10 {offsets = [192, 0], sizes = [32, 16], strides = [1, 1]} : vector<288x16xf32> to vector<32x16xf32>
    %36 = vector.extract_strided_slice %11 {offsets = [96, 0], sizes = [16, 32], strides = [1, 1]} : vector<144x32xf32> to vector<16x32xf32>
    %cst_16 = arith.constant dense<0.000000e+00> : vector<32x32xf32>
    %37 = tpu.matmul %35, %36, %cst_16 {dimension_numbers = #tpu.dot_dimension_numbers<[1], [0], [0], [1], [0, 0, 1, 1], [], []>} : vector<32x16xf32>, vector<16x32xf32>, vector<32x32xf32> -> vector<32x32xf32>
    %38 = arith.addf %34, %37 : vector<32x32xf32>
    %39 = vector.extract_strided_slice %10 {offsets = [224, 0], sizes = [32, 16], strides = [1, 1]} : vector<288x16xf32> to vector<32x16xf32>
    %40 = vector.extract_strided_slice %11 {offsets = [112, 0], sizes = [16, 32], strides = [1, 1]} : vector<144x32xf32> to vector<16x32xf32>
    %cst_17 = arith.constant dense<0.000000e+00> : vector<32x32xf32>
    %41 = tpu.matmul %39, %40, %cst_17 {dimension_numbers = #tpu.dot_dimension_numbers<[1], [0], [0], [1], [0, 0, 1, 1], [], []>} : vector<32x16xf32>, vector<16x32xf32>, vector<32x32xf32> -> vector<32x32xf32>
    %42 = arith.addf %38, %41 : vector<32x32xf32>
    %43 = vector.extract_strided_slice %10 {offsets = [256, 0], sizes = [32, 16], strides = [1, 1]} : vector<288x16xf32> to vector<32x16xf32>
    %44 = vector.extract_strided_slice %11 {offsets = [128, 0], sizes = [16, 32], strides = [1, 1]} : vector<144x32xf32> to vector<16x32xf32>
    %cst_18 = arith.constant dense<0.000000e+00> : vector<32x32xf32>
    %45 = tpu.matmul %43, %44, %cst_18 {dimension_numbers = #tpu.dot_dimension_numbers<[1], [0], [0], [1], [0, 0, 1, 1], [], []>} : vector<32x16xf32>, vector<16x32xf32>, vector<32x32xf32> -> vector<32x32xf32>
    %46 = arith.addf %42, %45 : vector<32x32xf32>
    %c0_19 = arith.constant 0 : index
    %c0_20 = arith.constant 0 : index
    %47 = vector.load %arg8[%c0_19, %c0_20] : memref<1x32xf32, #tpu.memory_space<vmem>>, vector<1x32xf32>
    %48 = vector.broadcast %47 : vector<1x32xf32> to vector<32x32xf32>
    %49 = arith.addf %46, %48 : vector<32x32xf32>
    %cst_21 = arith.constant 0.000000e+00 : f32
    %50 = vector.broadcast %cst_21 : f32 to vector<32x32xf32>
    %51 = arith.maximumf %49, %50 : vector<32x32xf32>
    %c0_22 = arith.constant 0 : index
    %c0_23 = arith.constant 0 : index
    %52 = vector.load %arg9[%c0_22, %c0_23] : memref<512x128xf32, #tpu.memory_space<vmem>>, vector<512x128xf32>
    %53 = vector.extract_strided_slice %51 {offsets = [0, 0], sizes = [2, 32], strides = [1, 1]} : vector<32x32xf32> to vector<2x32xf32>
    %54 = vector.extract_strided_slice %52 {offsets = [0, 0], sizes = [32, 128], strides = [1, 1]} : vector<512x128xf32> to vector<32x128xf32>
    %cst_24 = arith.constant dense<0.000000e+00> : vector<2x128xf32>
    %55 = tpu.matmul %53, %54, %cst_24 {dimension_numbers = #tpu.dot_dimension_numbers<[1], [0], [0], [1], [0, 0, 1, 1], [], []>} : vector<2x32xf32>, vector<32x128xf32>, vector<2x128xf32> -> vector<2x128xf32>
    %56 = vector.extract_strided_slice %51 {offsets = [2, 0], sizes = [2, 32], strides = [1, 1]} : vector<32x32xf32> to vector<2x32xf32>
    %57 = vector.extract_strided_slice %52 {offsets = [32, 0], sizes = [32, 128], strides = [1, 1]} : vector<512x128xf32> to vector<32x128xf32>
    %cst_25 = arith.constant dense<0.000000e+00> : vector<2x128xf32>
    %58 = tpu.matmul %56, %57, %cst_25 {dimension_numbers = #tpu.dot_dimension_numbers<[1], [0], [0], [1], [0, 0, 1, 1], [], []>} : vector<2x32xf32>, vector<32x128xf32>, vector<2x128xf32> -> vector<2x128xf32>
    %59 = arith.addf %55, %58 : vector<2x128xf32>
    %60 = vector.extract_strided_slice %51 {offsets = [4, 0], sizes = [2, 32], strides = [1, 1]} : vector<32x32xf32> to vector<2x32xf32>
    %61 = vector.extract_strided_slice %52 {offsets = [64, 0], sizes = [32, 128], strides = [1, 1]} : vector<512x128xf32> to vector<32x128xf32>
    %cst_26 = arith.constant dense<0.000000e+00> : vector<2x128xf32>
    %62 = tpu.matmul %60, %61, %cst_26 {dimension_numbers = #tpu.dot_dimension_numbers<[1], [0], [0], [1], [0, 0, 1, 1], [], []>} : vector<2x32xf32>, vector<32x128xf32>, vector<2x128xf32> -> vector<2x128xf32>
    %63 = arith.addf %59, %62 : vector<2x128xf32>
    %64 = vector.extract_strided_slice %51 {offsets = [6, 0], sizes = [2, 32], strides = [1, 1]} : vector<32x32xf32> to vector<2x32xf32>
    %65 = vector.extract_strided_slice %52 {offsets = [96, 0], sizes = [32, 128], strides = [1, 1]} : vector<512x128xf32> to vector<32x128xf32>
    %cst_27 = arith.constant dense<0.000000e+00> : vector<2x128xf32>
    %66 = tpu.matmul %64, %65, %cst_27 {dimension_numbers = #tpu.dot_dimension_numbers<[1], [0], [0], [1], [0, 0, 1, 1], [], []>} : vector<2x32xf32>, vector<32x128xf32>, vector<2x128xf32> -> vector<2x128xf32>
    %67 = arith.addf %63, %66 : vector<2x128xf32>
    %68 = vector.extract_strided_slice %51 {offsets = [8, 0], sizes = [2, 32], strides = [1, 1]} : vector<32x32xf32> to vector<2x32xf32>
    %69 = vector.extract_strided_slice %52 {offsets = [128, 0], sizes = [32, 128], strides = [1, 1]} : vector<512x128xf32> to vector<32x128xf32>
    %cst_28 = arith.constant dense<0.000000e+00> : vector<2x128xf32>
    %70 = tpu.matmul %68, %69, %cst_28 {dimension_numbers = #tpu.dot_dimension_numbers<[1], [0], [0], [1], [0, 0, 1, 1], [], []>} : vector<2x32xf32>, vector<32x128xf32>, vector<2x128xf32> -> vector<2x128xf32>
    %71 = arith.addf %67, %70 : vector<2x128xf32>
    %72 = vector.extract_strided_slice %51 {offsets = [10, 0], sizes = [2, 32], strides = [1, 1]} : vector<32x32xf32> to vector<2x32xf32>
    %73 = vector.extract_strided_slice %52 {offsets = [160, 0], sizes = [32, 128], strides = [1, 1]} : vector<512x128xf32> to vector<32x128xf32>
    %cst_29 = arith.constant dense<0.000000e+00> : vector<2x128xf32>
    %74 = tpu.matmul %72, %73, %cst_29 {dimension_numbers = #tpu.dot_dimension_numbers<[1], [0], [0], [1], [0, 0, 1, 1], [], []>} : vector<2x32xf32>, vector<32x128xf32>, vector<2x128xf32> -> vector<2x128xf32>
    %75 = arith.addf %71, %74 : vector<2x128xf32>
    %76 = vector.extract_strided_slice %51 {offsets = [12, 0], sizes = [2, 32], strides = [1, 1]} : vector<32x32xf32> to vector<2x32xf32>
    %77 = vector.extract_strided_slice %52 {offsets = [192, 0], sizes = [32, 128], strides = [1, 1]} : vector<512x128xf32> to vector<32x128xf32>
    %cst_30 = arith.constant dense<0.000000e+00> : vector<2x128xf32>
    %78 = tpu.matmul %76, %77, %cst_30 {dimension_numbers = #tpu.dot_dimension_numbers<[1], [0], [0], [1], [0, 0, 1, 1], [], []>} : vector<2x32xf32>, vector<32x128xf32>, vector<2x128xf32> -> vector<2x128xf32>
    %79 = arith.addf %75, %78 : vector<2x128xf32>
    %80 = vector.extract_strided_slice %51 {offsets = [14, 0], sizes = [2, 32], strides = [1, 1]} : vector<32x32xf32> to vector<2x32xf32>
    %81 = vector.extract_strided_slice %52 {offsets = [224, 0], sizes = [32, 128], strides = [1, 1]} : vector<512x128xf32> to vector<32x128xf32>
    %cst_31 = arith.constant dense<0.000000e+00> : vector<2x128xf32>
    %82 = tpu.matmul %80, %81, %cst_31 {dimension_numbers = #tpu.dot_dimension_numbers<[1], [0], [0], [1], [0, 0, 1, 1], [], []>} : vector<2x32xf32>, vector<32x128xf32>, vector<2x128xf32> -> vector<2x128xf32>
    %83 = arith.addf %79, %82 : vector<2x128xf32>
    %84 = vector.extract_strided_slice %51 {offsets = [16, 0], sizes = [2, 32], strides = [1, 1]} : vector<32x32xf32> to vector<2x32xf32>
    %85 = vector.extract_strided_slice %52 {offsets = [256, 0], sizes = [32, 128], strides = [1, 1]} : vector<512x128xf32> to vector<32x128xf32>
    %cst_32 = arith.constant dense<0.000000e+00> : vector<2x128xf32>
    %86 = tpu.matmul %84, %85, %cst_32 {dimension_numbers = #tpu.dot_dimension_numbers<[1], [0], [0], [1], [0, 0, 1, 1], [], []>} : vector<2x32xf32>, vector<32x128xf32>, vector<2x128xf32> -> vector<2x128xf32>
    %87 = arith.addf %83, %86 : vector<2x128xf32>
    %88 = vector.extract_strided_slice %51 {offsets = [18, 0], sizes = [2, 32], strides = [1, 1]} : vector<32x32xf32> to vector<2x32xf32>
    %89 = vector.extract_strided_slice %52 {offsets = [288, 0], sizes = [32, 128], strides = [1, 1]} : vector<512x128xf32> to vector<32x128xf32>
    %cst_33 = arith.constant dense<0.000000e+00> : vector<2x128xf32>
    %90 = tpu.matmul %88, %89, %cst_33 {dimension_numbers = #tpu.dot_dimension_numbers<[1], [0], [0], [1], [0, 0, 1, 1], [], []>} : vector<2x32xf32>, vector<32x128xf32>, vector<2x128xf32> -> vector<2x128xf32>
    %91 = arith.addf %87, %90 : vector<2x128xf32>
    %92 = vector.extract_strided_slice %51 {offsets = [20, 0], sizes = [2, 32], strides = [1, 1]} : vector<32x32xf32> to vector<2x32xf32>
    %93 = vector.extract_strided_slice %52 {offsets = [320, 0], sizes = [32, 128], strides = [1, 1]} : vector<512x128xf32> to vector<32x128xf32>
    %cst_34 = arith.constant dense<0.000000e+00> : vector<2x128xf32>
    %94 = tpu.matmul %92, %93, %cst_34 {dimension_numbers = #tpu.dot_dimension_numbers<[1], [0], [0], [1], [0, 0, 1, 1], [], []>} : vector<2x32xf32>, vector<32x128xf32>, vector<2x128xf32> -> vector<2x128xf32>
    %95 = arith.addf %91, %94 : vector<2x128xf32>
    %96 = vector.extract_strided_slice %51 {offsets = [22, 0], sizes = [2, 32], strides = [1, 1]} : vector<32x32xf32> to vector<2x32xf32>
    %97 = vector.extract_strided_slice %52 {offsets = [352, 0], sizes = [32, 128], strides = [1, 1]} : vector<512x128xf32> to vector<32x128xf32>
    %cst_35 = arith.constant dense<0.000000e+00> : vector<2x128xf32>
    %98 = tpu.matmul %96, %97, %cst_35 {dimension_numbers = #tpu.dot_dimension_numbers<[1], [0], [0], [1], [0, 0, 1, 1], [], []>} : vector<2x32xf32>, vector<32x128xf32>, vector<2x128xf32> -> vector<2x128xf32>
    %99 = arith.addf %95, %98 : vector<2x128xf32>
    %100 = vector.extract_strided_slice %51 {offsets = [24, 0], sizes = [2, 32], strides = [1, 1]} : vector<32x32xf32> to vector<2x32xf32>
    %101 = vector.extract_strided_slice %52 {offsets = [384, 0], sizes = [32, 128], strides = [1, 1]} : vector<512x128xf32> to vector<32x128xf32>
    %cst_36 = arith.constant dense<0.000000e+00> : vector<2x128xf32>
    %102 = tpu.matmul %100, %101, %cst_36 {dimension_numbers = #tpu.dot_dimension_numbers<[1], [0], [0], [1], [0, 0, 1, 1], [], []>} : vector<2x32xf32>, vector<32x128xf32>, vector<2x128xf32> -> vector<2x128xf32>
    %103 = arith.addf %99, %102 : vector<2x128xf32>
    %104 = vector.extract_strided_slice %51 {offsets = [26, 0], sizes = [2, 32], strides = [1, 1]} : vector<32x32xf32> to vector<2x32xf32>
    %105 = vector.extract_strided_slice %52 {offsets = [416, 0], sizes = [32, 128], strides = [1, 1]} : vector<512x128xf32> to vector<32x128xf32>
    %cst_37 = arith.constant dense<0.000000e+00> : vector<2x128xf32>
    %106 = tpu.matmul %104, %105, %cst_37 {dimension_numbers = #tpu.dot_dimension_numbers<[1], [0], [0], [1], [0, 0, 1, 1], [], []>} : vector<2x32xf32>, vector<32x128xf32>, vector<2x128xf32> -> vector<2x128xf32>
    %107 = arith.addf %103, %106 : vector<2x128xf32>
    %108 = vector.extract_strided_slice %51 {offsets = [28, 0], sizes = [2, 32], strides = [1, 1]} : vector<32x32xf32> to vector<2x32xf32>
    %109 = vector.extract_strided_slice %52 {offsets = [448, 0], sizes = [32, 128], strides = [1, 1]} : vector<512x128xf32> to vector<32x128xf32>
    %cst_38 = arith.constant dense<0.000000e+00> : vector<2x128xf32>
    %110 = tpu.matmul %108, %109, %cst_38 {dimension_numbers = #tpu.dot_dimension_numbers<[1], [0], [0], [1], [0, 0, 1, 1], [], []>} : vector<2x32xf32>, vector<32x128xf32>, vector<2x128xf32> -> vector<2x128xf32>
    %111 = arith.addf %107, %110 : vector<2x128xf32>
    %112 = vector.extract_strided_slice %51 {offsets = [30, 0], sizes = [2, 32], strides = [1, 1]} : vector<32x32xf32> to vector<2x32xf32>
    %113 = vector.extract_strided_slice %52 {offsets = [480, 0], sizes = [32, 128], strides = [1, 1]} : vector<512x128xf32> to vector<32x128xf32>
    %cst_39 = arith.constant dense<0.000000e+00> : vector<2x128xf32>
    %114 = tpu.matmul %112, %113, %cst_39 {dimension_numbers = #tpu.dot_dimension_numbers<[1], [0], [0], [1], [0, 0, 1, 1], [], []>} : vector<2x32xf32>, vector<32x128xf32>, vector<2x128xf32> -> vector<2x128xf32>
    %115 = arith.addf %111, %114 : vector<2x128xf32>
    %c0_40 = arith.constant 0 : index
    %c0_41 = arith.constant 0 : index
    %116 = vector.load %arg2[%c0_40, %c0_41] : memref<2x7xf32, #tpu.memory_space<vmem>>, vector<2x7xf32>
    %c0_42 = arith.constant 0 : index
    %c0_43 = arith.constant 0 : index
    %117 = vector.load %arg10[%c0_42, %c0_43] : memref<7x128xf32, #tpu.memory_space<vmem>>, vector<7x128xf32>
    %cst_44 = arith.constant dense<0.000000e+00> : vector<2x128xf32>
    %118 = tpu.matmul %116, %117, %cst_44 {dimension_numbers = #tpu.dot_dimension_numbers<[1], [0], [0], [1], [0, 0, 1, 1], [], []>} : vector<2x7xf32>, vector<7x128xf32>, vector<2x128xf32> -> vector<2x128xf32>
    %119 = arith.addf %115, %118 : vector<2x128xf32>
    %c0_45 = arith.constant 0 : index
    %c0_46 = arith.constant 0 : index
    %120 = vector.load %arg3[%c0_45, %c0_46] : memref<2x21xf32, #tpu.memory_space<vmem>>, vector<2x21xf32>
    %c0_47 = arith.constant 0 : index
    %c0_48 = arith.constant 0 : index
    %121 = vector.load %arg11[%c0_47, %c0_48] : memref<21x128xf32, #tpu.memory_space<vmem>>, vector<21x128xf32>
    %cst_49 = arith.constant dense<0.000000e+00> : vector<2x128xf32>
    %122 = tpu.matmul %120, %121, %cst_49 {dimension_numbers = #tpu.dot_dimension_numbers<[1], [0], [0], [1], [0, 0, 1, 1], [], []>} : vector<2x21xf32>, vector<21x128xf32>, vector<2x128xf32> -> vector<2x128xf32>
    %123 = arith.addf %119, %122 : vector<2x128xf32>
    %c0_50 = arith.constant 0 : index
    %c0_51 = arith.constant 0 : index
    %124 = vector.load %arg4[%c0_50, %c0_51] : memref<2x1xf32, #tpu.memory_space<vmem>>, vector<2x1xf32>
    %c0_52 = arith.constant 0 : index
    %c0_53 = arith.constant 0 : index
    %125 = vector.load %arg12[%c0_52, %c0_53] : memref<1x128xf32, #tpu.memory_space<vmem>>, vector<1x128xf32>
    %126 = vector.broadcast %124 : vector<2x1xf32> to vector<2x128xf32>
    %127 = vector.broadcast %125 : vector<1x128xf32> to vector<2x128xf32>
    %128 = arith.mulf %126, %127 : vector<2x128xf32>
    %129 = arith.addf %123, %128 : vector<2x128xf32>
    %c0_54 = arith.constant 0 : index
    %c0_55 = arith.constant 0 : index
    %130 = vector.load %arg13[%c0_54, %c0_55] : memref<1x128xf32, #tpu.memory_space<vmem>>, vector<1x128xf32>
    %131 = vector.broadcast %130 : vector<1x128xf32> to vector<2x128xf32>
    %132 = arith.addf %129, %131 : vector<2x128xf32>
    %cst_56 = arith.constant 0.000000e+00 : f32
    %133 = vector.broadcast %cst_56 : f32 to vector<2x128xf32>
    %134 = arith.maximumf %132, %133 : vector<2x128xf32>
    %c0_57 = arith.constant 0 : index
    %c0_58 = arith.constant 0 : index
    %135 = vector.load %arg14[%c0_57, %c0_58] : memref<128x128xf32, #tpu.memory_space<vmem>>, vector<128x128xf32>
    %cst_59 = arith.constant dense<0.000000e+00> : vector<2x128xf32>
    %136 = tpu.matmul %134, %135, %cst_59 {dimension_numbers = #tpu.dot_dimension_numbers<[1], [0], [0], [1], [0, 0, 1, 1], [], []>} : vector<2x128xf32>, vector<128x128xf32>, vector<2x128xf32> -> vector<2x128xf32>
    %c0_60 = arith.constant 0 : index
    %c0_61 = arith.constant 0 : index
    %137 = vector.load %arg15[%c0_60, %c0_61] : memref<1x128xf32, #tpu.memory_space<vmem>>, vector<1x128xf32>
    %138 = vector.broadcast %137 : vector<1x128xf32> to vector<2x128xf32>
    %139 = arith.addf %136, %138 : vector<2x128xf32>
    %c0_62 = arith.constant 0 : index
    %c0_63 = arith.constant 0 : index
    %140 = vector.load %arg16[%c0_62, %c0_63] : memref<2x128xf32, #tpu.memory_space<vmem>>, vector<2x128xf32>
    tpu.vector_store %arg16[%c0_62, %c0_63], %139 {strides = array<i32>} : memref<2x128xf32, #tpu.memory_space<vmem>>, vector<2x128xf32>,
    return
  }
}

</mosaic_0001>

<llo_original>
// kernel: dqn_forward.1
$region0: #{dqn_forward.1}
  #allocation0 [shape = 'u32[]', space=smem, size = 0x4, offset = 0x4, fixed_abs, tag = 'smem constant byte address 0x4 - core index']
  #allocation1 [shape = 'u32[144,128]{1,0:T(1,128)}', space=vmem, size = 0x12000, scoped, tag = 'internal scratch']
  %s0 = inlined_call_operand.vmem [shape: f32[288,36], index: 0, kind: input, shape index: {}]
  %s1 = inlined_call_operand.vmem [shape: f32[288,1], index: 1, kind: input, shape index: {}]
  %s2 = inlined_call_operand.vmem [shape: f32[2,7], index: 2, kind: input, shape index: {}]
  %s3 = inlined_call_operand.vmem [shape: f32[2,21], index: 3, kind: input, shape index: {}]
  %s4 = inlined_call_operand.vmem [shape: f32[2,1], index: 4, kind: input, shape index: {}]
  %s5 = inlined_call_operand.vmem [shape: f32[36,16], index: 5, kind: input, shape index: {}]
  %s6 = inlined_call_operand.vmem [shape: f32[1,16], index: 6, kind: input, shape index: {}]
  %s7 = inlined_call_operand.vmem [shape: f32[144,32], index: 7, kind: input, shape index: {}]
  %s8 = inlined_call_operand.vmem [shape: f32[1,32], index: 8, kind: input, shape index: {}]
  %s9 = inlined_call_operand.vmem [shape: f32[512,128], index: 9, kind: input, shape index: {}]
  %s10 = inlined_call_operand.vmem [shape: f32[7,128], index: 10, kind: input, shape index: {}]
  %s11 = inlined_call_operand.vmem [shape: f32[21,128], index: 11, kind: input, shape index: {}]
  %s12 = inlined_call_operand.vmem [shape: f32[1,128], index: 12, kind: input, shape index: {}]
  %s13 = inlined_call_operand.vmem [shape: f32[1,128], index: 13, kind: input, shape index: {}]
  %s14 = inlined_call_operand.vmem [shape: f32[128,128], index: 14, kind: input, shape index: {}]
  %s15 = inlined_call_operand.vmem [shape: f32[1,128], index: 15, kind: input, shape index: {}]
  %s16 = inlined_call_operand.hbm [shape: f32[2,128], index: 16, kind: output, shape index: {}]
  %s17 = sld [smem:[#allocation0]]
  $region74: #{dqn_forward.1} parent=0
    _
  %s19 = ssub.s32 1, %s17
  %s20 = scalar_select 0, %s19, %s17
  $region1: #{dqn_forward.1} parent=0
    #allocation2 [shape = 'u8[1024]{0}', space=vmem, size = 0x400, scoped, tag = 'output window, operand 0, single buffered']
    #allocation3 [shape = 's32[1]{0}', space=sflag, size = 0x4, scoped, tag = 'scoped memory for dqn_forward.1']
    %21 = vsyncpa [#allocation3], 0
    // Predicated region
    $region2: #{dqn_forward.1} parent=1 // pred_check
      _
    $region3: #{dqn_forward.1} parent=1 // pred_check_branch
      %23 = sbr.rel (0) target = $region5
    $region4: #{dqn_forward.1} parent=1 // pred_region
      _
    $region5: #{dqn_forward.1} parent=1 // pred_fallthru
      _
    // Predicated region
    $region6: #{dqn_forward.1} parent=1 // pred_check
      _
    $region7: #{dqn_forward.1} parent=1 // pred_check_branch
      %25 = sbr.rel (0) target = $region9
    $region8: #{dqn_forward.1} parent=1 // pred_region
      _
    $region9: #{dqn_forward.1} parent=1 // pred_fallthru
      _
    // Predicated region
    $region10: #{dqn_forward.1} parent=1 // pred_check
      _
    $region11: #{dqn_forward.1} parent=1 // pred_check_branch
      %27 = sbr.rel (0) target = $region13
    $region12: #{dqn_forward.1} parent=1 // pred_region
      _
    $region13: #{dqn_forward.1} parent=1 // pred_fallthru
      _
    // Predicated region
    $region14: #{dqn_forward.1} parent=1 // pred_check
      _
    $region15: #{dqn_forward.1} parent=1 // pred_check_branch
      %29 = sbr.rel (0) target = $region17
    $region16: #{dqn_forward.1} parent=1 // pred_region
      _
    $region17: #{dqn_forward.1} parent=1 // pred_fallthru
      _
    // Predicated region
    $region18: #{dqn_forward.1} parent=1 // pred_check
      _
    $region19: #{dqn_forward.1} parent=1 // pred_check_branch
      %31 = sbr.rel (0) target = $region21
    $region20: #{dqn_forward.1} parent=1 // pred_region
      _
    $region21: #{dqn_forward.1} parent=1 // pred_fallthru
      _
    // Predicated region
    $region22: #{dqn_forward.1} parent=1 // pred_check
      _
    $region23: #{dqn_forward.1} parent=1 // pred_check_branch
      %33 = sbr.rel (0) target = $region25
    $region24: #{dqn_forward.1} parent=1 // pred_region
      _
    $region25: #{dqn_forward.1} parent=1 // pred_fallthru
      _
    // Predicated region
    $region26: #{dqn_forward.1} parent=1 // pred_check
      _
    $region27: #{dqn_forward.1} parent=1 // pred_check_branch
      %35 = sbr.rel (0) target = $region29
    $region28: #{dqn_forward.1} parent=1 // pred_region
      _
    $region29: #{dqn_forward.1} parent=1 // pred_fallthru
      _
    // Predicated region
    $region30: #{dqn_forward.1} parent=1 // pred_check
      _
    $region31: #{dqn_forward.1} parent=1 // pred_check_branch
      %37 = sbr.rel (0) target = $region33
    $region32: #{dqn_forward.1} parent=1 // pred_region
      _
    $region33: #{dqn_forward.1} parent=1 // pred_fallthru
      _
    // Predicated region
    $region34: #{dqn_forward.1} parent=1 // pred_check
      _
    $region35: #{dqn_forward.1} parent=1 // pred_check_branch
      %39 = sbr.rel (0) target = $region37
    $region36: #{dqn_forward.1} parent=1 // pred_region
      _
    $region37: #{dqn_forward.1} parent=1 // pred_fallthru
      _
    // Predicated region
    $region38: #{dqn_forward.1} parent=1 // pred_check
      _
    $region39: #{dqn_forward.1} parent=1 // pred_check_branch
      %41 = sbr.rel (0) target = $region41
    $region40: #{dqn_forward.1} parent=1 // pred_region
      _
    $region41: #{dqn_forward.1} parent=1 // pred_fallthru
      _
    // Predicated region
    $region42: #{dqn_forward.1} parent=1 // pred_check
      _
    $region43: #{dqn_forward.1} parent=1 // pred_check_branch
      %43 = sbr.rel (0) target = $region45
    $region44: #{dqn_forward.1} parent=1 // pred_region
      _
    $region45: #{dqn_forward.1} parent=1 // pred_fallthru
      _
    // Predicated region
    $region46: #{dqn_forward.1} parent=1 // pred_check
      _
    $region47: #{dqn_forward.1} parent=1 // pred_check_branch
      %45 = sbr.rel (0) target = $region49
    $region48: #{dqn_forward.1} parent=1 // pred_region
      _
    $region49: #{dqn_forward.1} parent=1 // pred_fallthru
      _
    // Predicated region
    $region50: #{dqn_forward.1} parent=1 // pred_check
      _
    $region51: #{dqn_forward.1} parent=1 // pred_check_branch
      %47 = sbr.rel (0) target = $region53
    $region52: #{dqn_forward.1} parent=1 // pred_region
      _
    $region53: #{dqn_forward.1} parent=1 // pred_fallthru
      _
    // Predicated region
    $region54: #{dqn_forward.1} parent=1 // pred_check
      _
    $region55: #{dqn_forward.1} parent=1 // pred_check_branch
      %49 = sbr.rel (0) target = $region57
    $region56: #{dqn_forward.1} parent=1 // pred_region
      _
    $region57: #{dqn_forward.1} parent=1 // pred_fallthru
      _
    // Predicated region
    $region58: #{dqn_forward.1} parent=1 // pred_check
      _
    $region59: #{dqn_forward.1} parent=1 // pred_check_branch
      %51 = sbr.rel (0) target = $region61
    $region60: #{dqn_forward.1} parent=1 // pred_region
      _
    $region61: #{dqn_forward.1} parent=1 // pred_fallthru
      _
    // Predicated region
    $region62: #{dqn_forward.1} parent=1 // pred_check
      _
    $region63: #{dqn_forward.1} parent=1 // pred_check_branch
      %53 = sbr.rel (0) target = $region65
    $region64: #{dqn_forward.1} parent=1 // pred_region
      _
    $region65: #{dqn_forward.1} parent=1 // pred_fallthru
      _
    %v54 = vld [vmem:[%s0] sm:$0xff]
    %v55 = vld [vmem:[%s0 + $0x8] sm:$0xff]
    %v56 = vld [vmem:[%s0 + $0x10] sm:$0xff]
    %v57 = vld [vmem:[%s0 + $0x18] sm:$0xff]
    %v58 = vld [vmem:[%s0 + $0x20] sm:$0xff]
    %v59 = vld [vmem:[%s0 + $0x28] sm:$0xff]
    %v60 = vld [vmem:[%s0 + $0x30] sm:$0xff]
    %v61 = vld [vmem:[%s0 + $0x38] sm:$0xff]
    %v62 = vld [vmem:[%s0 + $0x40] sm:$0xff]
    %v63 = vld [vmem:[%s0 + $0x48] sm:$0xff]
    %v64 = vld [vmem:[%s0 + $0x50] sm:$0xff]
    %v65 = vld [vmem:[%s0 + $0x58] sm:$0xff]
    %v66 = vld [vmem:[%s0 + $0x60] sm:$0xff]
    %v67 = vld [vmem:[%s0 + $0x68] sm:$0xff]
    %v68 = vld [vmem:[%s0 + $0x70] sm:$0xff]
    %v69 = vld [vmem:[%s0 + $0x78] sm:$0xff]
    %v70 = vld [vmem:[%s0 + $0x80] sm:$0xff]
    %v71 = vld [vmem:[%s0 + $0x88] sm:$0xff]
    %v72 = vld [vmem:[%s0 + $0x90] sm:$0xff]
    %v73 = vld [vmem:[%s0 + $0x98] sm:$0xff]
    %v74 = vld [vmem:[%s0 + $0xa0] sm:$0xff]
    %v75 = vld [vmem:[%s0 + $0xa8] sm:$0xff]
    %v76 = vld [vmem:[%s0 + $0xb0] sm:$0xff]
    %v77 = vld [vmem:[%s0 + $0xb8] sm:$0xff]
    %v78 = vld [vmem:[%s0 + $0xc0] sm:$0xff]
    %v79 = vld [vmem:[%s0 + $0xc8] sm:$0xff]
    %v80 = vld [vmem:[%s0 + $0xd0] sm:$0xff]
    %v81 = vld [vmem:[%s0 + $0xd8] sm:$0xff]
    %v82 = vld [vmem:[%s0 + $0xe0] sm:$0xff]
    %v83 = vld [vmem:[%s0 + $0xe8] sm:$0xff]
    %v84 = vld [vmem:[%s0 + $0xf0] sm:$0xff]
    %v85 = vld [vmem:[%s0 + $0xf8] sm:$0xff]
    %v86 = vld [vmem:[%s0 + $0x100] sm:$0xff]
    %v87 = vld [vmem:[%s0 + $0x108] sm:$0xff]
    %v88 = vld [vmem:[%s0 + $0x110] sm:$0xff]
    %v89 = vld [vmem:[%s0 + $0x118] sm:$0xff]
    %v90 = vld [vmem:[%s5] sm:$0xff]
    %v91 = vld [vmem:[%s5 + $0x8] sm:$0xff]
    %v92 = vld [vmem:[%s5 + $0x10] sm:$0xff]
    %v93 = vld [vmem:[%s5 + $0x18] sm:$0xff]
    %v94 = vld [vmem:[%s5 + $0x20] sm:$0xf]
    %v95 = vld [vmem:[%s6] sm:$0x1]
    %v97 = vlaneseq
    %v98 = vshrl.u32 %v97, 7
    %v99 = vsub.s32 0, %v98
    %v100 = vrot.slane %v95, %v99
    %vm102 = vcmask 293888
    %v104 = vsel %vm102, %v54, 0
    %v107 = vsel %vm102, %v55, 0
    %v110 = vsel %vm102, %v56, 0
    %v113 = vsel %vm102, %v57, 0
    %v116 = vsel %vm102, %v58, 0
    %v119 = vsel %vm102, %v59, 0
    %v122 = vsel %vm102, %v60, 0
    %v125 = vsel %vm102, %v61, 0
    %v128 = vsel %vm102, %v62, 0
    %v131 = vsel %vm102, %v63, 0
    %v134 = vsel %vm102, %v64, 0
    %v137 = vsel %vm102, %v65, 0
    %v140 = vsel %vm102, %v66, 0
    %v143 = vsel %vm102, %v67, 0
    %v146 = vsel %vm102, %v68, 0
    %v149 = vsel %vm102, %v69, 0
    %v152 = vsel %vm102, %v70, 0
    %v155 = vsel %vm102, %v71, 0
    %v158 = vsel %vm102, %v72, 0
    %v161 = vsel %vm102, %v73, 0
    %v164 = vsel %vm102, %v74, 0
    %v167 = vsel %vm102, %v75, 0
    %v170 = vsel %vm102, %v76, 0
    %v173 = vsel %vm102, %v77, 0
    %v176 = vsel %vm102, %v78, 0
    %v179 = vsel %vm102, %v79, 0
    %v182 = vsel %vm102, %v80, 0
    %v185 = vsel %vm102, %v81, 0
    %v188 = vsel %vm102, %v82, 0
    %v191 = vsel %vm102, %v83, 0
    %v194 = vsel %vm102, %v84, 0
    %v197 = vsel %vm102, %v85, 0
    %v200 = vsel %vm102, %v86, 0
    %v203 = vsel %vm102, %v87, 0
    %v206 = vsel %vm102, %v88, 0
    %v209 = vsel %vm102, %v89, 0
    %vm211 = vcmask 1043456
    %v213 = vsel %vm211, %v94, 0
    %215 = vmatprep.subr.mxu0 0.0
    %216 = vmatpush1.msra.mxu0 0.0
    %217 = vmatprep.subr.mxu0 0.0
    %218 = vmatpush1.msra.mxu0 0.0
    %219 = vmatprep.subr.mxu0 0.0
    %220 = vmatpush1.msra.mxu0 0.0
    %221 = vmatprep.subr.mxu0 0.0
    %222 = vmatpush1.msra.mxu0 0.0
    %223 = vmatprep.subr.mxu0 0.0
    %224 = vmatpush1.msra.mxu0 0.0
    %225 = vmatprep.subr.mxu0 0.0
    %226 = vmatpush1.msra.mxu0 0.0
    %227 = vmatprep.subr.mxu0 0.0
    %228 = vmatpush1.msra.mxu0 0.0
    %229 = vmatprep.subr.mxu0 0.0
    %230 = vmatpush1.msra.mxu0 0.0
    %231 = vmatprep.subr.mxu0 0.0
    %232 = vmatpush1.msra.mxu0 0.0
    %233 = vmatprep.subr.mxu0 0.0
    %234 = vmatpush1.msra.mxu0 0.0
    %235 = vmatprep.subr.mxu0 0.0
    %236 = vmatpush1.msra.mxu0 0.0
    %237 = vmatprep.subr.mxu0 0.0
    %238 = vmatpush1.msra.mxu0 %v213
    %239 = vmatprep.subr.mxu0 0.0
    %240 = vmatpush1.msra.mxu0 %v93
    %241 = vmatprep.subr.mxu0 0.0
    %242 = vmatpush1.msra.mxu0 %v92
    %243 = vmatprep.subr.mxu0 0.0
    %244 = vmatpush1.msra.mxu0 %v91
    %245 = vmatprep.subr.mxu0 0.0
    %246 = vmatpush1.msra.mxu0 %v90
    %247 = vmatprep.subr.mxu0 0.0
    %248 = vmatpush2.msra.mxu0 0.0
    %249 = vmatprep.subr.mxu0 0.0
    %250 = vmatpush2.msra.mxu0 0.0
    %251 = vmatprep.subr.mxu0 0.0
    %252 = vmatpush2.msra.mxu0 0.0
    %253 = vmatprep.subr.mxu0 0.0
    %254 = vmatpush2.msra.mxu0 0.0
    %255 = vmatprep.subr.mxu0 0.0
    %256 = vmatpush2.msra.mxu0 0.0
    %257 = vmatprep.subr.mxu0 0.0
    %258 = vmatpush2.msra.mxu0 0.0
    %259 = vmatprep.subr.mxu0 0.0
    %260 = vmatpush2.msra.mxu0 0.0
    %261 = vmatprep.subr.mxu0 0.0
    %262 = vmatpush2.msra.mxu0 0.0
    %263 = vmatprep.subr.mxu0 0.0
    %264 = vmatpush2.msra.mxu0 0.0
    %265 = vmatprep.subr.mxu0 0.0
    %266 = vmatpush2.msra.mxu0 0.0
    %267 = vmatprep.subr.mxu0 0.0
    %268 = vmatpush2.msra.mxu0 0.0
    %269 = vmatprep.subr.mxu0 0.0
    %270 = vmatpush2.msra.mxu0 0.0
    %271 = vmatprep.subr.mxu0 0.0
    %272 = vmatpush2.msra.mxu0 0.0
    %273 = vmatprep.subr.mxu0 0.0
    %274 = vmatpush2.msra.mxu0 0.0
    %275 = vmatprep.subr.mxu0 0.0
    %276 = vmatpush2.msra.mxu0 0.0
    %277 = vmatprep.subr.mxu0 0.0
    %278 = vmatpush2.msra.mxu0 0.0
    %279 = vmatprep.mubr.f32.mxu0 0.0
    %280 = vmatmul.mubr.f32.gmra.mxu0 %v104
    %v281 = vpop.f32.mrf.mxu0
    %v282 = vadd.f32 %v100, %v281
    %v283 = vpop.f32.mrf.mxu0
    %284 = vmatprep.mubr.f32.mxu0 0.0
    %285 = vmatmul.mubr.f32.gmra.mxu0 %v107
    %v286 = vpop.f32.mrf.mxu0
    %v287 = vadd.f32 %v100, %v286
    %v288 = vpop.f32.mrf.mxu0
    %289 = vmatprep.mubr.f32.mxu0 0.0
    %290 = vmatmul.mubr.f32.gmra.mxu0 %v110
    %v291 = vpop.f32.mrf.mxu0
    %v292 = vadd.f32 %v100, %v291
    %v293 = vpop.f32.mrf.mxu0
    %294 = vmatprep.mubr.f32.mxu0 0.0
    %295 = vmatmul.mubr.f32.gmra.mxu0 %v113
    %v296 = vpop.f32.mrf.mxu0
    %v297 = vadd.f32 %v100, %v296
    %v298 = vpop.f32.mrf.mxu0
    %299 = vmatprep.mubr.f32.mxu0 0.0
    %300 = vmatmul.mubr.f32.gmra.mxu0 %v116
    %v301 = vpop.f32.mrf.mxu0
    %v302 = vadd.f32 %v100, %v301
    %v303 = vpop.f32.mrf.mxu0
    %304 = vmatprep.mubr.f32.mxu0 0.0
    %305 = vmatmul.mubr.f32.gmra.mxu0 %v119
    %v306 = vpop.f32.mrf.mxu0
    %v307 = vadd.f32 %v100, %v306
    %v308 = vpop.f32.mrf.mxu0
    %309 = vmatprep.mubr.f32.mxu0 0.0
    %310 = vmatmul.mubr.f32.gmra.mxu0 %v122
    %v311 = vpop.f32.mrf.mxu0
    %v312 = vadd.f32 %v100, %v311
    %v313 = vpop.f32.mrf.mxu0
    %314 = vmatprep.mubr.f32.mxu0 0.0
    %315 = vmatmul.mubr.f32.gmra.mxu0 %v125
    %v316 = vpop.f32.mrf.mxu0
    %v317 = vadd.f32 %v100, %v316
    %v318 = vpop.f32.mrf.mxu0
    %319 = vmatprep.mubr.f32.mxu0 0.0
    %320 = vmatmul.mubr.f32.gmra.mxu0 %v128
    %v321 = vpop.f32.mrf.mxu0
    %v322 = vadd.f32 %v100, %v321
    %v323 = vpop.f32.mrf.mxu0
    %324 = vmatprep.mubr.f32.mxu0 0.0
    %325 = vmatmul.mubr.f32.gmra.mxu0 %v131
    %v326 = vpop.f32.mrf.mxu0
    %v327 = vadd.f32 %v100, %v326
    %v328 = vpop.f32.mrf.mxu0
    %329 = vmatprep.mubr.f32.mxu0 0.0
    %330 = vmatmul.mubr.f32.gmra.mxu0 %v134
    %v331 = vpop.f32.mrf.mxu0
    %v332 = vadd.f32 %v100, %v331
    %v333 = vpop.f32.mrf.mxu0
    %334 = vmatprep.mubr.f32.mxu0 0.0
    %335 = vmatmul.mubr.f32.gmra.mxu0 %v137
    %v336 = vpop.f32.mrf.mxu0
    %v337 = vadd.f32 %v100, %v336
    %v338 = vpop.f32.mrf.mxu0
    %339 = vmatprep.mubr.f32.mxu0 0.0
    %340 = vmatmul.mubr.f32.gmra.mxu0 %v140
    %v341 = vpop.f32.mrf.mxu0
    %v342 = vadd.f32 %v100, %v341
    %v343 = vpop.f32.mrf.mxu0
    %344 = vmatprep.mubr.f32.mxu0 0.0
    %345 = vmatmul.mubr.f32.gmra.mxu0 %v143
    %v346 = vpop.f32.mrf.mxu0
    %v347 = vadd.f32 %v100, %v346
    %v348 = vpop.f32.mrf.mxu0
    %349 = vmatprep.mubr.f32.mxu0 0.0
    %350 = vmatmul.mubr.f32.gmra.mxu0 %v146
    %v351 = vpop.f32.mrf.mxu0
    %v352 = vadd.f32 %v100, %v351
    %v353 = vpop.f32.mrf.mxu0
    %354 = vmatprep.mubr.f32.mxu0 0.0
    %355 = vmatmul.mubr.f32.gmra.mxu0 %v149
    %v356 = vpop.f32.mrf.mxu0
    %v357 = vadd.f32 %v100, %v356
    %v358 = vpop.f32.mrf.mxu0
    %359 = vmatprep.mubr.f32.mxu0 0.0
    %360 = vmatmul.mubr.f32.gmra.mxu0 %v152
    %v361 = vpop.f32.mrf.mxu0
    %v362 = vadd.f32 %v100, %v361
    %v363 = vpop.f32.mrf.mxu0
    %364 = vmatprep.mubr.f32.mxu0 0.0
    %365 = vmatmul.mubr.f32.gmra.mxu0 %v155
    %v366 = vpop.f32.mrf.mxu0
    %v367 = vadd.f32 %v100, %v366
    %v368 = vpop.f32.mrf.mxu0
    %369 = vmatprep.mubr.f32.mxu0 0.0
    %370 = vmatmul.mubr.f32.gmra.mxu0 %v158
    %v371 = vpop.f32.mrf.mxu0
    %v372 = vadd.f32 %v100, %v371
    %v373 = vpop.f32.mrf.mxu0
    %374 = vmatprep.mubr.f32.mxu0 0.0
    %375 = vmatmul.mubr.f32.gmra.mxu0 %v161
    %v376 = vpop.f32.mrf.mxu0
    %v377 = vadd.f32 %v100, %v376
    %v378 = vpop.f32.mrf.mxu0
    %379 = vmatprep.mubr.f32.mxu0 0.0
    %380 = vmatmul.mubr.f32.gmra.mxu0 %v164
    %v381 = vpop.f32.mrf.mxu0
    %v382 = vadd.f32 %v100, %v381
    %v383 = vpop.f32.mrf.mxu0
    %384 = vmatprep.mubr.f32.mxu0 0.0
    %385 = vmatmul.mubr.f32.gmra.mxu0 %v167
    %v386 = vpop.f32.mrf.mxu0
    %v387 = vadd.f32 %v100, %v386
    %v388 = vpop.f32.mrf.mxu0
    %389 = vmatprep.mubr.f32.mxu0 0.0
    %390 = vmatmul.mubr.f32.gmra.mxu0 %v170
    %v391 = vpop.f32.mrf.mxu0
    %v392 = vadd.f32 %v100, %v391
    %v393 = vpop.f32.mrf.mxu0
    %394 = vmatprep.mubr.f32.mxu0 0.0
    %395 = vmatmul.mubr.f32.gmra.mxu0 %v173
    %v396 = vpop.f32.mrf.mxu0
    %v397 = vadd.f32 %v100, %v396
    %v398 = vpop.f32.mrf.mxu0
    %399 = vmatprep.mubr.f32.mxu0 0.0
    %400 = vmatmul.mubr.f32.gmra.mxu0 %v176
    %v401 = vpop.f32.mrf.mxu0
    %v402 = vadd.f32 %v100, %v401
    %v403 = vpop.f32.mrf.mxu0
    %404 = vmatprep.mubr.f32.mxu0 0.0
    %405 = vmatmul.mubr.f32.gmra.mxu0 %v179
    %v406 = vpop.f32.mrf.mxu0
    %v407 = vadd.f32 %v100, %v406
    %v408 = vpop.f32.mrf.mxu0
    %409 = vmatprep.mubr.f32.mxu0 0.0
    %410 = vmatmul.mubr.f32.gmra.mxu0 %v182
    %v411 = vpop.f32.mrf.mxu0
    %v412 = vadd.f32 %v100, %v411
    %v413 = vpop.f32.mrf.mxu0
    %414 = vmatprep.mubr.f32.mxu0 0.0
    %415 = vmatmul.mubr.f32.gmra.mxu0 %v185
    %v416 = vpop.f32.mrf.mxu0
    %v417 = vadd.f32 %v100, %v416
    %v418 = vpop.f32.mrf.mxu0
    %419 = vmatprep.mubr.f32.mxu0 0.0
    %420 = vmatmul.mubr.f32.gmra.mxu0 %v188
    %v421 = vpop.f32.mrf.mxu0
    %v422 = vadd.f32 %v100, %v421
    %v423 = vpop.f32.mrf.mxu0
    %424 = vmatprep.mubr.f32.mxu0 0.0
    %425 = vmatmul.mubr.f32.gmra.mxu0 %v191
    %v426 = vpop.f32.mrf.mxu0
    %v427 = vadd.f32 %v100, %v426
    %v428 = vpop.f32.mrf.mxu0
    %429 = vmatprep.mubr.f32.mxu0 0.0
    %430 = vmatmul.mubr.f32.gmra.mxu0 %v194
    %v431 = vpop.f32.mrf.mxu0
    %v432 = vadd.f32 %v100, %v431
    %v433 = vpop.f32.mrf.mxu0
    %434 = vmatprep.mubr.f32.mxu0 0.0
    %435 = vmatmul.mubr.f32.gmra.mxu0 %v197
    %v436 = vpop.f32.mrf.mxu0
    %v437 = vadd.f32 %v100, %v436
    %v438 = vpop.f32.mrf.mxu0
    %439 = vmatprep.mubr.f32.mxu0 0.0
    %440 = vmatmul.mubr.f32.gmra.mxu0 %v200
    %v441 = vpop.f32.mrf.mxu0
    %v442 = vadd.f32 %v100, %v441
    %v443 = vpop.f32.mrf.mxu0
    %444 = vmatprep.mubr.f32.mxu0 0.0
    %445 = vmatmul.mubr.f32.gmra.mxu0 %v203
    %v446 = vpop.f32.mrf.mxu0
    %v447 = vadd.f32 %v100, %v446
    %v448 = vpop.f32.mrf.mxu0
    %449 = vmatprep.mubr.f32.mxu0 0.0
    %450 = vmatmul.mubr.f32.gmra.mxu0 %v206
    %v451 = vpop.f32.mrf.mxu0
    %v452 = vadd.f32 %v100, %v451
    %v453 = vpop.f32.mrf.mxu0
    %454 = vmatprep.mubr.f32.mxu0 0.0
    %455 = vmatmul.mubr.f32.gmra.mxu0 %v209
    %v456 = vpop.f32.mrf.mxu0
    %v457 = vadd.f32 %v100, %v456
    %v458 = vpop.f32.mrf.mxu0
    %459 = vdwg.mxu0
    %v460 = vmax.f32 %v282, 0.0
    %v461 = vmax.f32 %v287, 0.0
    %v462 = vmax.f32 %v292, 0.0
    %v463 = vmax.f32 %v297, 0.0
    %v464 = vmax.f32 %v302, 0.0
    %v465 = vmax.f32 %v307, 0.0
    %v466 = vmax.f32 %v312, 0.0
    %v467 = vmax.f32 %v317, 0.0
    %v468 = vmax.f32 %v322, 0.0
    %v469 = vmax.f32 %v327, 0.0
    %v470 = vmax.f32 %v332, 0.0
    %v471 = vmax.f32 %v337, 0.0
    %v472 = vmax.f32 %v342, 0.0
    %v473 = vmax.f32 %v347, 0.0
    %v474 = vmax.f32 %v352, 0.0
    %v475 = vmax.f32 %v357, 0.0
    %v476 = vmax.f32 %v362, 0.0
    %v477 = vmax.f32 %v367, 0.0
    %v478 = vmax.f32 %v372, 0.0
    %v479 = vmax.f32 %v377, 0.0
    %v480 = vmax.f32 %v382, 0.0
    %v481 = vmax.f32 %v387, 0.0
    %v482 = vmax.f32 %v392, 0.0
    %v483 = vmax.f32 %v397, 0.0
    %v484 = vmax.f32 %v402, 0.0
    %v485 = vmax.f32 %v407, 0.0
    %v486 = vmax.f32 %v412, 0.0
    %v487 = vmax.f32 %v417, 0.0
    %v488 = vmax.f32 %v422, 0.0
    %v489 = vmax.f32 %v427, 0.0
    %v490 = vmax.f32 %v432, 0.0
    %v491 = vmax.f32 %v437, 0.0
    %v492 = vmax.f32 %v442, 0.0
    %v493 = vmax.f32 %v447, 0.0
    %v494 = vmax.f32 %v452, 0.0
    %v495 = vmax.f32 %v457, 0.0
    %v496 = vld [vmem:[%s1] sm:$0xff]
    %v497 = vld [vmem:[%s1 + $0x8] sm:$0xff]
    %v498 = vld [vmem:[%s1 + $0x10] sm:$0xff]
    %v499 = vld [vmem:[%s1 + $0x18] sm:$0xff]
    %v500 = vld [vmem:[%s1 + $0x20] sm:$0xff]
    %v501 = vld [vmem:[%s1 + $0x28] sm:$0xff]
    %v502 = vld [vmem:[%s1 + $0x30] sm:$0xff]
    %v503 = vld [vmem:[%s1 + $0x38] sm:$0xff]
    %v504 = vld [vmem:[%s1 + $0x40] sm:$0xff]
    %v505 = vld [vmem:[%s1 + $0x48] sm:$0xff]
    %v506 = vld [vmem:[%s1 + $0x50] sm:$0xff]
    %v507 = vld [vmem:[%s1 + $0x58] sm:$0xff]
    %v508 = vld [vmem:[%s1 + $0x60] sm:$0xff]
    %v509 = vld [vmem:[%s1 + $0x68] sm:$0xff]
    %v510 = vld [vmem:[%s1 + $0x70] sm:$0xff]
    %v511 = vld [vmem:[%s1 + $0x78] sm:$0xff]
    %v512 = vld [vmem:[%s1 + $0x80] sm:$0xff]
    %v513 = vld [vmem:[%s1 + $0x88] sm:$0xff]
    %v514 = vld [vmem:[%s1 + $0x90] sm:$0xff]
    %v515 = vld [vmem:[%s1 + $0x98] sm:$0xff]
    %v516 = vld [vmem:[%s1 + $0xa0] sm:$0xff]
    %v517 = vld [vmem:[%s1 + $0xa8] sm:$0xff]
    %v518 = vld [vmem:[%s1 + $0xb0] sm:$0xff]
    %v519 = vld [vmem:[%s1 + $0xb8] sm:$0xff]
    %v520 = vld [vmem:[%s1 + $0xc0] sm:$0xff]
    %v521 = vld [vmem:[%s1 + $0xc8] sm:$0xff]
    %v522 = vld [vmem:[%s1 + $0xd0] sm:$0xff]
    %v523 = vld [vmem:[%s1 + $0xd8] sm:$0xff]
    %v524 = vld [vmem:[%s1 + $0xe0] sm:$0xff]
    %v525 = vld [vmem:[%s1 + $0xe8] sm:$0xff]
    %v526 = vld [vmem:[%s1 + $0xf0] sm:$0xff]
    %v527 = vld [vmem:[%s1 + $0xf8] sm:$0xff]
    %v528 = vld [vmem:[%s1 + $0x100] sm:$0xff]
    %v529 = vld [vmem:[%s1 + $0x108] sm:$0xff]
    %v530 = vld [vmem:[%s1 + $0x110] sm:$0xff]
    %v531 = vld [vmem:[%s1 + $0x118] sm:$0xff]
    %533 = vset.pattern.permute.xlu0 0
    %534 = vperm.xlu0 %533, %v496
    %v535 = vpop.permute.xlu0 %534
    %538 = vset.pattern.permute.xlu0 0
    %539 = vperm.xlu0 %538, %v497
    %v540 = vpop.permute.xlu0 %539
    %543 = vset.pattern.permute.xlu0 0
    %544 = vperm.xlu0 %543, %v498
    %v545 = vpop.permute.xlu0 %544
    %548 = vset.pattern.permute.xlu0 0
    %549 = vperm.xlu0 %548, %v499
    %v550 = vpop.permute.xlu0 %549
    %553 = vset.pattern.permute.xlu0 0
    %554 = vperm.xlu0 %553, %v500
    %v555 = vpop.permute.xlu0 %554
    %558 = vset.pattern.permute.xlu0 0
    %559 = vperm.xlu0 %558, %v501
    %v560 = vpop.permute.xlu0 %559
    %563 = vset.pattern.permute.xlu0 0
    %564 = vperm.xlu0 %563, %v502
    %v565 = vpop.permute.xlu0 %564
    %568 = vset.pattern.permute.xlu0 0
    %569 = vperm.xlu0 %568, %v503
    %v570 = vpop.permute.xlu0 %569
    %573 = vset.pattern.permute.xlu0 0
    %574 = vperm.xlu0 %573, %v504
    %v575 = vpop.permute.xlu0 %574
    %578 = vset.pattern.permute.xlu0 0
    %579 = vperm.xlu0 %578, %v505
    %v580 = vpop.permute.xlu0 %579
    %583 = vset.pattern.permute.xlu0 0
    %584 = vperm.xlu0 %583, %v506
    %v585 = vpop.permute.xlu0 %584
    %588 = vset.pattern.permute.xlu0 0
    %589 = vperm.xlu0 %588, %v507
    %v590 = vpop.permute.xlu0 %589
    %593 = vset.pattern.permute.xlu0 0
    %594 = vperm.xlu0 %593, %v508
    %v595 = vpop.permute.xlu0 %594
    %598 = vset.pattern.permute.xlu0 0
    %599 = vperm.xlu0 %598, %v509
    %v600 = vpop.permute.xlu0 %599
    %603 = vset.pattern.permute.xlu0 0
    %604 = vperm.xlu0 %603, %v510
    %v605 = vpop.permute.xlu0 %604
    %608 = vset.pattern.permute.xlu0 0
    %609 = vperm.xlu0 %608, %v511
    %v610 = vpop.permute.xlu0 %609
    %613 = vset.pattern.permute.xlu0 0
    %614 = vperm.xlu0 %613, %v512
    %v615 = vpop.permute.xlu0 %614
    %618 = vset.pattern.permute.xlu0 0
    %619 = vperm.xlu0 %618, %v513
    %v620 = vpop.permute.xlu0 %619
    %623 = vset.pattern.permute.xlu0 0
    %624 = vperm.xlu0 %623, %v514
    %v625 = vpop.permute.xlu0 %624
    %628 = vset.pattern.permute.xlu0 0
    %629 = vperm.xlu0 %628, %v515
    %v630 = vpop.permute.xlu0 %629
    %633 = vset.pattern.permute.xlu0 0
    %634 = vperm.xlu0 %633, %v516
    %v635 = vpop.permute.xlu0 %634
    %638 = vset.pattern.permute.xlu0 0
    %639 = vperm.xlu0 %638, %v517
    %v640 = vpop.permute.xlu0 %639
    %643 = vset.pattern.permute.xlu0 0
    %644 = vperm.xlu0 %643, %v518
    %v645 = vpop.permute.xlu0 %644
    %648 = vset.pattern.permute.xlu0 0
    %649 = vperm.xlu0 %648, %v519
    %v650 = vpop.permute.xlu0 %649
    %653 = vset.pattern.permute.xlu0 0
    %654 = vperm.xlu0 %653, %v520
    %v655 = vpop.permute.xlu0 %654
    %658 = vset.pattern.permute.xlu0 0
    %659 = vperm.xlu0 %658, %v521
    %v660 = vpop.permute.xlu0 %659
    %663 = vset.pattern.permute.xlu0 0
    %664 = vperm.xlu0 %663, %v522
    %v665 = vpop.permute.xlu0 %664
    %668 = vset.pattern.permute.xlu0 0
    %669 = vperm.xlu0 %668, %v523
    %v670 = vpop.permute.xlu0 %669
    %673 = vset.pattern.permute.xlu0 0
    %674 = vperm.xlu0 %673, %v524
    %v675 = vpop.permute.xlu0 %674
    %678 = vset.pattern.permute.xlu0 0
    %679 = vperm.xlu0 %678, %v525
    %v680 = vpop.permute.xlu0 %679
    %683 = vset.pattern.permute.xlu0 0
    %684 = vperm.xlu0 %683, %v526
    %v685 = vpop.permute.xlu0 %684
    %688 = vset.pattern.permute.xlu0 0
    %689 = vperm.xlu0 %688, %v527
    %v690 = vpop.permute.xlu0 %689
    %693 = vset.pattern.permute.xlu0 0
    %694 = vperm.xlu0 %693, %v528
    %v695 = vpop.permute.xlu0 %694
    %698 = vset.pattern.permute.xlu0 0
    %699 = vperm.xlu0 %698, %v529
    %v700 = vpop.permute.xlu0 %699
    %703 = vset.pattern.permute.xlu0 0
    %704 = vperm.xlu0 %703, %v530
    %v705 = vpop.permute.xlu0 %704
    %708 = vset.pattern.permute.xlu0 0
    %709 = vperm.xlu0 %708, %v531
    %v710 = vpop.permute.xlu0 %709
    %v712 = vmul.f32 %v460, %v535
    %v713 = vmul.f32 %v461, %v540
    %v714 = vmul.f32 %v462, %v545
    %v715 = vmul.f32 %v463, %v550
    %v716 = vmul.f32 %v464, %v555
    %v717 = vmul.f32 %v465, %v560
    %v718 = vmul.f32 %v466, %v565
    %v719 = vmul.f32 %v467, %v570
    %v720 = vmul.f32 %v468, %v575
    %v721 = vmul.f32 %v469, %v580
    %v722 = vmul.f32 %v470, %v585
    %v723 = vmul.f32 %v471, %v590
    %v724 = vmul.f32 %v472, %v595
    %v725 = vmul.f32 %v473, %v600
    %v726 = vmul.f32 %v474, %v605
    %v727 = vmul.f32 %v475, %v610
    %v728 = vmul.f32 %v476, %v615
    %v729 = vmul.f32 %v477, %v620
    %v730 = vmul.f32 %v478, %v625
    %v731 = vmul.f32 %v479, %v630
    %v732 = vmul.f32 %v480, %v635
    %v733 = vmul.f32 %v481, %v640
    %v734 = vmul.f32 %v482, %v645
    %v735 = vmul.f32 %v483, %v650
    %v736 = vmul.f32 %v484, %v655
    %v737 = vmul.f32 %v485, %v660
    %v738 = vmul.f32 %v486, %v665
    %v739 = vmul.f32 %v487, %v670
    %v740 = vmul.f32 %v488, %v675
    %v741 = vmul.f32 %v489, %v680
    %v742 = vmul.f32 %v490, %v685
    %v743 = vmul.f32 %v491, %v690
    %v744 = vmul.f32 %v492, %v695
    %v745 = vmul.f32 %v493, %v700
    %v746 = vmul.f32 %v494, %v705
    %v747 = vmul.f32 %v495, %v710
    %v748 = vld [vmem:[%s7] sm:$0xff]
    %v749 = vld [vmem:[%s7 + $0x8] sm:$0xff]
    %v750 = vld [vmem:[%s7 + $0x10] sm:$0xff]
    %v751 = vld [vmem:[%s7 + $0x18] sm:$0xff]
    %v752 = vld [vmem:[%s7 + $0x20] sm:$0xff]
    %v753 = vld [vmem:[%s7 + $0x28] sm:$0xff]
    %v754 = vld [vmem:[%s7 + $0x30] sm:$0xff]
    %v755 = vld [vmem:[%s7 + $0x38] sm:$0xff]
    %v756 = vld [vmem:[%s7 + $0x40] sm:$0xff]
    %v757 = vld [vmem:[%s7 + $0x48] sm:$0xff]
    %v758 = vld [vmem:[%s7 + $0x50] sm:$0xff]
    %v759 = vld [vmem:[%s7 + $0x58] sm:$0xff]
    %v760 = vld [vmem:[%s7 + $0x60] sm:$0xff]
    %v761 = vld [vmem:[%s7 + $0x68] sm:$0xff]
    %v762 = vld [vmem:[%s7 + $0x70] sm:$0xff]
    %v763 = vld [vmem:[%s7 + $0x78] sm:$0xff]
    %v764 = vld [vmem:[%s7 + $0x80] sm:$0xff]
    %v765 = vld [vmem:[%s7 + $0x88] sm:$0xff]
    %vm766 = vcmask 130048
    %v768 = vsel %vm766, %v716, 0
    %v771 = vsel %vm766, %v717, 0
    %v774 = vsel %vm766, %v718, 0
    %v777 = vsel %vm766, %v719, 0
    %779 = vmatprep.subr.mxu0 0.0
    %780 = vmatpush1.msra.mxu0 0.0
    %781 = vmatprep.subr.mxu0 0.0
    %782 = vmatpush1.msra.mxu0 0.0
    %783 = vmatprep.subr.mxu0 0.0
    %784 = vmatpush1.msra.mxu0 0.0
    %785 = vmatprep.subr.mxu0 0.0
    %786 = vmatpush1.msra.mxu0 0.0
    %787 = vmatprep.subr.mxu0 0.0
    %788 = vmatpush1.msra.mxu0 0.0
    %789 = vmatprep.subr.mxu0 0.0
    %790 = vmatpush1.msra.mxu0 0.0
    %791 = vmatprep.subr.mxu0 0.0
    %792 = vmatpush1.msra.mxu0 0.0
    %793 = vmatprep.subr.mxu0 0.0
    %794 = vmatpush1.msra.mxu0 0.0
    %795 = vmatprep.subr.mxu0 0.0
    %796 = vmatpush1.msra.mxu0 0.0
    %797 = vmatprep.subr.mxu0 0.0
    %798 = vmatpush1.msra.mxu0 0.0
    %799 = vmatprep.subr.mxu0 0.0
    %800 = vmatpush1.msra.mxu0 0.0
    %801 = vmatprep.subr.mxu0 0.0
    %802 = vmatpush1.msra.mxu0 0.0
    %803 = vmatprep.subr.mxu0 0.0
    %804 = vmatpush1.msra.mxu0 0.0
    %805 = vmatprep.subr.mxu0 0.0
    %806 = vmatpush1.msra.mxu0 0.0
    %807 = vmatprep.subr.mxu0 0.0
    %808 = vmatpush1.msra.mxu0 %v751
    %809 = vmatprep.subr.mxu0 0.0
    %810 = vmatpush1.msra.mxu0 %v750
    %811 = vmatprep.subr.mxu0 0.0
    %812 = vmatpush2.msra.mxu0 0.0
    %813 = vmatprep.subr.mxu0 0.0
    %814 = vmatpush2.msra.mxu0 0.0
    %815 = vmatprep.subr.mxu0 0.0
    %816 = vmatpush2.msra.mxu0 0.0
    %817 = vmatprep.subr.mxu0 0.0
    %818 = vmatpush2.msra.mxu0 0.0
    %819 = vmatprep.subr.mxu0 0.0
    %820 = vmatpush2.msra.mxu0 0.0
    %821 = vmatprep.subr.mxu0 0.0
    %822 = vmatpush2.msra.mxu0 0.0
    %823 = vmatprep.subr.mxu0 0.0
    %824 = vmatpush2.msra.mxu0 0.0
    %825 = vmatprep.subr.mxu0 0.0
    %826 = vmatpush2.msra.mxu0 0.0
    %827 = vmatprep.subr.mxu0 0.0
    %828 = vmatpush2.msra.mxu0 0.0
    %829 = vmatprep.subr.mxu0 0.0
    %830 = vmatpush2.msra.mxu0 0.0
    %831 = vmatprep.subr.mxu0 0.0
    %832 = vmatpush2.msra.mxu0 0.0
    %833 = vmatprep.subr.mxu0 0.0
    %834 = vmatpush2.msra.mxu0 0.0
    %835 = vmatprep.subr.mxu0 0.0
    %836 = vmatpush2.msra.mxu0 0.0
    %837 = vmatprep.subr.mxu0 0.0
    %838 = vmatpush2.msra.mxu0 0.0
    %839 = vmatprep.subr.mxu0 0.0
    %840 = vmatpush2.msra.mxu0 0.0
    %841 = vmatprep.subr.mxu0 0.0
    %842 = vmatpush2.msra.mxu0 0.0
    %843 = vmatprep.mubr.f32.mxu0 0.0
    %844 = vmatmul.mubr.f32.gmra.mxu0 %v768
    %v845 = vpop.f32.mrf.mxu0
    %v846 = vadd.f32 0.0, %v845
    %v847 = vpop.f32.mrf.mxu0
    %848 = vmatprep.mubr.f32.mxu0 0.0
    %849 = vmatmul.mubr.f32.gmra.mxu0 %v771
    %v850 = vpop.f32.mrf.mxu0
    %v851 = vadd.f32 0.0, %v850
    %v852 = vpop.f32.mrf.mxu0
    %853 = vmatprep.mubr.f32.mxu0 0.0
    %854 = vmatmul.mubr.f32.gmra.mxu0 %v774
    %v855 = vpop.f32.mrf.mxu0
    %v856 = vadd.f32 0.0, %v855
    %v857 = vpop.f32.mrf.mxu0
    %858 = vmatprep.mubr.f32.mxu0 0.0
    %859 = vmatmul.mubr.f32.gmra.mxu0 %v777
    %v860 = vpop.f32.mrf.mxu0
    %v861 = vadd.f32 0.0, %v860
    %v862 = vpop.f32.mrf.mxu0
    %863 = vdwg.mxu0
    %v865 = vsel %vm766, %v712, 0
    %v868 = vsel %vm766, %v713, 0
    %v871 = vsel %vm766, %v714, 0
    %v874 = vsel %vm766, %v715, 0
    %876 = vmatprep.subr.mxu0 0.0
    %877 = vmatpush1.msra.mxu0 0.0
    %878 = vmatprep.subr.mxu0 0.0
    %879 = vmatpush1.msra.mxu0 0.0
    %880 = vmatprep.subr.mxu0 0.0
    %881 = vmatpush1.msra.mxu0 0.0
    %882 = vmatprep.subr.mxu0 0.0
    %883 = vmatpush1.msra.mxu0 0.0
    %884 = vmatprep.subr.mxu0 0.0
    %885 = vmatpush1.msra.mxu0 0.0
    %886 = vmatprep.subr.mxu0 0.0
    %887 = vmatpush1.msra.mxu0 0.0
    %888 = vmatprep.subr.mxu0 0.0
    %889 = vmatpush1.msra.mxu0 0.0
    %890 = vmatprep.subr.mxu0 0.0
    %891 = vmatpush1.msra.mxu0 0.0
    %892 = vmatprep.subr.mxu0 0.0
    %893 = vmatpush1.msra.mxu0 0.0
    %894 = vmatprep.subr.mxu0 0.0
    %895 = vmatpush1.msra.mxu0 0.0
    %896 = vmatprep.subr.mxu0 0.0
    %897 = vmatpush1.msra.mxu0 0.0
    %898 = vmatprep.subr.mxu0 0.0
    %899 = vmatpush1.msra.mxu0 0.0
    %900 = vmatprep.subr.mxu0 0.0
    %901 = vmatpush1.msra.mxu0 0.0
    %902 = vmatprep.subr.mxu0 0.0
    %903 = vmatpush1.msra.mxu0 0.0
    %904 = vmatprep.subr.mxu0 0.0
    %905 = vmatpush1.msra.mxu0 %v749
    %906 = vmatprep.subr.mxu0 0.0
    %907 = vmatpush1.msra.mxu0 %v748
    %908 = vmatprep.subr.mxu0 0.0
    %909 = vmatpush2.msra.mxu0 0.0
    %910 = vmatprep.subr.mxu0 0.0
    %911 = vmatpush2.msra.mxu0 0.0
    %912 = vmatprep.subr.mxu0 0.0
    %913 = vmatpush2.msra.mxu0 0.0
    %914 = vmatprep.subr.mxu0 0.0
    %915 = vmatpush2.msra.mxu0 0.0
    %916 = vmatprep.subr.mxu0 0.0
    %917 = vmatpush2.msra.mxu0 0.0
    %918 = vmatprep.subr.mxu0 0.0
    %919 = vmatpush2.msra.mxu0 0.0
    %920 = vmatprep.subr.mxu0 0.0
    %921 = vmatpush2.msra.mxu0 0.0
    %922 = vmatprep.subr.mxu0 0.0
    %923 = vmatpush2.msra.mxu0 0.0
    %924 = vmatprep.subr.mxu0 0.0
    %925 = vmatpush2.msra.mxu0 0.0
    %926 = vmatprep.subr.mxu0 0.0
    %927 = vmatpush2.msra.mxu0 0.0
    %928 = vmatprep.subr.mxu0 0.0
    %929 = vmatpush2.msra.mxu0 0.0
    %930 = vmatprep.subr.mxu0 0.0
    %931 = vmatpush2.msra.mxu0 0.0
    %932 = vmatprep.subr.mxu0 0.0
    %933 = vmatpush2.msra.mxu0 0.0
    %934 = vmatprep.subr.mxu0 0.0
    %935 = vmatpush2.msra.mxu0 0.0
    %936 = vmatprep.subr.mxu0 0.0
    %937 = vmatpush2.msra.mxu0 0.0
    %938 = vmatprep.subr.mxu0 0.0
    %939 = vmatpush2.msra.mxu0 0.0
    %940 = vmatprep.mubr.f32.mxu0 0.0
    %941 = vmatmul.mubr.f32.gmra.mxu0 %v865
    %v942 = vpop.f32.mrf.mxu0
    %v943 = vadd.f32 %v846, %v942
    %v944 = vpop.f32.mrf.mxu0
    %945 = vmatprep.mubr.f32.mxu0 0.0
    %946 = vmatmul.mubr.f32.gmra.mxu0 %v868
    %v947 = vpop.f32.mrf.mxu0
    %v948 = vadd.f32 %v851, %v947
    %v949 = vpop.f32.mrf.mxu0
    %950 = vmatprep.mubr.f32.mxu0 0.0
    %951 = vmatmul.mubr.f32.gmra.mxu0 %v871
    %v952 = vpop.f32.mrf.mxu0
    %v953 = vadd.f32 %v856, %v952
    %v954 = vpop.f32.mrf.mxu0
    %955 = vmatprep.mubr.f32.mxu0 0.0
    %956 = vmatmul.mubr.f32.gmra.mxu0 %v874
    %v957 = vpop.f32.mrf.mxu0
    %v958 = vadd.f32 %v861, %v957
    %v959 = vpop.f32.mrf.mxu0
    %960 = vdwg.mxu0
    %v962 = vsel %vm766, %v720, 0
    %v965 = vsel %vm766, %v721, 0
    %v968 = vsel %vm766, %v722, 0
    %v971 = vsel %vm766, %v723, 0
    %973 = vmatprep.subr.mxu0 0.0
    %974 = vmatpush1.msra.mxu0 0.0
    %975 = vmatprep.subr.mxu0 0.0
    %976 = vmatpush1.msra.mxu0 0.0
    %977 = vmatprep.subr.mxu0 0.0
    %978 = vmatpush1.msra.mxu0 0.0
    %979 = vmatprep.subr.mxu0 0.0
    %980 = vmatpush1.msra.mxu0 0.0
    %981 = vmatprep.subr.mxu0 0.0
    %982 = vmatpush1.msra.mxu0 0.0
    %983 = vmatprep.subr.mxu0 0.0
    %984 = vmatpush1.msra.mxu0 0.0
    %985 = vmatprep.subr.mxu0 0.0
    %986 = vmatpush1.msra.mxu0 0.0
    %987 = vmatprep.subr.mxu0 0.0
    %988 = vmatpush1.msra.mxu0 0.0
    %989 = vmatprep.subr.mxu0 0.0
    %990 = vmatpush1.msra.mxu0 0.0
    %991 = vmatprep.subr.mxu0 0.0
    %992 = vmatpush1.msra.mxu0 0.0
    %993 = vmatprep.subr.mxu0 0.0
    %994 = vmatpush1.msra.mxu0 0.0
    %995 = vmatprep.subr.mxu0 0.0
    %996 = vmatpush1.msra.mxu0 0.0
    %997 = vmatprep.subr.mxu0 0.0
    %998 = vmatpush1.msra.mxu0 0.0
    %999 = vmatprep.subr.mxu0 0.0
    %1000 = vmatpush1.msra.mxu0 0.0
    %1001 = vmatprep.subr.mxu0 0.0
    %1002 = vmatpush1.msra.mxu0 %v753
    %1003 = vmatprep.subr.mxu0 0.0
    %1004 = vmatpush1.msra.mxu0 %v752
    %1005 = vmatprep.subr.mxu0 0.0
    %1006 = vmatpush2.msra.mxu0 0.0
    %1007 = vmatprep.subr.mxu0 0.0
    %1008 = vmatpush2.msra.mxu0 0.0
    %1009 = vmatprep.subr.mxu0 0.0
    %1010 = vmatpush2.msra.mxu0 0.0
    %1011 = vmatprep.subr.mxu0 0.0
    %1012 = vmatpush2.msra.mxu0 0.0
    %1013 = vmatprep.subr.mxu0 0.0
    %1014 = vmatpush2.msra.mxu0 0.0
    %1015 = vmatprep.subr.mxu0 0.0
    %1016 = vmatpush2.msra.mxu0 0.0
    %1017 = vmatprep.subr.mxu0 0.0
    %1018 = vmatpush2.msra.mxu0 0.0
    %1019 = vmatprep.subr.mxu0 0.0
    %1020 = vmatpush2.msra.mxu0 0.0
    %1021 = vmatprep.subr.mxu0 0.0
    %1022 = vmatpush2.msra.mxu0 0.0
    %1023 = vmatprep.subr.mxu0 0.0
    %1024 = vmatpush2.msra.mxu0 0.0
    %1025 = vmatprep.subr.mxu0 0.0
    %1026 = vmatpush2.msra.mxu0 0.0
    %1027 = vmatprep.subr.mxu0 0.0
    %1028 = vmatpush2.msra.mxu0 0.0
    %1029 = vmatprep.subr.mxu0 0.0
    %1030 = vmatpush2.msra.mxu0 0.0
    %1031 = vmatprep.subr.mxu0 0.0
    %1032 = vmatpush2.msra.mxu0 0.0
    %1033 = vmatprep.subr.mxu0 0.0
    %1034 = vmatpush2.msra.mxu0 0.0
    %1035 = vmatprep.subr.mxu0 0.0
    %1036 = vmatpush2.msra.mxu0 0.0
    %1037 = vmatprep.mubr.f32.mxu0 0.0
    %1038 = vmatmul.mubr.f32.gmra.mxu0 %v962
    %v1039 = vpop.f32.mrf.mxu0
    %v1040 = vadd.f32 0.0, %v1039
    %v1041 = vpop.f32.mrf.mxu0
    %1042 = vmatprep.mubr.f32.mxu0 0.0
    %1043 = vmatmul.mubr.f32.gmra.mxu0 %v965
    %v1044 = vpop.f32.mrf.mxu0
    %v1045 = vadd.f32 0.0, %v1044
    %v1046 = vpop.f32.mrf.mxu0
    %1047 = vmatprep.mubr.f32.mxu0 0.0
    %1048 = vmatmul.mubr.f32.gmra.mxu0 %v968
    %v1049 = vpop.f32.mrf.mxu0
    %v1050 = vadd.f32 0.0, %v1049
    %v1051 = vpop.f32.mrf.mxu0
    %1052 = vmatprep.mubr.f32.mxu0 0.0
    %1053 = vmatmul.mubr.f32.gmra.mxu0 %v971
    %v1054 = vpop.f32.mrf.mxu0
    %v1055 = vadd.f32 0.0, %v1054
    %v1056 = vpop.f32.mrf.mxu0
    %1057 = vdwg.mxu0
    %v1058 = vadd.f32 %v943, %v1040
    %v1059 = vadd.f32 %v948, %v1045
    %v1060 = vadd.f32 %v953, %v1050
    %v1061 = vadd.f32 %v958, %v1055
    %v1063 = vsel %vm766, %v724, 0
    %v1066 = vsel %vm766, %v725, 0
    %v1069 = vsel %vm766, %v726, 0
    %v1072 = vsel %vm766, %v727, 0
    %1074 = vmatprep.subr.mxu0 0.0
    %1075 = vmatpush1.msra.mxu0 0.0
    %1076 = vmatprep.subr.mxu0 0.0
    %1077 = vmatpush1.msra.mxu0 0.0
    %1078 = vmatprep.subr.mxu0 0.0
    %1079 = vmatpush1.msra.mxu0 0.0
    %1080 = vmatprep.subr.mxu0 0.0
    %1081 = vmatpush1.msra.mxu0 0.0
    %1082 = vmatprep.subr.mxu0 0.0
    %1083 = vmatpush1.msra.mxu0 0.0
    %1084 = vmatprep.subr.mxu0 0.0
    %1085 = vmatpush1.msra.mxu0 0.0
    %1086 = vmatprep.subr.mxu0 0.0
    %1087 = vmatpush1.msra.mxu0 0.0
    %1088 = vmatprep.subr.mxu0 0.0
    %1089 = vmatpush1.msra.mxu0 0.0
    %1090 = vmatprep.subr.mxu0 0.0
    %1091 = vmatpush1.msra.mxu0 0.0
    %1092 = vmatprep.subr.mxu0 0.0
    %1093 = vmatpush1.msra.mxu0 0.0
    %1094 = vmatprep.subr.mxu0 0.0
    %1095 = vmatpush1.msra.mxu0 0.0
    %1096 = vmatprep.subr.mxu0 0.0
    %1097 = vmatpush1.msra.mxu0 0.0
    %1098 = vmatprep.subr.mxu0 0.0
    %1099 = vmatpush1.msra.mxu0 0.0
    %1100 = vmatprep.subr.mxu0 0.0
    %1101 = vmatpush1.msra.mxu0 0.0
    %1102 = vmatprep.subr.mxu0 0.0
    %1103 = vmatpush1.msra.mxu0 %v755
    %1104 = vmatprep.subr.mxu0 0.0
    %1105 = vmatpush1.msra.mxu0 %v754
    %1106 = vmatprep.subr.mxu0 0.0
    %1107 = vmatpush2.msra.mxu0 0.0
    %1108 = vmatprep.subr.mxu0 0.0
    %1109 = vmatpush2.msra.mxu0 0.0
    %1110 = vmatprep.subr.mxu0 0.0
    %1111 = vmatpush2.msra.mxu0 0.0
    %1112 = vmatprep.subr.mxu0 0.0
    %1113 = vmatpush2.msra.mxu0 0.0
    %1114 = vmatprep.subr.mxu0 0.0
    %1115 = vmatpush2.msra.mxu0 0.0
    %1116 = vmatprep.subr.mxu0 0.0
    %1117 = vmatpush2.msra.mxu0 0.0
    %1118 = vmatprep.subr.mxu0 0.0
    %1119 = vmatpush2.msra.mxu0 0.0
    %1120 = vmatprep.subr.mxu0 0.0
    %1121 = vmatpush2.msra.mxu0 0.0
    %1122 = vmatprep.subr.mxu0 0.0
    %1123 = vmatpush2.msra.mxu0 0.0
    %1124 = vmatprep.subr.mxu0 0.0
    %1125 = vmatpush2.msra.mxu0 0.0
    %1126 = vmatprep.subr.mxu0 0.0
    %1127 = vmatpush2.msra.mxu0 0.0
    %1128 = vmatprep.subr.mxu0 0.0
    %1129 = vmatpush2.msra.mxu0 0.0
    %1130 = vmatprep.subr.mxu0 0.0
    %1131 = vmatpush2.msra.mxu0 0.0
    %1132 = vmatprep.subr.mxu0 0.0
    %1133 = vmatpush2.msra.mxu0 0.0
    %1134 = vmatprep.subr.mxu0 0.0
    %1135 = vmatpush2.msra.mxu0 0.0
    %1136 = vmatprep.subr.mxu0 0.0
    %1137 = vmatpush2.msra.mxu0 0.0
    %1138 = vmatprep.mubr.f32.mxu0 0.0
    %1139 = vmatmul.mubr.f32.gmra.mxu0 %v1063
    %v1140 = vpop.f32.mrf.mxu0
    %v1141 = vadd.f32 0.0, %v1140
    %v1142 = vpop.f32.mrf.mxu0
    %1143 = vmatprep.mubr.f32.mxu0 0.0
    %1144 = vmatmul.mubr.f32.gmra.mxu0 %v1066
    %v1145 = vpop.f32.mrf.mxu0
    %v1146 = vadd.f32 0.0, %v1145
    %v1147 = vpop.f32.mrf.mxu0
    %1148 = vmatprep.mubr.f32.mxu0 0.0
    %1149 = vmatmul.mubr.f32.gmra.mxu0 %v1069
    %v1150 = vpop.f32.mrf.mxu0
    %v1151 = vadd.f32 0.0, %v1150
    %v1152 = vpop.f32.mrf.mxu0
    %1153 = vmatprep.mubr.f32.mxu0 0.0
    %1154 = vmatmul.mubr.f32.gmra.mxu0 %v1072
    %v1155 = vpop.f32.mrf.mxu0
    %v1156 = vadd.f32 0.0, %v1155
    %v1157 = vpop.f32.mrf.mxu0
    %1158 = vdwg.mxu0
    %v1159 = vadd.f32 %v1058, %v1141
    %v1160 = vadd.f32 %v1059, %v1146
    %v1161 = vadd.f32 %v1060, %v1151
    %v1162 = vadd.f32 %v1061, %v1156
    %v1164 = vsel %vm766, %v728, 0
    %v1167 = vsel %vm766, %v729, 0
    %v1170 = vsel %vm766, %v730, 0
    %v1173 = vsel %vm766, %v731, 0
    %1175 = vmatprep.subr.mxu0 0.0
    %1176 = vmatpush1.msra.mxu0 0.0
    %1177 = vmatprep.subr.mxu0 0.0
    %1178 = vmatpush1.msra.mxu0 0.0
    %1179 = vmatprep.subr.mxu0 0.0
    %1180 = vmatpush1.msra.mxu0 0.0
    %1181 = vmatprep.subr.mxu0 0.0
    %1182 = vmatpush1.msra.mxu0 0.0
    %1183 = vmatprep.subr.mxu0 0.0
    %1184 = vmatpush1.msra.mxu0 0.0
    %1185 = vmatprep.subr.mxu0 0.0
    %1186 = vmatpush1.msra.mxu0 0.0
    %1187 = vmatprep.subr.mxu0 0.0
    %1188 = vmatpush1.msra.mxu0 0.0
    %1189 = vmatprep.subr.mxu0 0.0
    %1190 = vmatpush1.msra.mxu0 0.0
    %1191 = vmatprep.subr.mxu0 0.0
    %1192 = vmatpush1.msra.mxu0 0.0
    %1193 = vmatprep.subr.mxu0 0.0
    %1194 = vmatpush1.msra.mxu0 0.0
    %1195 = vmatprep.subr.mxu0 0.0
    %1196 = vmatpush1.msra.mxu0 0.0
    %1197 = vmatprep.subr.mxu0 0.0
    %1198 = vmatpush1.msra.mxu0 0.0
    %1199 = vmatprep.subr.mxu0 0.0
    %1200 = vmatpush1.msra.mxu0 0.0
    %1201 = vmatprep.subr.mxu0 0.0
    %1202 = vmatpush1.msra.mxu0 0.0
    %1203 = vmatprep.subr.mxu0 0.0
    %1204 = vmatpush1.msra.mxu0 %v757
    %1205 = vmatprep.subr.mxu0 0.0
    %1206 = vmatpush1.msra.mxu0 %v756
    %1207 = vmatprep.subr.mxu0 0.0
    %1208 = vmatpush2.msra.mxu0 0.0
    %1209 = vmatprep.subr.mxu0 0.0
    %1210 = vmatpush2.msra.mxu0 0.0
    %1211 = vmatprep.subr.mxu0 0.0
    %1212 = vmatpush2.msra.mxu0 0.0
    %1213 = vmatprep.subr.mxu0 0.0
    %1214 = vmatpush2.msra.mxu0 0.0
    %1215 = vmatprep.subr.mxu0 0.0
    %1216 = vmatpush2.msra.mxu0 0.0
    %1217 = vmatprep.subr.mxu0 0.0
    %1218 = vmatpush2.msra.mxu0 0.0
    %1219 = vmatprep.subr.mxu0 0.0
    %1220 = vmatpush2.msra.mxu0 0.0
    %1221 = vmatprep.subr.mxu0 0.0
    %1222 = vmatpush2.msra.mxu0 0.0
    %1223 = vmatprep.subr.mxu0 0.0
    %1224 = vmatpush2.msra.mxu0 0.0
    %1225 = vmatprep.subr.mxu0 0.0
    %1226 = vmatpush2.msra.mxu0 0.0
    %1227 = vmatprep.subr.mxu0 0.0
    %1228 = vmatpush2.msra.mxu0 0.0
    %1229 = vmatprep.subr.mxu0 0.0
    %1230 = vmatpush2.msra.mxu0 0.0
    %1231 = vmatprep.subr.mxu0 0.0
    %1232 = vmatpush2.msra.mxu0 0.0
    %1233 = vmatprep.subr.mxu0 0.0
    %1234 = vmatpush2.msra.mxu0 0.0
    %1235 = vmatprep.subr.mxu0 0.0
    %1236 = vmatpush2.msra.mxu0 0.0
    %1237 = vmatprep.subr.mxu0 0.0
    %1238 = vmatpush2.msra.mxu0 0.0
    %1239 = vmatprep.mubr.f32.mxu0 0.0
    %1240 = vmatmul.mubr.f32.gmra.mxu0 %v1164
    %v1241 = vpop.f32.mrf.mxu0
    %v1242 = vadd.f32 0.0, %v1241
    %v1243 = vpop.f32.mrf.mxu0
    %1244 = vmatprep.mubr.f32.mxu0 0.0
    %1245 = vmatmul.mubr.f32.gmra.mxu0 %v1167
    %v1246 = vpop.f32.mrf.mxu0
    %v1247 = vadd.f32 0.0, %v1246
    %v1248 = vpop.f32.mrf.mxu0
    %1249 = vmatprep.mubr.f32.mxu0 0.0
    %1250 = vmatmul.mubr.f32.gmra.mxu0 %v1170
    %v1251 = vpop.f32.mrf.mxu0
    %v1252 = vadd.f32 0.0, %v1251
    %v1253 = vpop.f32.mrf.mxu0
    %1254 = vmatprep.mubr.f32.mxu0 0.0
    %1255 = vmatmul.mubr.f32.gmra.mxu0 %v1173
    %v1256 = vpop.f32.mrf.mxu0
    %v1257 = vadd.f32 0.0, %v1256
    %v1258 = vpop.f32.mrf.mxu0
    %1259 = vdwg.mxu0
    %v1260 = vadd.f32 %v1159, %v1242
    %v1261 = vadd.f32 %v1160, %v1247
    %v1262 = vadd.f32 %v1161, %v1252
    %v1263 = vadd.f32 %v1162, %v1257
    %v1265 = vsel %vm766, %v732, 0
    %v1268 = vsel %vm766, %v733, 0
    %v1271 = vsel %vm766, %v734, 0
    %v1274 = vsel %vm766, %v735, 0
    %1276 = vmatprep.subr.mxu0 0.0
    %1277 = vmatpush1.msra.mxu0 0.0
    %1278 = vmatprep.subr.mxu0 0.0
    %1279 = vmatpush1.msra.mxu0 0.0
    %1280 = vmatprep.subr.mxu0 0.0
    %1281 = vmatpush1.msra.mxu0 0.0
    %1282 = vmatprep.subr.mxu0 0.0
    %1283 = vmatpush1.msra.mxu0 0.0
    %1284 = vmatprep.subr.mxu0 0.0
    %1285 = vmatpush1.msra.mxu0 0.0
    %1286 = vmatprep.subr.mxu0 0.0
    %1287 = vmatpush1.msra.mxu0 0.0
    %1288 = vmatprep.subr.mxu0 0.0
    %1289 = vmatpush1.msra.mxu0 0.0
    %1290 = vmatprep.subr.mxu0 0.0
    %1291 = vmatpush1.msra.mxu0 0.0
    %1292 = vmatprep.subr.mxu0 0.0
    %1293 = vmatpush1.msra.mxu0 0.0
    %1294 = vmatprep.subr.mxu0 0.0
    %1295 = vmatpush1.msra.mxu0 0.0
    %1296 = vmatprep.subr.mxu0 0.0
    %1297 = vmatpush1.msra.mxu0 0.0
    %1298 = vmatprep.subr.mxu0 0.0
    %1299 = vmatpush1.msra.mxu0 0.0
    %1300 = vmatprep.subr.mxu0 0.0
    %1301 = vmatpush1.msra.mxu0 0.0
    %1302 = vmatprep.subr.mxu0 0.0
    %1303 = vmatpush1.msra.mxu0 0.0
    %1304 = vmatprep.subr.mxu0 0.0
    %1305 = vmatpush1.msra.mxu0 %v759
    %1306 = vmatprep.subr.mxu0 0.0
    %1307 = vmatpush1.msra.mxu0 %v758
    %1308 = vmatprep.subr.mxu0 0.0
    %1309 = vmatpush2.msra.mxu0 0.0
    %1310 = vmatprep.subr.mxu0 0.0
    %1311 = vmatpush2.msra.mxu0 0.0
    %1312 = vmatprep.subr.mxu0 0.0
    %1313 = vmatpush2.msra.mxu0 0.0
    %1314 = vmatprep.subr.mxu0 0.0
    %1315 = vmatpush2.msra.mxu0 0.0
    %1316 = vmatprep.subr.mxu0 0.0
    %1317 = vmatpush2.msra.mxu0 0.0
    %1318 = vmatprep.subr.mxu0 0.0
    %1319 = vmatpush2.msra.mxu0 0.0
    %1320 = vmatprep.subr.mxu0 0.0
    %1321 = vmatpush2.msra.mxu0 0.0
    %1322 = vmatprep.subr.mxu0 0.0
    %1323 = vmatpush2.msra.mxu0 0.0
    %1324 = vmatprep.subr.mxu0 0.0
    %1325 = vmatpush2.msra.mxu0 0.0
    %1326 = vmatprep.subr.mxu0 0.0
    %1327 = vmatpush2.msra.mxu0 0.0
    %1328 = vmatprep.subr.mxu0 0.0
    %1329 = vmatpush2.msra.mxu0 0.0
    %1330 = vmatprep.subr.mxu0 0.0
    %1331 = vmatpush2.msra.mxu0 0.0
    %1332 = vmatprep.subr.mxu0 0.0
    %1333 = vmatpush2.msra.mxu0 0.0
    %1334 = vmatprep.subr.mxu0 0.0
    %1335 = vmatpush2.msra.mxu0 0.0
    %1336 = vmatprep.subr.mxu0 0.0
    %1337 = vmatpush2.msra.mxu0 0.0
    %1338 = vmatprep.subr.mxu0 0.0
    %1339 = vmatpush2.msra.mxu0 0.0
    %1340 = vmatprep.mubr.f32.mxu0 0.0
    %1341 = vmatmul.mubr.f32.gmra.mxu0 %v1265
    %v1342 = vpop.f32.mrf.mxu0
    %v1343 = vadd.f32 0.0, %v1342
    %v1344 = vpop.f32.mrf.mxu0
    %1345 = vmatprep.mubr.f32.mxu0 0.0
    %1346 = vmatmul.mubr.f32.gmra.mxu0 %v1268
    %v1347 = vpop.f32.mrf.mxu0
    %v1348 = vadd.f32 0.0, %v1347
    %v1349 = vpop.f32.mrf.mxu0
    %1350 = vmatprep.mubr.f32.mxu0 0.0
    %1351 = vmatmul.mubr.f32.gmra.mxu0 %v1271
    %v1352 = vpop.f32.mrf.mxu0
    %v1353 = vadd.f32 0.0, %v1352
    %v1354 = vpop.f32.mrf.mxu0
    %1355 = vmatprep.mubr.f32.mxu0 0.0
    %1356 = vmatmul.mubr.f32.gmra.mxu0 %v1274
    %v1357 = vpop.f32.mrf.mxu0
    %v1358 = vadd.f32 0.0, %v1357
    %v1359 = vpop.f32.mrf.mxu0
    %1360 = vdwg.mxu0
    %v1361 = vadd.f32 %v1260, %v1343
    %v1362 = vadd.f32 %v1261, %v1348
    %v1363 = vadd.f32 %v1262, %v1353
    %v1364 = vadd.f32 %v1263, %v1358
    %v1366 = vsel %vm766, %v736, 0
    %v1369 = vsel %vm766, %v737, 0
    %v1372 = vsel %vm766, %v738, 0
    %v1375 = vsel %vm766, %v739, 0
    %1377 = vmatprep.subr.mxu0 0.0
    %1378 = vmatpush1.msra.mxu0 0.0
    %1379 = vmatprep.subr.mxu0 0.0
    %1380 = vmatpush1.msra.mxu0 0.0
    %1381 = vmatprep.subr.mxu0 0.0
    %1382 = vmatpush1.msra.mxu0 0.0
    %1383 = vmatprep.subr.mxu0 0.0
    %1384 = vmatpush1.msra.mxu0 0.0
    %1385 = vmatprep.subr.mxu0 0.0
    %1386 = vmatpush1.msra.mxu0 0.0
    %1387 = vmatprep.subr.mxu0 0.0
    %1388 = vmatpush1.msra.mxu0 0.0
    %1389 = vmatprep.subr.mxu0 0.0
    %1390 = vmatpush1.msra.mxu0 0.0
    %1391 = vmatprep.subr.mxu0 0.0
    %1392 = vmatpush1.msra.mxu0 0.0
    %1393 = vmatprep.subr.mxu0 0.0
    %1394 = vmatpush1.msra.mxu0 0.0
    %1395 = vmatprep.subr.mxu0 0.0
    %1396 = vmatpush1.msra.mxu0 0.0
    %1397 = vmatprep.subr.mxu0 0.0
    %1398 = vmatpush1.msra.mxu0 0.0
    %1399 = vmatprep.subr.mxu0 0.0
    %1400 = vmatpush1.msra.mxu0 0.0
    %1401 = vmatprep.subr.mxu0 0.0
    %1402 = vmatpush1.msra.mxu0 0.0
    %1403 = vmatprep.subr.mxu0 0.0
    %1404 = vmatpush1.msra.mxu0 0.0
    %1405 = vmatprep.subr.mxu0 0.0
    %1406 = vmatpush1.msra.mxu0 %v761
    %1407 = vmatprep.subr.mxu0 0.0
    %1408 = vmatpush1.msra.mxu0 %v760
    %1409 = vmatprep.subr.mxu0 0.0
    %1410 = vmatpush2.msra.mxu0 0.0
    %1411 = vmatprep.subr.mxu0 0.0
    %1412 = vmatpush2.msra.mxu0 0.0
    %1413 = vmatprep.subr.mxu0 0.0
    %1414 = vmatpush2.msra.mxu0 0.0
    %1415 = vmatprep.subr.mxu0 0.0
    %1416 = vmatpush2.msra.mxu0 0.0
    %1417 = vmatprep.subr.mxu0 0.0
    %1418 = vmatpush2.msra.mxu0 0.0
    %1419 = vmatprep.subr.mxu0 0.0
    %1420 = vmatpush2.msra.mxu0 0.0
    %1421 = vmatprep.subr.mxu0 0.0
    %1422 = vmatpush2.msra.mxu0 0.0
    %1423 = vmatprep.subr.mxu0 0.0
    %1424 = vmatpush2.msra.mxu0 0.0
    %1425 = vmatprep.subr.mxu0 0.0
    %1426 = vmatpush2.msra.mxu0 0.0
    %1427 = vmatprep.subr.mxu0 0.0
    %1428 = vmatpush2.msra.mxu0 0.0
    %1429 = vmatprep.subr.mxu0 0.0
    %1430 = vmatpush2.msra.mxu0 0.0
    %1431 = vmatprep.subr.mxu0 0.0
    %1432 = vmatpush2.msra.mxu0 0.0
    %1433 = vmatprep.subr.mxu0 0.0
    %1434 = vmatpush2.msra.mxu0 0.0
    %1435 = vmatprep.subr.mxu0 0.0
    %1436 = vmatpush2.msra.mxu0 0.0
    %1437 = vmatprep.subr.mxu0 0.0
    %1438 = vmatpush2.msra.mxu0 0.0
    %1439 = vmatprep.subr.mxu0 0.0
    %1440 = vmatpush2.msra.mxu0 0.0
    %1441 = vmatprep.mubr.f32.mxu0 0.0
    %1442 = vmatmul.mubr.f32.gmra.mxu0 %v1366
    %v1443 = vpop.f32.mrf.mxu0
    %v1444 = vadd.f32 0.0, %v1443
    %v1445 = vpop.f32.mrf.mxu0
    %1446 = vmatprep.mubr.f32.mxu0 0.0
    %1447 = vmatmul.mubr.f32.gmra.mxu0 %v1369
    %v1448 = vpop.f32.mrf.mxu0
    %v1449 = vadd.f32 0.0, %v1448
    %v1450 = vpop.f32.mrf.mxu0
    %1451 = vmatprep.mubr.f32.mxu0 0.0
    %1452 = vmatmul.mubr.f32.gmra.mxu0 %v1372
    %v1453 = vpop.f32.mrf.mxu0
    %v1454 = vadd.f32 0.0, %v1453
    %v1455 = vpop.f32.mrf.mxu0
    %1456 = vmatprep.mubr.f32.mxu0 0.0
    %1457 = vmatmul.mubr.f32.gmra.mxu0 %v1375
    %v1458 = vpop.f32.mrf.mxu0
    %v1459 = vadd.f32 0.0, %v1458
    %v1460 = vpop.f32.mrf.mxu0
    %1461 = vdwg.mxu0
    %v1462 = vadd.f32 %v1361, %v1444
    %v1463 = vadd.f32 %v1362, %v1449
    %v1464 = vadd.f32 %v1363, %v1454
    %v1465 = vadd.f32 %v1364, %v1459
    %v1467 = vsel %vm766, %v740, 0
    %v1470 = vsel %vm766, %v741, 0
    %v1473 = vsel %vm766, %v742, 0
    %v1476 = vsel %vm766, %v743, 0
    %1478 = vmatprep.subr.mxu0 0.0
    %1479 = vmatpush1.msra.mxu0 0.0
    %1480 = vmatprep.subr.mxu0 0.0
    %1481 = vmatpush1.msra.mxu0 0.0
    %1482 = vmatprep.subr.mxu0 0.0
    %1483 = vmatpush1.msra.mxu0 0.0
    %1484 = vmatprep.subr.mxu0 0.0
    %1485 = vmatpush1.msra.mxu0 0.0
    %1486 = vmatprep.subr.mxu0 0.0
    %1487 = vmatpush1.msra.mxu0 0.0
    %1488 = vmatprep.subr.mxu0 0.0
    %1489 = vmatpush1.msra.mxu0 0.0
    %1490 = vmatprep.subr.mxu0 0.0
    %1491 = vmatpush1.msra.mxu0 0.0
    %1492 = vmatprep.subr.mxu0 0.0
    %1493 = vmatpush1.msra.mxu0 0.0
    %1494 = vmatprep.subr.mxu0 0.0
    %1495 = vmatpush1.msra.mxu0 0.0
    %1496 = vmatprep.subr.mxu0 0.0
    %1497 = vmatpush1.msra.mxu0 0.0
    %1498 = vmatprep.subr.mxu0 0.0
    %1499 = vmatpush1.msra.mxu0 0.0
    %1500 = vmatprep.subr.mxu0 0.0
    %1501 = vmatpush1.msra.mxu0 0.0
    %1502 = vmatprep.subr.mxu0 0.0
    %1503 = vmatpush1.msra.mxu0 0.0
    %1504 = vmatprep.subr.mxu0 0.0
    %1505 = vmatpush1.msra.mxu0 0.0
    %1506 = vmatprep.subr.mxu0 0.0
    %1507 = vmatpush1.msra.mxu0 %v763
    %1508 = vmatprep.subr.mxu0 0.0
    %1509 = vmatpush1.msra.mxu0 %v762
    %1510 = vmatprep.subr.mxu0 0.0
    %1511 = vmatpush2.msra.mxu0 0.0
    %1512 = vmatprep.subr.mxu0 0.0
    %1513 = vmatpush2.msra.mxu0 0.0
    %1514 = vmatprep.subr.mxu0 0.0
    %1515 = vmatpush2.msra.mxu0 0.0
    %1516 = vmatprep.subr.mxu0 0.0
    %1517 = vmatpush2.msra.mxu0 0.0
    %1518 = vmatprep.subr.mxu0 0.0
    %1519 = vmatpush2.msra.mxu0 0.0
    %1520 = vmatprep.subr.mxu0 0.0
    %1521 = vmatpush2.msra.mxu0 0.0
    %1522 = vmatprep.subr.mxu0 0.0
    %1523 = vmatpush2.msra.mxu0 0.0
    %1524 = vmatprep.subr.mxu0 0.0
    %1525 = vmatpush2.msra.mxu0 0.0
    %1526 = vmatprep.subr.mxu0 0.0
    %1527 = vmatpush2.msra.mxu0 0.0
    %1528 = vmatprep.subr.mxu0 0.0
    %1529 = vmatpush2.msra.mxu0 0.0
    %1530 = vmatprep.subr.mxu0 0.0
    %1531 = vmatpush2.msra.mxu0 0.0
    %1532 = vmatprep.subr.mxu0 0.0
    %1533 = vmatpush2.msra.mxu0 0.0
    %1534 = vmatprep.subr.mxu0 0.0
    %1535 = vmatpush2.msra.mxu0 0.0
    %1536 = vmatprep.subr.mxu0 0.0
    %1537 = vmatpush2.msra.mxu0 0.0
    %1538 = vmatprep.subr.mxu0 0.0
    %1539 = vmatpush2.msra.mxu0 0.0
    %1540 = vmatprep.subr.mxu0 0.0
    %1541 = vmatpush2.msra.mxu0 0.0
    %1542 = vmatprep.mubr.f32.mxu0 0.0
    %1543 = vmatmul.mubr.f32.gmra.mxu0 %v1467
    %v1544 = vpop.f32.mrf.mxu0
    %v1545 = vadd.f32 0.0, %v1544
    %v1546 = vpop.f32.mrf.mxu0
    %1547 = vmatprep.mubr.f32.mxu0 0.0
    %1548 = vmatmul.mubr.f32.gmra.mxu0 %v1470
    %v1549 = vpop.f32.mrf.mxu0
    %v1550 = vadd.f32 0.0, %v1549
    %v1551 = vpop.f32.mrf.mxu0
    %1552 = vmatprep.mubr.f32.mxu0 0.0
    %1553 = vmatmul.mubr.f32.gmra.mxu0 %v1473
    %v1554 = vpop.f32.mrf.mxu0
    %v1555 = vadd.f32 0.0, %v1554
    %v1556 = vpop.f32.mrf.mxu0
    %1557 = vmatprep.mubr.f32.mxu0 0.0
    %1558 = vmatmul.mubr.f32.gmra.mxu0 %v1476
    %v1559 = vpop.f32.mrf.mxu0
    %v1560 = vadd.f32 0.0, %v1559
    %v1561 = vpop.f32.mrf.mxu0
    %1562 = vdwg.mxu0
    %v1563 = vadd.f32 %v1462, %v1545
    %v1564 = vadd.f32 %v1463, %v1550
    %v1565 = vadd.f32 %v1464, %v1555
    %v1566 = vadd.f32 %v1465, %v1560
    %v1568 = vsel %vm766, %v744, 0
    %v1571 = vsel %vm766, %v745, 0
    %v1574 = vsel %vm766, %v746, 0
    %v1577 = vsel %vm766, %v747, 0
    %1579 = vmatprep.subr.mxu0 0.0
    %1580 = vmatpush1.msra.mxu0 0.0
    %1581 = vmatprep.subr.mxu0 0.0
    %1582 = vmatpush1.msra.mxu0 0.0
    %1583 = vmatprep.subr.mxu0 0.0
    %1584 = vmatpush1.msra.mxu0 0.0
    %1585 = vmatprep.subr.mxu0 0.0
    %1586 = vmatpush1.msra.mxu0 0.0
    %1587 = vmatprep.subr.mxu0 0.0
    %1588 = vmatpush1.msra.mxu0 0.0
    %1589 = vmatprep.subr.mxu0 0.0
    %1590 = vmatpush1.msra.mxu0 0.0
    %1591 = vmatprep.subr.mxu0 0.0
    %1592 = vmatpush1.msra.mxu0 0.0
    %1593 = vmatprep.subr.mxu0 0.0
    %1594 = vmatpush1.msra.mxu0 0.0
    %1595 = vmatprep.subr.mxu0 0.0
    %1596 = vmatpush1.msra.mxu0 0.0
    %1597 = vmatprep.subr.mxu0 0.0
    %1598 = vmatpush1.msra.mxu0 0.0
    %1599 = vmatprep.subr.mxu0 0.0
    %1600 = vmatpush1.msra.mxu0 0.0
    %1601 = vmatprep.subr.mxu0 0.0
    %1602 = vmatpush1.msra.mxu0 0.0
    %1603 = vmatprep.subr.mxu0 0.0
    %1604 = vmatpush1.msra.mxu0 0.0
    %1605 = vmatprep.subr.mxu0 0.0
    %1606 = vmatpush1.msra.mxu0 0.0
    %1607 = vmatprep.subr.mxu0 0.0
    %1608 = vmatpush1.msra.mxu0 %v765
    %1609 = vmatprep.subr.mxu0 0.0
    %1610 = vmatpush1.msra.mxu0 %v764
    %1611 = vmatprep.subr.mxu0 0.0
    %1612 = vmatpush2.msra.mxu0 0.0
    %1613 = vmatprep.subr.mxu0 0.0
    %1614 = vmatpush2.msra.mxu0 0.0
    %1615 = vmatprep.subr.mxu0 0.0
    %1616 = vmatpush2.msra.mxu0 0.0
    %1617 = vmatprep.subr.mxu0 0.0
    %1618 = vmatpush2.msra.mxu0 0.0
    %1619 = vmatprep.subr.mxu0 0.0
    %1620 = vmatpush2.msra.mxu0 0.0
    %1621 = vmatprep.subr.mxu0 0.0
    %1622 = vmatpush2.msra.mxu0 0.0
    %1623 = vmatprep.subr.mxu0 0.0
    %1624 = vmatpush2.msra.mxu0 0.0
    %1625 = vmatprep.subr.mxu0 0.0
    %1626 = vmatpush2.msra.mxu0 0.0
    %1627 = vmatprep.subr.mxu0 0.0
    %1628 = vmatpush2.msra.mxu0 0.0
    %1629 = vmatprep.subr.mxu0 0.0
    %1630 = vmatpush2.msra.mxu0 0.0
    %1631 = vmatprep.subr.mxu0 0.0
    %1632 = vmatpush2.msra.mxu0 0.0
    %1633 = vmatprep.subr.mxu0 0.0
    %1634 = vmatpush2.msra.mxu0 0.0
    %1635 = vmatprep.subr.mxu0 0.0
    %1636 = vmatpush2.msra.mxu0 0.0
    %1637 = vmatprep.subr.mxu0 0.0
    %1638 = vmatpush2.msra.mxu0 0.0
    %1639 = vmatprep.subr.mxu0 0.0
    %1640 = vmatpush2.msra.mxu0 0.0
    %1641 = vmatprep.subr.mxu0 0.0
    %1642 = vmatpush2.msra.mxu0 0.0
    %1643 = vmatprep.mubr.f32.mxu0 0.0
    %1644 = vmatmul.mubr.f32.gmra.mxu0 %v1568
    %v1645 = vpop.f32.mrf.mxu0
    %v1646 = vadd.f32 0.0, %v1645
    %v1647 = vpop.f32.mrf.mxu0
    %1648 = vmatprep.mubr.f32.mxu0 0.0
    %1649 = vmatmul.mubr.f32.gmra.mxu0 %v1571
    %v1650 = vpop.f32.mrf.mxu0
    %v1651 = vadd.f32 0.0, %v1650
    %v1652 = vpop.f32.mrf.mxu0
    %1653 = vmatprep.mubr.f32.mxu0 0.0
    %1654 = vmatmul.mubr.f32.gmra.mxu0 %v1574
    %v1655 = vpop.f32.mrf.mxu0
    %v1656 = vadd.f32 0.0, %v1655
    %v1657 = vpop.f32.mrf.mxu0
    %1658 = vmatprep.mubr.f32.mxu0 0.0
    %1659 = vmatmul.mubr.f32.gmra.mxu0 %v1577
    %v1660 = vpop.f32.mrf.mxu0
    %v1661 = vadd.f32 0.0, %v1660
    %v1662 = vpop.f32.mrf.mxu0
    %1663 = vdwg.mxu0
    %v1664 = vadd.f32 %v1563, %v1646
    %v1665 = vadd.f32 %v1564, %v1651
    %v1666 = vadd.f32 %v1565, %v1656
    %v1667 = vadd.f32 %v1566, %v1661
    %v1668 = vld [vmem:[%s8] sm:$0x1]
    %v1670 = vlaneseq
    %v1671 = vshrl.u32 %v1670, 7
    %v1672 = vsub.s32 0, %v1671
    %v1673 = vrot.slane %v1668, %v1672
    %v1675 = vadd.f32 %v1664, %v1673
    %v1676 = vadd.f32 %v1665, %v1673
    %v1677 = vadd.f32 %v1666, %v1673
    %v1678 = vadd.f32 %v1667, %v1673
    %v1679 = vmax.f32 %v1675, 0.0
    %v1680 = vmax.f32 %v1676, 0.0
    %v1681 = vmax.f32 %v1677, 0.0
    %v1682 = vmax.f32 %v1678, 0.0
    %v1683 = vld [vmem:[%s9] sm:$0xff]
    %v1684 = vld [vmem:[%s9 + $0x8] sm:$0xff]
    %v1685 = vld [vmem:[%s9 + $0x10] sm:$0xff]
    %v1686 = vld [vmem:[%s9 + $0x18] sm:$0xff]
    %v1687 = vld [vmem:[%s9 + $0x20] sm:$0xff]
    %v1688 = vld [vmem:[%s9 + $0x28] sm:$0xff]
    %v1689 = vld [vmem:[%s9 + $0x30] sm:$0xff]
    %v1690 = vld [vmem:[%s9 + $0x38] sm:$0xff]
    %v1691 = vld [vmem:[%s9 + $0x40] sm:$0xff]
    %v1692 = vld [vmem:[%s9 + $0x48] sm:$0xff]
    %v1693 = vld [vmem:[%s9 + $0x50] sm:$0xff]
    %v1694 = vld [vmem:[%s9 + $0x58] sm:$0xff]
    %v1695 = vld [vmem:[%s9 + $0x60] sm:$0xff]
    %v1696 = vld [vmem:[%s9 + $0x68] sm:$0xff]
    %v1697 = vld [vmem:[%s9 + $0x70] sm:$0xff]
    %v1698 = vld [vmem:[%s9 + $0x78] sm:$0xff]
    %v1699 = vld [vmem:[%s9 + $0x80] sm:$0xff]
    %v1700 = vld [vmem:[%s9 + $0x88] sm:$0xff]
    %v1701 = vld [vmem:[%s9 + $0x90] sm:$0xff]
    %v1702 = vld [vmem:[%s9 + $0x98] sm:$0xff]
    %v1703 = vld [vmem:[%s9 + $0xa0] sm:$0xff]
    %v1704 = vld [vmem:[%s9 + $0xa8] sm:$0xff]
    %v1705 = vld [vmem:[%s9 + $0xb0] sm:$0xff]
    %v1706 = vld [vmem:[%s9 + $0xb8] sm:$0xff]
    %v1707 = vld [vmem:[%s9 + $0xc0] sm:$0xff]
    %v1708 = vld [vmem:[%s9 + $0xc8] sm:$0xff]
    %v1709 = vld [vmem:[%s9 + $0xd0] sm:$0xff]
    %v1710 = vld [vmem:[%s9 + $0xd8] sm:$0xff]
    %v1711 = vld [vmem:[%s9 + $0xe0] sm:$0xff]
    %v1712 = vld [vmem:[%s9 + $0xe8] sm:$0xff]
    %v1713 = vld [vmem:[%s9 + $0xf0] sm:$0xff]
    %v1714 = vld [vmem:[%s9 + $0xf8] sm:$0xff]
    %v1715 = vld [vmem:[%s9 + $0x100] sm:$0xff]
    %v1716 = vld [vmem:[%s9 + $0x108] sm:$0xff]
    %v1717 = vld [vmem:[%s9 + $0x110] sm:$0xff]
    %v1718 = vld [vmem:[%s9 + $0x118] sm:$0xff]
    %v1719 = vld [vmem:[%s9 + $0x120] sm:$0xff]
    %v1720 = vld [vmem:[%s9 + $0x128] sm:$0xff]
    %v1721 = vld [vmem:[%s9 + $0x130] sm:$0xff]
    %v1722 = vld [vmem:[%s9 + $0x138] sm:$0xff]
    %v1723 = vld [vmem:[%s9 + $0x140] sm:$0xff]
    %v1724 = vld [vmem:[%s9 + $0x148] sm:$0xff]
    %v1725 = vld [vmem:[%s9 + $0x150] sm:$0xff]
    %v1726 = vld [vmem:[%s9 + $0x158] sm:$0xff]
    %v1727 = vld [vmem:[%s9 + $0x160] sm:$0xff]
    %v1728 = vld [vmem:[%s9 + $0x168] sm:$0xff]
    %v1729 = vld [vmem:[%s9 + $0x170] sm:$0xff]
    %v1730 = vld [vmem:[%s9 + $0x178] sm:$0xff]
    %v1731 = vld [vmem:[%s9 + $0x180] sm:$0xff]
    %v1732 = vld [vmem:[%s9 + $0x188] sm:$0xff]
    %v1733 = vld [vmem:[%s9 + $0x190] sm:$0xff]
    %v1734 = vld [vmem:[%s9 + $0x198] sm:$0xff]
    %v1735 = vld [vmem:[%s9 + $0x1a0] sm:$0xff]
    %v1736 = vld [vmem:[%s9 + $0x1a8] sm:$0xff]
    %v1737 = vld [vmem:[%s9 + $0x1b0] sm:$0xff]
    %v1738 = vld [vmem:[%s9 + $0x1b8] sm:$0xff]
    %v1739 = vld [vmem:[%s9 + $0x1c0] sm:$0xff]
    %v1740 = vld [vmem:[%s9 + $0x1c8] sm:$0xff]
    %v1741 = vld [vmem:[%s9 + $0x1d0] sm:$0xff]
    %v1742 = vld [vmem:[%s9 + $0x1d8] sm:$0xff]
    %v1743 = vld [vmem:[%s9 + $0x1e0] sm:$0xff]
    %v1744 = vld [vmem:[%s9 + $0x1e8] sm:$0xff]
    %v1745 = vld [vmem:[%s9 + $0x1f0] sm:$0xff]
    %v1746 = vld [vmem:[%s9 + $0x1f8] sm:$0xff]
    %v1748 = vrot.slane %v1679, 2
    %vm1749 = vcmask 261120
    %v1750 = vsel %vm1749, %v1748, 0
    %1752 = vmatprep.subr.mxu0 0.0
    %1753 = vmatpush1.msra.mxu0 0.0
    %1754 = vmatprep.subr.mxu0 0.0
    %1755 = vmatpush1.msra.mxu0 0.0
    %1756 = vmatprep.subr.mxu0 0.0
    %1757 = vmatpush1.msra.mxu0 0.0
    %1758 = vmatprep.subr.mxu0 0.0
    %1759 = vmatpush1.msra.mxu0 0.0
    %1760 = vmatprep.subr.mxu0 0.0
    %1761 = vmatpush1.msra.mxu0 0.0
    %1762 = vmatprep.subr.mxu0 0.0
    %1763 = vmatpush1.msra.mxu0 0.0
    %1764 = vmatprep.subr.mxu0 0.0
    %1765 = vmatpush1.msra.mxu0 0.0
    %1766 = vmatprep.subr.mxu0 0.0
    %1767 = vmatpush1.msra.mxu0 0.0
    %1768 = vmatprep.subr.mxu0 0.0
    %1769 = vmatpush1.msra.mxu0 0.0
    %1770 = vmatprep.subr.mxu0 0.0
    %1771 = vmatpush1.msra.mxu0 0.0
    %1772 = vmatprep.subr.mxu0 0.0
    %1773 = vmatpush1.msra.mxu0 0.0
    %1774 = vmatprep.subr.mxu0 0.0
    %1775 = vmatpush1.msra.mxu0 0.0
    %1776 = vmatprep.subr.mxu0 0.0
    %1777 = vmatpush1.msra.mxu0 %v1690
    %1778 = vmatprep.subr.mxu0 0.0
    %1779 = vmatpush1.msra.mxu0 %v1689
    %1780 = vmatprep.subr.mxu0 0.0
    %1781 = vmatpush1.msra.mxu0 %v1688
    %1782 = vmatprep.subr.mxu0 0.0
    %1783 = vmatpush1.msra.mxu0 %v1687
    %1784 = vmatprep.subr.mxu0 0.0
    %1785 = vmatpush2.msra.mxu0 0.0
    %1786 = vmatprep.subr.mxu0 0.0
    %1787 = vmatpush2.msra.mxu0 0.0
    %1788 = vmatprep.subr.mxu0 0.0
    %1789 = vmatpush2.msra.mxu0 0.0
    %1790 = vmatprep.subr.mxu0 0.0
    %1791 = vmatpush2.msra.mxu0 0.0
    %1792 = vmatprep.subr.mxu0 0.0
    %1793 = vmatpush2.msra.mxu0 0.0
    %1794 = vmatprep.subr.mxu0 0.0
    %1795 = vmatpush2.msra.mxu0 0.0
    %1796 = vmatprep.subr.mxu0 0.0
    %1797 = vmatpush2.msra.mxu0 0.0
    %1798 = vmatprep.subr.mxu0 0.0
    %1799 = vmatpush2.msra.mxu0 0.0
    %1800 = vmatprep.subr.mxu0 0.0
    %1801 = vmatpush2.msra.mxu0 0.0
    %1802 = vmatprep.subr.mxu0 0.0
    %1803 = vmatpush2.msra.mxu0 0.0
    %1804 = vmatprep.subr.mxu0 0.0
    %1805 = vmatpush2.msra.mxu0 0.0
    %1806 = vmatprep.subr.mxu0 0.0
    %1807 = vmatpush2.msra.mxu0 0.0
    %1808 = vmatprep.subr.mxu0 0.0
    %1809 = vmatpush2.msra.mxu0 0.0
    %1810 = vmatprep.subr.mxu0 0.0
    %1811 = vmatpush2.msra.mxu0 0.0
    %1812 = vmatprep.subr.mxu0 0.0
    %1813 = vmatpush2.msra.mxu0 0.0
    %1814 = vmatprep.subr.mxu0 0.0
    %1815 = vmatpush2.msra.mxu0 0.0
    %1816 = vmatprep.mubr.f32.mxu0 0.0
    %1817 = vmatmul.mubr.f32.gmra.mxu0 %v1750
    %v1818 = vpop.f32.mrf.mxu0
    %v1819 = vadd.f32 0.0, %v1818
    %v1820 = vpop.f32.mrf.mxu0
    %1821 = vdwg.mxu0
    %v1822 = vsel %vm1749, %v1679, 0
    %1824 = vmatprep.subr.mxu0 0.0
    %1825 = vmatpush1.msra.mxu0 0.0
    %1826 = vmatprep.subr.mxu0 0.0
    %1827 = vmatpush1.msra.mxu0 0.0
    %1828 = vmatprep.subr.mxu0 0.0
    %1829 = vmatpush1.msra.mxu0 0.0
    %1830 = vmatprep.subr.mxu0 0.0
    %1831 = vmatpush1.msra.mxu0 0.0
    %1832 = vmatprep.subr.mxu0 0.0
    %1833 = vmatpush1.msra.mxu0 0.0
    %1834 = vmatprep.subr.mxu0 0.0
    %1835 = vmatpush1.msra.mxu0 0.0
    %1836 = vmatprep.subr.mxu0 0.0
    %1837 = vmatpush1.msra.mxu0 0.0
    %1838 = vmatprep.subr.mxu0 0.0
    %1839 = vmatpush1.msra.mxu0 0.0
    %1840 = vmatprep.subr.mxu0 0.0
    %1841 = vmatpush1.msra.mxu0 0.0
    %1842 = vmatprep.subr.mxu0 0.0
    %1843 = vmatpush1.msra.mxu0 0.0
    %1844 = vmatprep.subr.mxu0 0.0
    %1845 = vmatpush1.msra.mxu0 0.0
    %1846 = vmatprep.subr.mxu0 0.0
    %1847 = vmatpush1.msra.mxu0 0.0
    %1848 = vmatprep.subr.mxu0 0.0
    %1849 = vmatpush1.msra.mxu0 %v1686
    %1850 = vmatprep.subr.mxu0 0.0
    %1851 = vmatpush1.msra.mxu0 %v1685
    %1852 = vmatprep.subr.mxu0 0.0
    %1853 = vmatpush1.msra.mxu0 %v1684
    %1854 = vmatprep.subr.mxu0 0.0
    %1855 = vmatpush1.msra.mxu0 %v1683
    %1856 = vmatprep.subr.mxu0 0.0
    %1857 = vmatpush2.msra.mxu0 0.0
    %1858 = vmatprep.subr.mxu0 0.0
    %1859 = vmatpush2.msra.mxu0 0.0
    %1860 = vmatprep.subr.mxu0 0.0
    %1861 = vmatpush2.msra.mxu0 0.0
    %1862 = vmatprep.subr.mxu0 0.0
    %1863 = vmatpush2.msra.mxu0 0.0
    %1864 = vmatprep.subr.mxu0 0.0
    %1865 = vmatpush2.msra.mxu0 0.0
    %1866 = vmatprep.subr.mxu0 0.0
    %1867 = vmatpush2.msra.mxu0 0.0
    %1868 = vmatprep.subr.mxu0 0.0
    %1869 = vmatpush2.msra.mxu0 0.0
    %1870 = vmatprep.subr.mxu0 0.0
    %1871 = vmatpush2.msra.mxu0 0.0
    %1872 = vmatprep.subr.mxu0 0.0
    %1873 = vmatpush2.msra.mxu0 0.0
    %1874 = vmatprep.subr.mxu0 0.0
    %1875 = vmatpush2.msra.mxu0 0.0
    %1876 = vmatprep.subr.mxu0 0.0
    %1877 = vmatpush2.msra.mxu0 0.0
    %1878 = vmatprep.subr.mxu0 0.0
    %1879 = vmatpush2.msra.mxu0 0.0
    %1880 = vmatprep.subr.mxu0 0.0
    %1881 = vmatpush2.msra.mxu0 0.0
    %1882 = vmatprep.subr.mxu0 0.0
    %1883 = vmatpush2.msra.mxu0 0.0
    %1884 = vmatprep.subr.mxu0 0.0
    %1885 = vmatpush2.msra.mxu0 0.0
    %1886 = vmatprep.subr.mxu0 0.0
    %1887 = vmatpush2.msra.mxu0 0.0
    %1888 = vmatprep.mubr.f32.mxu0 0.0
    %1889 = vmatmul.mubr.f32.gmra.mxu0 %v1822
    %v1890 = vpop.f32.mrf.mxu0
    %v1891 = vadd.f32 %v1819, %v1890
    %v1892 = vpop.f32.mrf.mxu0
    %1893 = vdwg.mxu0
    %v1894 = vrot.slane %v1679, 4
    %v1895 = vsel %vm1749, %v1894, 0
    %1897 = vmatprep.subr.mxu0 0.0
    %1898 = vmatpush1.msra.mxu0 0.0
    %1899 = vmatprep.subr.mxu0 0.0
    %1900 = vmatpush1.msra.mxu0 0.0
    %1901 = vmatprep.subr.mxu0 0.0
    %1902 = vmatpush1.msra.mxu0 0.0
    %1903 = vmatprep.subr.mxu0 0.0
    %1904 = vmatpush1.msra.mxu0 0.0
    %1905 = vmatprep.subr.mxu0 0.0
    %1906 = vmatpush1.msra.mxu0 0.0
    %1907 = vmatprep.subr.mxu0 0.0
    %1908 = vmatpush1.msra.mxu0 0.0
    %1909 = vmatprep.subr.mxu0 0.0
    %1910 = vmatpush1.msra.mxu0 0.0
    %1911 = vmatprep.subr.mxu0 0.0
    %1912 = vmatpush1.msra.mxu0 0.0
    %1913 = vmatprep.subr.mxu0 0.0
    %1914 = vmatpush1.msra.mxu0 0.0
    %1915 = vmatprep.subr.mxu0 0.0
    %1916 = vmatpush1.msra.mxu0 0.0
    %1917 = vmatprep.subr.mxu0 0.0
    %1918 = vmatpush1.msra.mxu0 0.0
    %1919 = vmatprep.subr.mxu0 0.0
    %1920 = vmatpush1.msra.mxu0 0.0
    %1921 = vmatprep.subr.mxu0 0.0
    %1922 = vmatpush1.msra.mxu0 %v1694
    %1923 = vmatprep.subr.mxu0 0.0
    %1924 = vmatpush1.msra.mxu0 %v1693
    %1925 = vmatprep.subr.mxu0 0.0
    %1926 = vmatpush1.msra.mxu0 %v1692
    %1927 = vmatprep.subr.mxu0 0.0
    %1928 = vmatpush1.msra.mxu0 %v1691
    %1929 = vmatprep.subr.mxu0 0.0
    %1930 = vmatpush2.msra.mxu0 0.0
    %1931 = vmatprep.subr.mxu0 0.0
    %1932 = vmatpush2.msra.mxu0 0.0
    %1933 = vmatprep.subr.mxu0 0.0
    %1934 = vmatpush2.msra.mxu0 0.0
    %1935 = vmatprep.subr.mxu0 0.0
    %1936 = vmatpush2.msra.mxu0 0.0
    %1937 = vmatprep.subr.mxu0 0.0
    %1938 = vmatpush2.msra.mxu0 0.0
    %1939 = vmatprep.subr.mxu0 0.0
    %1940 = vmatpush2.msra.mxu0 0.0
    %1941 = vmatprep.subr.mxu0 0.0
    %1942 = vmatpush2.msra.mxu0 0.0
    %1943 = vmatprep.subr.mxu0 0.0
    %1944 = vmatpush2.msra.mxu0 0.0
    %1945 = vmatprep.subr.mxu0 0.0
    %1946 = vmatpush2.msra.mxu0 0.0
    %1947 = vmatprep.subr.mxu0 0.0
    %1948 = vmatpush2.msra.mxu0 0.0
    %1949 = vmatprep.subr.mxu0 0.0
    %1950 = vmatpush2.msra.mxu0 0.0
    %1951 = vmatprep.subr.mxu0 0.0
    %1952 = vmatpush2.msra.mxu0 0.0
    %1953 = vmatprep.subr.mxu0 0.0
    %1954 = vmatpush2.msra.mxu0 0.0
    %1955 = vmatprep.subr.mxu0 0.0
    %1956 = vmatpush2.msra.mxu0 0.0
    %1957 = vmatprep.subr.mxu0 0.0
    %1958 = vmatpush2.msra.mxu0 0.0
    %1959 = vmatprep.subr.mxu0 0.0
    %1960 = vmatpush2.msra.mxu0 0.0
    %1961 = vmatprep.mubr.f32.mxu0 0.0
    %1962 = vmatmul.mubr.f32.gmra.mxu0 %v1895
    %v1963 = vpop.f32.mrf.mxu0
    %v1964 = vadd.f32 0.0, %v1963
    %v1965 = vpop.f32.mrf.mxu0
    %1966 = vdwg.mxu0
    %v1967 = vadd.f32 %v1891, %v1964
    %v1968 = vrot.slane %v1679, 6
    %v1969 = vsel %vm1749, %v1968, 0
    %1971 = vmatprep.subr.mxu0 0.0
    %1972 = vmatpush1.msra.mxu0 0.0
    %1973 = vmatprep.subr.mxu0 0.0
    %1974 = vmatpush1.msra.mxu0 0.0
    %1975 = vmatprep.subr.mxu0 0.0
    %1976 = vmatpush1.msra.mxu0 0.0
    %1977 = vmatprep.subr.mxu0 0.0
    %1978 = vmatpush1.msra.mxu0 0.0
    %1979 = vmatprep.subr.mxu0 0.0
    %1980 = vmatpush1.msra.mxu0 0.0
    %1981 = vmatprep.subr.mxu0 0.0
    %1982 = vmatpush1.msra.mxu0 0.0
    %1983 = vmatprep.subr.mxu0 0.0
    %1984 = vmatpush1.msra.mxu0 0.0
    %1985 = vmatprep.subr.mxu0 0.0
    %1986 = vmatpush1.msra.mxu0 0.0
    %1987 = vmatprep.subr.mxu0 0.0
    %1988 = vmatpush1.msra.mxu0 0.0
    %1989 = vmatprep.subr.mxu0 0.0
    %1990 = vmatpush1.msra.mxu0 0.0
    %1991 = vmatprep.subr.mxu0 0.0
    %1992 = vmatpush1.msra.mxu0 0.0
    %1993 = vmatprep.subr.mxu0 0.0
    %1994 = vmatpush1.msra.mxu0 0.0
    %1995 = vmatprep.subr.mxu0 0.0
    %1996 = vmatpush1.msra.mxu0 %v1698
    %1997 = vmatprep.subr.mxu0 0.0
    %1998 = vmatpush1.msra.mxu0 %v1697
    %1999 = vmatprep.subr.mxu0 0.0
    %2000 = vmatpush1.msra.mxu0 %v1696
    %2001 = vmatprep.subr.mxu0 0.0
    %2002 = vmatpush1.msra.mxu0 %v1695
    %2003 = vmatprep.subr.mxu0 0.0
    %2004 = vmatpush2.msra.mxu0 0.0
    %2005 = vmatprep.subr.mxu0 0.0
    %2006 = vmatpush2.msra.mxu0 0.0
    %2007 = vmatprep.subr.mxu0 0.0
    %2008 = vmatpush2.msra.mxu0 0.0
    %2009 = vmatprep.subr.mxu0 0.0
    %2010 = vmatpush2.msra.mxu0 0.0
    %2011 = vmatprep.subr.mxu0 0.0
    %2012 = vmatpush2.msra.mxu0 0.0
    %2013 = vmatprep.subr.mxu0 0.0
    %2014 = vmatpush2.msra.mxu0 0.0
    %2015 = vmatprep.subr.mxu0 0.0
    %2016 = vmatpush2.msra.mxu0 0.0
    %2017 = vmatprep.subr.mxu0 0.0
    %2018 = vmatpush2.msra.mxu0 0.0
    %2019 = vmatprep.subr.mxu0 0.0
    %2020 = vmatpush2.msra.mxu0 0.0
    %2021 = vmatprep.subr.mxu0 0.0
    %2022 = vmatpush2.msra.mxu0 0.0
    %2023 = vmatprep.subr.mxu0 0.0
    %2024 = vmatpush2.msra.mxu0 0.0
    %2025 = vmatprep.subr.mxu0 0.0
    %2026 = vmatpush2.msra.mxu0 0.0
    %2027 = vmatprep.subr.mxu0 0.0
    %2028 = vmatpush2.msra.mxu0 0.0
    %2029 = vmatprep.subr.mxu0 0.0
    %2030 = vmatpush2.msra.mxu0 0.0
    %2031 = vmatprep.subr.mxu0 0.0
    %2032 = vmatpush2.msra.mxu0 0.0
    %2033 = vmatprep.subr.mxu0 0.0
    %2034 = vmatpush2.msra.mxu0 0.0
    %2035 = vmatprep.mubr.f32.mxu0 0.0
    %2036 = vmatmul.mubr.f32.gmra.mxu0 %v1969
    %v2037 = vpop.f32.mrf.mxu0
    %v2038 = vadd.f32 0.0, %v2037
    %v2039 = vpop.f32.mrf.mxu0
    %2040 = vdwg.mxu0
    %v2041 = vadd.f32 %v1967, %v2038
    %v2043 = vsel %vm1749, %v1680, 0
    %2045 = vmatprep.subr.mxu0 0.0
    %2046 = vmatpush1.msra.mxu0 0.0
    %2047 = vmatprep.subr.mxu0 0.0
    %2048 = vmatpush1.msra.mxu0 0.0
    %2049 = vmatprep.subr.mxu0 0.0
    %2050 = vmatpush1.msra.mxu0 0.0
    %2051 = vmatprep.subr.mxu0 0.0
    %2052 = vmatpush1.msra.mxu0 0.0
    %2053 = vmatprep.subr.mxu0 0.0
    %2054 = vmatpush1.msra.mxu0 0.0
    %2055 = vmatprep.subr.mxu0 0.0
    %2056 = vmatpush1.msra.mxu0 0.0
    %2057 = vmatprep.subr.mxu0 0.0
    %2058 = vmatpush1.msra.mxu0 0.0
    %2059 = vmatprep.subr.mxu0 0.0
    %2060 = vmatpush1.msra.mxu0 0.0
    %2061 = vmatprep.subr.mxu0 0.0
    %2062 = vmatpush1.msra.mxu0 0.0
    %2063 = vmatprep.subr.mxu0 0.0
    %2064 = vmatpush1.msra.mxu0 0.0
    %2065 = vmatprep.subr.mxu0 0.0
    %2066 = vmatpush1.msra.mxu0 0.0
    %2067 = vmatprep.subr.mxu0 0.0
    %2068 = vmatpush1.msra.mxu0 0.0
    %2069 = vmatprep.subr.mxu0 0.0
    %2070 = vmatpush1.msra.mxu0 %v1702
    %2071 = vmatprep.subr.mxu0 0.0
    %2072 = vmatpush1.msra.mxu0 %v1701
    %2073 = vmatprep.subr.mxu0 0.0
    %2074 = vmatpush1.msra.mxu0 %v1700
    %2075 = vmatprep.subr.mxu0 0.0
    %2076 = vmatpush1.msra.mxu0 %v1699
    %2077 = vmatprep.subr.mxu0 0.0
    %2078 = vmatpush2.msra.mxu0 0.0
    %2079 = vmatprep.subr.mxu0 0.0
    %2080 = vmatpush2.msra.mxu0 0.0
    %2081 = vmatprep.subr.mxu0 0.0
    %2082 = vmatpush2.msra.mxu0 0.0
    %2083 = vmatprep.subr.mxu0 0.0
    %2084 = vmatpush2.msra.mxu0 0.0
    %2085 = vmatprep.subr.mxu0 0.0
    %2086 = vmatpush2.msra.mxu0 0.0
    %2087 = vmatprep.subr.mxu0 0.0
    %2088 = vmatpush2.msra.mxu0 0.0
    %2089 = vmatprep.subr.mxu0 0.0
    %2090 = vmatpush2.msra.mxu0 0.0
    %2091 = vmatprep.subr.mxu0 0.0
    %2092 = vmatpush2.msra.mxu0 0.0
    %2093 = vmatprep.subr.mxu0 0.0
    %2094 = vmatpush2.msra.mxu0 0.0
    %2095 = vmatprep.subr.mxu0 0.0
    %2096 = vmatpush2.msra.mxu0 0.0
    %2097 = vmatprep.subr.mxu0 0.0
    %2098 = vmatpush2.msra.mxu0 0.0
    %2099 = vmatprep.subr.mxu0 0.0
    %2100 = vmatpush2.msra.mxu0 0.0
    %2101 = vmatprep.subr.mxu0 0.0
    %2102 = vmatpush2.msra.mxu0 0.0
    %2103 = vmatprep.subr.mxu0 0.0
    %2104 = vmatpush2.msra.mxu0 0.0
    %2105 = vmatprep.subr.mxu0 0.0
    %2106 = vmatpush2.msra.mxu0 0.0
    %2107 = vmatprep.subr.mxu0 0.0
    %2108 = vmatpush2.msra.mxu0 0.0
    %2109 = vmatprep.mubr.f32.mxu0 0.0
    %2110 = vmatmul.mubr.f32.gmra.mxu0 %v2043
    %v2111 = vpop.f32.mrf.mxu0
    %v2112 = vadd.f32 0.0, %v2111
    %v2113 = vpop.f32.mrf.mxu0
    %2114 = vdwg.mxu0
    %v2115 = vadd.f32 %v2041, %v2112
    %v2116 = vrot.slane %v1680, 2
    %v2117 = vsel %vm1749, %v2116, 0
    %2119 = vmatprep.subr.mxu0 0.0
    %2120 = vmatpush1.msra.mxu0 0.0
    %2121 = vmatprep.subr.mxu0 0.0
    %2122 = vmatpush1.msra.mxu0 0.0
    %2123 = vmatprep.subr.mxu0 0.0
    %2124 = vmatpush1.msra.mxu0 0.0
    %2125 = vmatprep.subr.mxu0 0.0
    %2126 = vmatpush1.msra.mxu0 0.0
    %2127 = vmatprep.subr.mxu0 0.0
    %2128 = vmatpush1.msra.mxu0 0.0
    %2129 = vmatprep.subr.mxu0 0.0
    %2130 = vmatpush1.msra.mxu0 0.0
    %2131 = vmatprep.subr.mxu0 0.0
    %2132 = vmatpush1.msra.mxu0 0.0
    %2133 = vmatprep.subr.mxu0 0.0
    %2134 = vmatpush1.msra.mxu0 0.0
    %2135 = vmatprep.subr.mxu0 0.0
    %2136 = vmatpush1.msra.mxu0 0.0
    %2137 = vmatprep.subr.mxu0 0.0
    %2138 = vmatpush1.msra.mxu0 0.0
    %2139 = vmatprep.subr.mxu0 0.0
    %2140 = vmatpush1.msra.mxu0 0.0
    %2141 = vmatprep.subr.mxu0 0.0
    %2142 = vmatpush1.msra.mxu0 0.0
    %2143 = vmatprep.subr.mxu0 0.0
    %2144 = vmatpush1.msra.mxu0 %v1706
    %2145 = vmatprep.subr.mxu0 0.0
    %2146 = vmatpush1.msra.mxu0 %v1705
    %2147 = vmatprep.subr.mxu0 0.0
    %2148 = vmatpush1.msra.mxu0 %v1704
    %2149 = vmatprep.subr.mxu0 0.0
    %2150 = vmatpush1.msra.mxu0 %v1703
    %2151 = vmatprep.subr.mxu0 0.0
    %2152 = vmatpush2.msra.mxu0 0.0
    %2153 = vmatprep.subr.mxu0 0.0
    %2154 = vmatpush2.msra.mxu0 0.0
    %2155 = vmatprep.subr.mxu0 0.0
    %2156 = vmatpush2.msra.mxu0 0.0
    %2157 = vmatprep.subr.mxu0 0.0
    %2158 = vmatpush2.msra.mxu0 0.0
    %2159 = vmatprep.subr.mxu0 0.0
    %2160 = vmatpush2.msra.mxu0 0.0
    %2161 = vmatprep.subr.mxu0 0.0
    %2162 = vmatpush2.msra.mxu0 0.0
    %2163 = vmatprep.subr.mxu0 0.0
    %2164 = vmatpush2.msra.mxu0 0.0
    %2165 = vmatprep.subr.mxu0 0.0
    %2166 = vmatpush2.msra.mxu0 0.0
    %2167 = vmatprep.subr.mxu0 0.0
    %2168 = vmatpush2.msra.mxu0 0.0
    %2169 = vmatprep.subr.mxu0 0.0
    %2170 = vmatpush2.msra.mxu0 0.0
    %2171 = vmatprep.subr.mxu0 0.0
    %2172 = vmatpush2.msra.mxu0 0.0
    %2173 = vmatprep.subr.mxu0 0.0
    %2174 = vmatpush2.msra.mxu0 0.0
    %2175 = vmatprep.subr.mxu0 0.0
    %2176 = vmatpush2.msra.mxu0 0.0
    %2177 = vmatprep.subr.mxu0 0.0
    %2178 = vmatpush2.msra.mxu0 0.0
    %2179 = vmatprep.subr.mxu0 0.0
    %2180 = vmatpush2.msra.mxu0 0.0
    %2181 = vmatprep.subr.mxu0 0.0
    %2182 = vmatpush2.msra.mxu0 0.0
    %2183 = vmatprep.mubr.f32.mxu0 0.0
    %2184 = vmatmul.mubr.f32.gmra.mxu0 %v2117
    %v2185 = vpop.f32.mrf.mxu0
    %v2186 = vadd.f32 0.0, %v2185
    %v2187 = vpop.f32.mrf.mxu0
    %2188 = vdwg.mxu0
    %v2189 = vadd.f32 %v2115, %v2186
    %v2190 = vrot.slane %v1680, 4
    %v2191 = vsel %vm1749, %v2190, 0
    %2193 = vmatprep.subr.mxu0 0.0
    %2194 = vmatpush1.msra.mxu0 0.0
    %2195 = vmatprep.subr.mxu0 0.0
    %2196 = vmatpush1.msra.mxu0 0.0
    %2197 = vmatprep.subr.mxu0 0.0
    %2198 = vmatpush1.msra.mxu0 0.0
    %2199 = vmatprep.subr.mxu0 0.0
    %2200 = vmatpush1.msra.mxu0 0.0
    %2201 = vmatprep.subr.mxu0 0.0
    %2202 = vmatpush1.msra.mxu0 0.0
    %2203 = vmatprep.subr.mxu0 0.0
    %2204 = vmatpush1.msra.mxu0 0.0
    %2205 = vmatprep.subr.mxu0 0.0
    %2206 = vmatpush1.msra.mxu0 0.0
    %2207 = vmatprep.subr.mxu0 0.0
    %2208 = vmatpush1.msra.mxu0 0.0
    %2209 = vmatprep.subr.mxu0 0.0
    %2210 = vmatpush1.msra.mxu0 0.0
    %2211 = vmatprep.subr.mxu0 0.0
    %2212 = vmatpush1.msra.mxu0 0.0
    %2213 = vmatprep.subr.mxu0 0.0
    %2214 = vmatpush1.msra.mxu0 0.0
    %2215 = vmatprep.subr.mxu0 0.0
    %2216 = vmatpush1.msra.mxu0 0.0
    %2217 = vmatprep.subr.mxu0 0.0
    %2218 = vmatpush1.msra.mxu0 %v1710
    %2219 = vmatprep.subr.mxu0 0.0
    %2220 = vmatpush1.msra.mxu0 %v1709
    %2221 = vmatprep.subr.mxu0 0.0
    %2222 = vmatpush1.msra.mxu0 %v1708
    %2223 = vmatprep.subr.mxu0 0.0
    %2224 = vmatpush1.msra.mxu0 %v1707
    %2225 = vmatprep.subr.mxu0 0.0
    %2226 = vmatpush2.msra.mxu0 0.0
    %2227 = vmatprep.subr.mxu0 0.0
    %2228 = vmatpush2.msra.mxu0 0.0
    %2229 = vmatprep.subr.mxu0 0.0
    %2230 = vmatpush2.msra.mxu0 0.0
    %2231 = vmatprep.subr.mxu0 0.0
    %2232 = vmatpush2.msra.mxu0 0.0
    %2233 = vmatprep.subr.mxu0 0.0
    %2234 = vmatpush2.msra.mxu0 0.0
    %2235 = vmatprep.subr.mxu0 0.0
    %2236 = vmatpush2.msra.mxu0 0.0
    %2237 = vmatprep.subr.mxu0 0.0
    %2238 = vmatpush2.msra.mxu0 0.0
    %2239 = vmatprep.subr.mxu0 0.0
    %2240 = vmatpush2.msra.mxu0 0.0
    %2241 = vmatprep.subr.mxu0 0.0
    %2242 = vmatpush2.msra.mxu0 0.0
    %2243 = vmatprep.subr.mxu0 0.0
    %2244 = vmatpush2.msra.mxu0 0.0
    %2245 = vmatprep.subr.mxu0 0.0
    %2246 = vmatpush2.msra.mxu0 0.0
    %2247 = vmatprep.subr.mxu0 0.0
    %2248 = vmatpush2.msra.mxu0 0.0
    %2249 = vmatprep.subr.mxu0 0.0
    %2250 = vmatpush2.msra.mxu0 0.0
    %2251 = vmatprep.subr.mxu0 0.0
    %2252 = vmatpush2.msra.mxu0 0.0
    %2253 = vmatprep.subr.mxu0 0.0
    %2254 = vmatpush2.msra.mxu0 0.0
    %2255 = vmatprep.subr.mxu0 0.0
    %2256 = vmatpush2.msra.mxu0 0.0
    %2257 = vmatprep.mubr.f32.mxu0 0.0
    %2258 = vmatmul.mubr.f32.gmra.mxu0 %v2191
    %v2259 = vpop.f32.mrf.mxu0
    %v2260 = vadd.f32 0.0, %v2259
    %v2261 = vpop.f32.mrf.mxu0
    %2262 = vdwg.mxu0
    %v2263 = vadd.f32 %v2189, %v2260
    %v2264 = vrot.slane %v1680, 6
    %v2265 = vsel %vm1749, %v2264, 0
    %2267 = vmatprep.subr.mxu0 0.0
    %2268 = vmatpush1.msra.mxu0 0.0
    %2269 = vmatprep.subr.mxu0 0.0
    %2270 = vmatpush1.msra.mxu0 0.0
    %2271 = vmatprep.subr.mxu0 0.0
    %2272 = vmatpush1.msra.mxu0 0.0
    %2273 = vmatprep.subr.mxu0 0.0
    %2274 = vmatpush1.msra.mxu0 0.0
    %2275 = vmatprep.subr.mxu0 0.0
    %2276 = vmatpush1.msra.mxu0 0.0
    %2277 = vmatprep.subr.mxu0 0.0
    %2278 = vmatpush1.msra.mxu0 0.0
    %2279 = vmatprep.subr.mxu0 0.0
    %2280 = vmatpush1.msra.mxu0 0.0
    %2281 = vmatprep.subr.mxu0 0.0
    %2282 = vmatpush1.msra.mxu0 0.0
    %2283 = vmatprep.subr.mxu0 0.0
    %2284 = vmatpush1.msra.mxu0 0.0
    %2285 = vmatprep.subr.mxu0 0.0
    %2286 = vmatpush1.msra.mxu0 0.0
    %2287 = vmatprep.subr.mxu0 0.0
    %2288 = vmatpush1.msra.mxu0 0.0
    %2289 = vmatprep.subr.mxu0 0.0
    %2290 = vmatpush1.msra.mxu0 0.0
    %2291 = vmatprep.subr.mxu0 0.0
    %2292 = vmatpush1.msra.mxu0 %v1714
    %2293 = vmatprep.subr.mxu0 0.0
    %2294 = vmatpush1.msra.mxu0 %v1713
    %2295 = vmatprep.subr.mxu0 0.0
    %2296 = vmatpush1.msra.mxu0 %v1712
    %2297 = vmatprep.subr.mxu0 0.0
    %2298 = vmatpush1.msra.mxu0 %v1711
    %2299 = vmatprep.subr.mxu0 0.0
    %2300 = vmatpush2.msra.mxu0 0.0
    %2301 = vmatprep.subr.mxu0 0.0
    %2302 = vmatpush2.msra.mxu0 0.0
    %2303 = vmatprep.subr.mxu0 0.0
    %2304 = vmatpush2.msra.mxu0 0.0
    %2305 = vmatprep.subr.mxu0 0.0
    %2306 = vmatpush2.msra.mxu0 0.0
    %2307 = vmatprep.subr.mxu0 0.0
    %2308 = vmatpush2.msra.mxu0 0.0
    %2309 = vmatprep.subr.mxu0 0.0
    %2310 = vmatpush2.msra.mxu0 0.0
    %2311 = vmatprep.subr.mxu0 0.0
    %2312 = vmatpush2.msra.mxu0 0.0
    %2313 = vmatprep.subr.mxu0 0.0
    %2314 = vmatpush2.msra.mxu0 0.0
    %2315 = vmatprep.subr.mxu0 0.0
    %2316 = vmatpush2.msra.mxu0 0.0
    %2317 = vmatprep.subr.mxu0 0.0
    %2318 = vmatpush2.msra.mxu0 0.0
    %2319 = vmatprep.subr.mxu0 0.0
    %2320 = vmatpush2.msra.mxu0 0.0
    %2321 = vmatprep.subr.mxu0 0.0
    %2322 = vmatpush2.msra.mxu0 0.0
    %2323 = vmatprep.subr.mxu0 0.0
    %2324 = vmatpush2.msra.mxu0 0.0
    %2325 = vmatprep.subr.mxu0 0.0
    %2326 = vmatpush2.msra.mxu0 0.0
    %2327 = vmatprep.subr.mxu0 0.0
    %2328 = vmatpush2.msra.mxu0 0.0
    %2329 = vmatprep.subr.mxu0 0.0
    %2330 = vmatpush2.msra.mxu0 0.0
    %2331 = vmatprep.mubr.f32.mxu0 0.0
    %2332 = vmatmul.mubr.f32.gmra.mxu0 %v2265
    %v2333 = vpop.f32.mrf.mxu0
    %v2334 = vadd.f32 0.0, %v2333
    %v2335 = vpop.f32.mrf.mxu0
    %2336 = vdwg.mxu0
    %v2337 = vadd.f32 %v2263, %v2334
    %v2339 = vsel %vm1749, %v1681, 0
    %2341 = vmatprep.subr.mxu0 0.0
    %2342 = vmatpush1.msra.mxu0 0.0
    %2343 = vmatprep.subr.mxu0 0.0
    %2344 = vmatpush1.msra.mxu0 0.0
    %2345 = vmatprep.subr.mxu0 0.0
    %2346 = vmatpush1.msra.mxu0 0.0
    %2347 = vmatprep.subr.mxu0 0.0
    %2348 = vmatpush1.msra.mxu0 0.0
    %2349 = vmatprep.subr.mxu0 0.0
    %2350 = vmatpush1.msra.mxu0 0.0
    %2351 = vmatprep.subr.mxu0 0.0
    %2352 = vmatpush1.msra.mxu0 0.0
    %2353 = vmatprep.subr.mxu0 0.0
    %2354 = vmatpush1.msra.mxu0 0.0
    %2355 = vmatprep.subr.mxu0 0.0
    %2356 = vmatpush1.msra.mxu0 0.0
    %2357 = vmatprep.subr.mxu0 0.0
    %2358 = vmatpush1.msra.mxu0 0.0
    %2359 = vmatprep.subr.mxu0 0.0
    %2360 = vmatpush1.msra.mxu0 0.0
    %2361 = vmatprep.subr.mxu0 0.0
    %2362 = vmatpush1.msra.mxu0 0.0
    %2363 = vmatprep.subr.mxu0 0.0
    %2364 = vmatpush1.msra.mxu0 0.0
    %2365 = vmatprep.subr.mxu0 0.0
    %2366 = vmatpush1.msra.mxu0 %v1718
    %2367 = vmatprep.subr.mxu0 0.0
    %2368 = vmatpush1.msra.mxu0 %v1717
    %2369 = vmatprep.subr.mxu0 0.0
    %2370 = vmatpush1.msra.mxu0 %v1716
    %2371 = vmatprep.subr.mxu0 0.0
    %2372 = vmatpush1.msra.mxu0 %v1715
    %2373 = vmatprep.subr.mxu0 0.0
    %2374 = vmatpush2.msra.mxu0 0.0
    %2375 = vmatprep.subr.mxu0 0.0
    %2376 = vmatpush2.msra.mxu0 0.0
    %2377 = vmatprep.subr.mxu0 0.0
    %2378 = vmatpush2.msra.mxu0 0.0
    %2379 = vmatprep.subr.mxu0 0.0
    %2380 = vmatpush2.msra.mxu0 0.0
    %2381 = vmatprep.subr.mxu0 0.0
    %2382 = vmatpush2.msra.mxu0 0.0
    %2383 = vmatprep.subr.mxu0 0.0
    %2384 = vmatpush2.msra.mxu0 0.0
    %2385 = vmatprep.subr.mxu0 0.0
    %2386 = vmatpush2.msra.mxu0 0.0
    %2387 = vmatprep.subr.mxu0 0.0
    %2388 = vmatpush2.msra.mxu0 0.0
    %2389 = vmatprep.subr.mxu0 0.0
    %2390 = vmatpush2.msra.mxu0 0.0
    %2391 = vmatprep.subr.mxu0 0.0
    %2392 = vmatpush2.msra.mxu0 0.0
    %2393 = vmatprep.subr.mxu0 0.0
    %2394 = vmatpush2.msra.mxu0 0.0
    %2395 = vmatprep.subr.mxu0 0.0
    %2396 = vmatpush2.msra.mxu0 0.0
    %2397 = vmatprep.subr.mxu0 0.0
    %2398 = vmatpush2.msra.mxu0 0.0
    %2399 = vmatprep.subr.mxu0 0.0
    %2400 = vmatpush2.msra.mxu0 0.0
    %2401 = vmatprep.subr.mxu0 0.0
    %2402 = vmatpush2.msra.mxu0 0.0
    %2403 = vmatprep.subr.mxu0 0.0
    %2404 = vmatpush2.msra.mxu0 0.0
    %2405 = vmatprep.mubr.f32.mxu0 0.0
    %2406 = vmatmul.mubr.f32.gmra.mxu0 %v2339
    %v2407 = vpop.f32.mrf.mxu0
    %v2408 = vadd.f32 0.0, %v2407
    %v2409 = vpop.f32.mrf.mxu0
    %2410 = vdwg.mxu0
    %v2411 = vadd.f32 %v2337, %v2408
    %v2412 = vrot.slane %v1681, 2
    %v2413 = vsel %vm1749, %v2412, 0
    %2415 = vmatprep.subr.mxu0 0.0
    %2416 = vmatpush1.msra.mxu0 0.0
    %2417 = vmatprep.subr.mxu0 0.0
    %2418 = vmatpush1.msra.mxu0 0.0
    %2419 = vmatprep.subr.mxu0 0.0
    %2420 = vmatpush1.msra.mxu0 0.0
    %2421 = vmatprep.subr.mxu0 0.0
    %2422 = vmatpush1.msra.mxu0 0.0
    %2423 = vmatprep.subr.mxu0 0.0
    %2424 = vmatpush1.msra.mxu0 0.0
    %2425 = vmatprep.subr.mxu0 0.0
    %2426 = vmatpush1.msra.mxu0 0.0
    %2427 = vmatprep.subr.mxu0 0.0
    %2428 = vmatpush1.msra.mxu0 0.0
    %2429 = vmatprep.subr.mxu0 0.0
    %2430 = vmatpush1.msra.mxu0 0.0
    %2431 = vmatprep.subr.mxu0 0.0
    %2432 = vmatpush1.msra.mxu0 0.0
    %2433 = vmatprep.subr.mxu0 0.0
    %2434 = vmatpush1.msra.mxu0 0.0
    %2435 = vmatprep.subr.mxu0 0.0
    %2436 = vmatpush1.msra.mxu0 0.0
    %2437 = vmatprep.subr.mxu0 0.0
    %2438 = vmatpush1.msra.mxu0 0.0
    %2439 = vmatprep.subr.mxu0 0.0
    %2440 = vmatpush1.msra.mxu0 %v1722
    %2441 = vmatprep.subr.mxu0 0.0
    %2442 = vmatpush1.msra.mxu0 %v1721
    %2443 = vmatprep.subr.mxu0 0.0
    %2444 = vmatpush1.msra.mxu0 %v1720
    %2445 = vmatprep.subr.mxu0 0.0
    %2446 = vmatpush1.msra.mxu0 %v1719
    %2447 = vmatprep.subr.mxu0 0.0
    %2448 = vmatpush2.msra.mxu0 0.0
    %2449 = vmatprep.subr.mxu0 0.0
    %2450 = vmatpush2.msra.mxu0 0.0
    %2451 = vmatprep.subr.mxu0 0.0
    %2452 = vmatpush2.msra.mxu0 0.0
    %2453 = vmatprep.subr.mxu0 0.0
    %2454 = vmatpush2.msra.mxu0 0.0
    %2455 = vmatprep.subr.mxu0 0.0
    %2456 = vmatpush2.msra.mxu0 0.0
    %2457 = vmatprep.subr.mxu0 0.0
    %2458 = vmatpush2.msra.mxu0 0.0
    %2459 = vmatprep.subr.mxu0 0.0
    %2460 = vmatpush2.msra.mxu0 0.0
    %2461 = vmatprep.subr.mxu0 0.0
    %2462 = vmatpush2.msra.mxu0 0.0
    %2463 = vmatprep.subr.mxu0 0.0
    %2464 = vmatpush2.msra.mxu0 0.0
    %2465 = vmatprep.subr.mxu0 0.0
    %2466 = vmatpush2.msra.mxu0 0.0
    %2467 = vmatprep.subr.mxu0 0.0
    %2468 = vmatpush2.msra.mxu0 0.0
    %2469 = vmatprep.subr.mxu0 0.0
    %2470 = vmatpush2.msra.mxu0 0.0
    %2471 = vmatprep.subr.mxu0 0.0
    %2472 = vmatpush2.msra.mxu0 0.0
    %2473 = vmatprep.subr.mxu0 0.0
    %2474 = vmatpush2.msra.mxu0 0.0
    %2475 = vmatprep.subr.mxu0 0.0
    %2476 = vmatpush2.msra.mxu0 0.0
    %2477 = vmatprep.subr.mxu0 0.0
    %2478 = vmatpush2.msra.mxu0 0.0
    %2479 = vmatprep.mubr.f32.mxu0 0.0
    %2480 = vmatmul.mubr.f32.gmra.mxu0 %v2413
    %v2481 = vpop.f32.mrf.mxu0
    %v2482 = vadd.f32 0.0, %v2481
    %v2483 = vpop.f32.mrf.mxu0
    %2484 = vdwg.mxu0
    %v2485 = vadd.f32 %v2411, %v2482
    %v2486 = vrot.slane %v1681, 4
    %v2487 = vsel %vm1749, %v2486, 0
    %2489 = vmatprep.subr.mxu0 0.0
    %2490 = vmatpush1.msra.mxu0 0.0
    %2491 = vmatprep.subr.mxu0 0.0
    %2492 = vmatpush1.msra.mxu0 0.0
    %2493 = vmatprep.subr.mxu0 0.0
    %2494 = vmatpush1.msra.mxu0 0.0
    %2495 = vmatprep.subr.mxu0 0.0
    %2496 = vmatpush1.msra.mxu0 0.0
    %2497 = vmatprep.subr.mxu0 0.0
    %2498 = vmatpush1.msra.mxu0 0.0
    %2499 = vmatprep.subr.mxu0 0.0
    %2500 = vmatpush1.msra.mxu0 0.0
    %2501 = vmatprep.subr.mxu0 0.0
    %2502 = vmatpush1.msra.mxu0 0.0
    %2503 = vmatprep.subr.mxu0 0.0
    %2504 = vmatpush1.msra.mxu0 0.0
    %2505 = vmatprep.subr.mxu0 0.0
    %2506 = vmatpush1.msra.mxu0 0.0
    %2507 = vmatprep.subr.mxu0 0.0
    %2508 = vmatpush1.msra.mxu0 0.0
    %2509 = vmatprep.subr.mxu0 0.0
    %2510 = vmatpush1.msra.mxu0 0.0
    %2511 = vmatprep.subr.mxu0 0.0
    %2512 = vmatpush1.msra.mxu0 0.0
    %2513 = vmatprep.subr.mxu0 0.0
    %2514 = vmatpush1.msra.mxu0 %v1726
    %2515 = vmatprep.subr.mxu0 0.0
    %2516 = vmatpush1.msra.mxu0 %v1725
    %2517 = vmatprep.subr.mxu0 0.0
    %2518 = vmatpush1.msra.mxu0 %v1724
    %2519 = vmatprep.subr.mxu0 0.0
    %2520 = vmatpush1.msra.mxu0 %v1723
    %2521 = vmatprep.subr.mxu0 0.0
    %2522 = vmatpush2.msra.mxu0 0.0
    %2523 = vmatprep.subr.mxu0 0.0
    %2524 = vmatpush2.msra.mxu0 0.0
    %2525 = vmatprep.subr.mxu0 0.0
    %2526 = vmatpush2.msra.mxu0 0.0
    %2527 = vmatprep.subr.mxu0 0.0
    %2528 = vmatpush2.msra.mxu0 0.0
    %2529 = vmatprep.subr.mxu0 0.0
    %2530 = vmatpush2.msra.mxu0 0.0
    %2531 = vmatprep.subr.mxu0 0.0
    %2532 = vmatpush2.msra.mxu0 0.0
    %2533 = vmatprep.subr.mxu0 0.0
    %2534 = vmatpush2.msra.mxu0 0.0
    %2535 = vmatprep.subr.mxu0 0.0
    %2536 = vmatpush2.msra.mxu0 0.0
    %2537 = vmatprep.subr.mxu0 0.0
    %2538 = vmatpush2.msra.mxu0 0.0
    %2539 = vmatprep.subr.mxu0 0.0
    %2540 = vmatpush2.msra.mxu0 0.0
    %2541 = vmatprep.subr.mxu0 0.0
    %2542 = vmatpush2.msra.mxu0 0.0
    %2543 = vmatprep.subr.mxu0 0.0
    %2544 = vmatpush2.msra.mxu0 0.0
    %2545 = vmatprep.subr.mxu0 0.0
    %2546 = vmatpush2.msra.mxu0 0.0
    %2547 = vmatprep.subr.mxu0 0.0
    %2548 = vmatpush2.msra.mxu0 0.0
    %2549 = vmatprep.subr.mxu0 0.0
    %2550 = vmatpush2.msra.mxu0 0.0
    %2551 = vmatprep.subr.mxu0 0.0
    %2552 = vmatpush2.msra.mxu0 0.0
    %2553 = vmatprep.mubr.f32.mxu0 0.0
    %2554 = vmatmul.mubr.f32.gmra.mxu0 %v2487
    %v2555 = vpop.f32.mrf.mxu0
    %v2556 = vadd.f32 0.0, %v2555
    %v2557 = vpop.f32.mrf.mxu0
    %2558 = vdwg.mxu0
    %v2559 = vadd.f32 %v2485, %v2556
    %v2560 = vrot.slane %v1681, 6
    %v2561 = vsel %vm1749, %v2560, 0
    %2563 = vmatprep.subr.mxu0 0.0
    %2564 = vmatpush1.msra.mxu0 0.0
    %2565 = vmatprep.subr.mxu0 0.0
    %2566 = vmatpush1.msra.mxu0 0.0
    %2567 = vmatprep.subr.mxu0 0.0
    %2568 = vmatpush1.msra.mxu0 0.0
    %2569 = vmatprep.subr.mxu0 0.0
    %2570 = vmatpush1.msra.mxu0 0.0
    %2571 = vmatprep.subr.mxu0 0.0
    %2572 = vmatpush1.msra.mxu0 0.0
    %2573 = vmatprep.subr.mxu0 0.0
    %2574 = vmatpush1.msra.mxu0 0.0
    %2575 = vmatprep.subr.mxu0 0.0
    %2576 = vmatpush1.msra.mxu0 0.0
    %2577 = vmatprep.subr.mxu0 0.0
    %2578 = vmatpush1.msra.mxu0 0.0
    %2579 = vmatprep.subr.mxu0 0.0
    %2580 = vmatpush1.msra.mxu0 0.0
    %2581 = vmatprep.subr.mxu0 0.0
    %2582 = vmatpush1.msra.mxu0 0.0
    %2583 = vmatprep.subr.mxu0 0.0
    %2584 = vmatpush1.msra.mxu0 0.0
    %2585 = vmatprep.subr.mxu0 0.0
    %2586 = vmatpush1.msra.mxu0 0.0
    %2587 = vmatprep.subr.mxu0 0.0
    %2588 = vmatpush1.msra.mxu0 %v1730
    %2589 = vmatprep.subr.mxu0 0.0
    %2590 = vmatpush1.msra.mxu0 %v1729
    %2591 = vmatprep.subr.mxu0 0.0
    %2592 = vmatpush1.msra.mxu0 %v1728
    %2593 = vmatprep.subr.mxu0 0.0
    %2594 = vmatpush1.msra.mxu0 %v1727
    %2595 = vmatprep.subr.mxu0 0.0
    %2596 = vmatpush2.msra.mxu0 0.0
    %2597 = vmatprep.subr.mxu0 0.0
    %2598 = vmatpush2.msra.mxu0 0.0
    %2599 = vmatprep.subr.mxu0 0.0
    %2600 = vmatpush2.msra.mxu0 0.0
    %2601 = vmatprep.subr.mxu0 0.0
    %2602 = vmatpush2.msra.mxu0 0.0
    %2603 = vmatprep.subr.mxu0 0.0
    %2604 = vmatpush2.msra.mxu0 0.0
    %2605 = vmatprep.subr.mxu0 0.0
    %2606 = vmatpush2.msra.mxu0 0.0
    %2607 = vmatprep.subr.mxu0 0.0
    %2608 = vmatpush2.msra.mxu0 0.0
    %2609 = vmatprep.subr.mxu0 0.0
    %2610 = vmatpush2.msra.mxu0 0.0
    %2611 = vmatprep.subr.mxu0 0.0
    %2612 = vmatpush2.msra.mxu0 0.0
    %2613 = vmatprep.subr.mxu0 0.0
    %2614 = vmatpush2.msra.mxu0 0.0
    %2615 = vmatprep.subr.mxu0 0.0
    %2616 = vmatpush2.msra.mxu0 0.0
    %2617 = vmatprep.subr.mxu0 0.0
    %2618 = vmatpush2.msra.mxu0 0.0
    %2619 = vmatprep.subr.mxu0 0.0
    %2620 = vmatpush2.msra.mxu0 0.0
    %2621 = vmatprep.subr.mxu0 0.0
    %2622 = vmatpush2.msra.mxu0 0.0
    %2623 = vmatprep.subr.mxu0 0.0
    %2624 = vmatpush2.msra.mxu0 0.0
    %2625 = vmatprep.subr.mxu0 0.0
    %2626 = vmatpush2.msra.mxu0 0.0
    %2627 = vmatprep.mubr.f32.mxu0 0.0
    %2628 = vmatmul.mubr.f32.gmra.mxu0 %v2561
    %v2629 = vpop.f32.mrf.mxu0
    %v2630 = vadd.f32 0.0, %v2629
    %v2631 = vpop.f32.mrf.mxu0
    %2632 = vdwg.mxu0
    %v2633 = vadd.f32 %v2559, %v2630
    %v2635 = vsel %vm1749, %v1682, 0
    %2637 = vmatprep.subr.mxu0 0.0
    %2638 = vmatpush1.msra.mxu0 0.0
    %2639 = vmatprep.subr.mxu0 0.0
    %2640 = vmatpush1.msra.mxu0 0.0
    %2641 = vmatprep.subr.mxu0 0.0
    %2642 = vmatpush1.msra.mxu0 0.0
    %2643 = vmatprep.subr.mxu0 0.0
    %2644 = vmatpush1.msra.mxu0 0.0
    %2645 = vmatprep.subr.mxu0 0.0
    %2646 = vmatpush1.msra.mxu0 0.0
    %2647 = vmatprep.subr.mxu0 0.0
    %2648 = vmatpush1.msra.mxu0 0.0
    %2649 = vmatprep.subr.mxu0 0.0
    %2650 = vmatpush1.msra.mxu0 0.0
    %2651 = vmatprep.subr.mxu0 0.0
    %2652 = vmatpush1.msra.mxu0 0.0
    %2653 = vmatprep.subr.mxu0 0.0
    %2654 = vmatpush1.msra.mxu0 0.0
    %2655 = vmatprep.subr.mxu0 0.0
    %2656 = vmatpush1.msra.mxu0 0.0
    %2657 = vmatprep.subr.mxu0 0.0
    %2658 = vmatpush1.msra.mxu0 0.0
    %2659 = vmatprep.subr.mxu0 0.0
    %2660 = vmatpush1.msra.mxu0 0.0
    %2661 = vmatprep.subr.mxu0 0.0
    %2662 = vmatpush1.msra.mxu0 %v1734
    %2663 = vmatprep.subr.mxu0 0.0
    %2664 = vmatpush1.msra.mxu0 %v1733
    %2665 = vmatprep.subr.mxu0 0.0
    %2666 = vmatpush1.msra.mxu0 %v1732
    %2667 = vmatprep.subr.mxu0 0.0
    %2668 = vmatpush1.msra.mxu0 %v1731
    %2669 = vmatprep.subr.mxu0 0.0
    %2670 = vmatpush2.msra.mxu0 0.0
    %2671 = vmatprep.subr.mxu0 0.0
    %2672 = vmatpush2.msra.mxu0 0.0
    %2673 = vmatprep.subr.mxu0 0.0
    %2674 = vmatpush2.msra.mxu0 0.0
    %2675 = vmatprep.subr.mxu0 0.0
    %2676 = vmatpush2.msra.mxu0 0.0
    %2677 = vmatprep.subr.mxu0 0.0
    %2678 = vmatpush2.msra.mxu0 0.0
    %2679 = vmatprep.subr.mxu0 0.0
    %2680 = vmatpush2.msra.mxu0 0.0
    %2681 = vmatprep.subr.mxu0 0.0
    %2682 = vmatpush2.msra.mxu0 0.0
    %2683 = vmatprep.subr.mxu0 0.0
    %2684 = vmatpush2.msra.mxu0 0.0
    %2685 = vmatprep.subr.mxu0 0.0
    %2686 = vmatpush2.msra.mxu0 0.0
    %2687 = vmatprep.subr.mxu0 0.0
    %2688 = vmatpush2.msra.mxu0 0.0
    %2689 = vmatprep.subr.mxu0 0.0
    %2690 = vmatpush2.msra.mxu0 0.0
    %2691 = vmatprep.subr.mxu0 0.0
    %2692 = vmatpush2.msra.mxu0 0.0
    %2693 = vmatprep.subr.mxu0 0.0
    %2694 = vmatpush2.msra.mxu0 0.0
    %2695 = vmatprep.subr.mxu0 0.0
    %2696 = vmatpush2.msra.mxu0 0.0
    %2697 = vmatprep.subr.mxu0 0.0
    %2698 = vmatpush2.msra.mxu0 0.0
    %2699 = vmatprep.subr.mxu0 0.0
    %2700 = vmatpush2.msra.mxu0 0.0
    %2701 = vmatprep.mubr.f32.mxu0 0.0
    %2702 = vmatmul.mubr.f32.gmra.mxu0 %v2635
    %v2703 = vpop.f32.mrf.mxu0
    %v2704 = vadd.f32 0.0, %v2703
    %v2705 = vpop.f32.mrf.mxu0
    %2706 = vdwg.mxu0
    %v2707 = vadd.f32 %v2633, %v2704
    %v2708 = vrot.slane %v1682, 2
    %v2709 = vsel %vm1749, %v2708, 0
    %2711 = vmatprep.subr.mxu0 0.0
    %2712 = vmatpush1.msra.mxu0 0.0
    %2713 = vmatprep.subr.mxu0 0.0
    %2714 = vmatpush1.msra.mxu0 0.0
    %2715 = vmatprep.subr.mxu0 0.0
    %2716 = vmatpush1.msra.mxu0 0.0
    %2717 = vmatprep.subr.mxu0 0.0
    %2718 = vmatpush1.msra.mxu0 0.0
    %2719 = vmatprep.subr.mxu0 0.0
    %2720 = vmatpush1.msra.mxu0 0.0
    %2721 = vmatprep.subr.mxu0 0.0
    %2722 = vmatpush1.msra.mxu0 0.0
    %2723 = vmatprep.subr.mxu0 0.0
    %2724 = vmatpush1.msra.mxu0 0.0
    %2725 = vmatprep.subr.mxu0 0.0
    %2726 = vmatpush1.msra.mxu0 0.0
    %2727 = vmatprep.subr.mxu0 0.0
    %2728 = vmatpush1.msra.mxu0 0.0
    %2729 = vmatprep.subr.mxu0 0.0
    %2730 = vmatpush1.msra.mxu0 0.0
    %2731 = vmatprep.subr.mxu0 0.0
    %2732 = vmatpush1.msra.mxu0 0.0
    %2733 = vmatprep.subr.mxu0 0.0
    %2734 = vmatpush1.msra.mxu0 0.0
    %2735 = vmatprep.subr.mxu0 0.0
    %2736 = vmatpush1.msra.mxu0 %v1738
    %2737 = vmatprep.subr.mxu0 0.0
    %2738 = vmatpush1.msra.mxu0 %v1737
    %2739 = vmatprep.subr.mxu0 0.0
    %2740 = vmatpush1.msra.mxu0 %v1736
    %2741 = vmatprep.subr.mxu0 0.0
    %2742 = vmatpush1.msra.mxu0 %v1735
    %2743 = vmatprep.subr.mxu0 0.0
    %2744 = vmatpush2.msra.mxu0 0.0
    %2745 = vmatprep.subr.mxu0 0.0
    %2746 = vmatpush2.msra.mxu0 0.0
    %2747 = vmatprep.subr.mxu0 0.0
    %2748 = vmatpush2.msra.mxu0 0.0
    %2749 = vmatprep.subr.mxu0 0.0
    %2750 = vmatpush2.msra.mxu0 0.0
    %2751 = vmatprep.subr.mxu0 0.0
    %2752 = vmatpush2.msra.mxu0 0.0
    %2753 = vmatprep.subr.mxu0 0.0
    %2754 = vmatpush2.msra.mxu0 0.0
    %2755 = vmatprep.subr.mxu0 0.0
    %2756 = vmatpush2.msra.mxu0 0.0
    %2757 = vmatprep.subr.mxu0 0.0
    %2758 = vmatpush2.msra.mxu0 0.0
    %2759 = vmatprep.subr.mxu0 0.0
    %2760 = vmatpush2.msra.mxu0 0.0
    %2761 = vmatprep.subr.mxu0 0.0
    %2762 = vmatpush2.msra.mxu0 0.0
    %2763 = vmatprep.subr.mxu0 0.0
    %2764 = vmatpush2.msra.mxu0 0.0
    %2765 = vmatprep.subr.mxu0 0.0
    %2766 = vmatpush2.msra.mxu0 0.0
    %2767 = vmatprep.subr.mxu0 0.0
    %2768 = vmatpush2.msra.mxu0 0.0
    %2769 = vmatprep.subr.mxu0 0.0
    %2770 = vmatpush2.msra.mxu0 0.0
    %2771 = vmatprep.subr.mxu0 0.0
    %2772 = vmatpush2.msra.mxu0 0.0
    %2773 = vmatprep.subr.mxu0 0.0
    %2774 = vmatpush2.msra.mxu0 0.0
    %2775 = vmatprep.mubr.f32.mxu0 0.0
    %2776 = vmatmul.mubr.f32.gmra.mxu0 %v2709
    %v2777 = vpop.f32.mrf.mxu0
    %v2778 = vadd.f32 0.0, %v2777
    %v2779 = vpop.f32.mrf.mxu0
    %2780 = vdwg.mxu0
    %v2781 = vadd.f32 %v2707, %v2778
    %v2782 = vrot.slane %v1682, 4
    %v2783 = vsel %vm1749, %v2782, 0
    %2785 = vmatprep.subr.mxu0 0.0
    %2786 = vmatpush1.msra.mxu0 0.0
    %2787 = vmatprep.subr.mxu0 0.0
    %2788 = vmatpush1.msra.mxu0 0.0
    %2789 = vmatprep.subr.mxu0 0.0
    %2790 = vmatpush1.msra.mxu0 0.0
    %2791 = vmatprep.subr.mxu0 0.0
    %2792 = vmatpush1.msra.mxu0 0.0
    %2793 = vmatprep.subr.mxu0 0.0
    %2794 = vmatpush1.msra.mxu0 0.0
    %2795 = vmatprep.subr.mxu0 0.0
    %2796 = vmatpush1.msra.mxu0 0.0
    %2797 = vmatprep.subr.mxu0 0.0
    %2798 = vmatpush1.msra.mxu0 0.0
    %2799 = vmatprep.subr.mxu0 0.0
    %2800 = vmatpush1.msra.mxu0 0.0
    %2801 = vmatprep.subr.mxu0 0.0
    %2802 = vmatpush1.msra.mxu0 0.0
    %2803 = vmatprep.subr.mxu0 0.0
    %2804 = vmatpush1.msra.mxu0 0.0
    %2805 = vmatprep.subr.mxu0 0.0
    %2806 = vmatpush1.msra.mxu0 0.0
    %2807 = vmatprep.subr.mxu0 0.0
    %2808 = vmatpush1.msra.mxu0 0.0
    %2809 = vmatprep.subr.mxu0 0.0
    %2810 = vmatpush1.msra.mxu0 %v1742
    %2811 = vmatprep.subr.mxu0 0.0
    %2812 = vmatpush1.msra.mxu0 %v1741
    %2813 = vmatprep.subr.mxu0 0.0
    %2814 = vmatpush1.msra.mxu0 %v1740
    %2815 = vmatprep.subr.mxu0 0.0
    %2816 = vmatpush1.msra.mxu0 %v1739
    %2817 = vmatprep.subr.mxu0 0.0
    %2818 = vmatpush2.msra.mxu0 0.0
    %2819 = vmatprep.subr.mxu0 0.0
    %2820 = vmatpush2.msra.mxu0 0.0
    %2821 = vmatprep.subr.mxu0 0.0
    %2822 = vmatpush2.msra.mxu0 0.0
    %2823 = vmatprep.subr.mxu0 0.0
    %2824 = vmatpush2.msra.mxu0 0.0
    %2825 = vmatprep.subr.mxu0 0.0
    %2826 = vmatpush2.msra.mxu0 0.0
    %2827 = vmatprep.subr.mxu0 0.0
    %2828 = vmatpush2.msra.mxu0 0.0
    %2829 = vmatprep.subr.mxu0 0.0
    %2830 = vmatpush2.msra.mxu0 0.0
    %2831 = vmatprep.subr.mxu0 0.0
    %2832 = vmatpush2.msra.mxu0 0.0
    %2833 = vmatprep.subr.mxu0 0.0
    %2834 = vmatpush2.msra.mxu0 0.0
    %2835 = vmatprep.subr.mxu0 0.0
    %2836 = vmatpush2.msra.mxu0 0.0
    %2837 = vmatprep.subr.mxu0 0.0
    %2838 = vmatpush2.msra.mxu0 0.0
    %2839 = vmatprep.subr.mxu0 0.0
    %2840 = vmatpush2.msra.mxu0 0.0
    %2841 = vmatprep.subr.mxu0 0.0
    %2842 = vmatpush2.msra.mxu0 0.0
    %2843 = vmatprep.subr.mxu0 0.0
    %2844 = vmatpush2.msra.mxu0 0.0
    %2845 = vmatprep.subr.mxu0 0.0
    %2846 = vmatpush2.msra.mxu0 0.0
    %2847 = vmatprep.subr.mxu0 0.0
    %2848 = vmatpush2.msra.mxu0 0.0
    %2849 = vmatprep.mubr.f32.mxu0 0.0
    %2850 = vmatmul.mubr.f32.gmra.mxu0 %v2783
    %v2851 = vpop.f32.mrf.mxu0
    %v2852 = vadd.f32 0.0, %v2851
    %v2853 = vpop.f32.mrf.mxu0
    %2854 = vdwg.mxu0
    %v2855 = vadd.f32 %v2781, %v2852
    %v2856 = vrot.slane %v1682, 6
    %v2857 = vsel %vm1749, %v2856, 0
    %2859 = vmatprep.subr.mxu0 0.0
    %2860 = vmatpush1.msra.mxu0 0.0
    %2861 = vmatprep.subr.mxu0 0.0
    %2862 = vmatpush1.msra.mxu0 0.0
    %2863 = vmatprep.subr.mxu0 0.0
    %2864 = vmatpush1.msra.mxu0 0.0
    %2865 = vmatprep.subr.mxu0 0.0
    %2866 = vmatpush1.msra.mxu0 0.0
    %2867 = vmatprep.subr.mxu0 0.0
    %2868 = vmatpush1.msra.mxu0 0.0
    %2869 = vmatprep.subr.mxu0 0.0
    %2870 = vmatpush1.msra.mxu0 0.0
    %2871 = vmatprep.subr.mxu0 0.0
    %2872 = vmatpush1.msra.mxu0 0.0
    %2873 = vmatprep.subr.mxu0 0.0
    %2874 = vmatpush1.msra.mxu0 0.0
    %2875 = vmatprep.subr.mxu0 0.0
    %2876 = vmatpush1.msra.mxu0 0.0
    %2877 = vmatprep.subr.mxu0 0.0
    %2878 = vmatpush1.msra.mxu0 0.0
    %2879 = vmatprep.subr.mxu0 0.0
    %2880 = vmatpush1.msra.mxu0 0.0
    %2881 = vmatprep.subr.mxu0 0.0
    %2882 = vmatpush1.msra.mxu0 0.0
    %2883 = vmatprep.subr.mxu0 0.0
    %2884 = vmatpush1.msra.mxu0 %v1746
    %2885 = vmatprep.subr.mxu0 0.0
    %2886 = vmatpush1.msra.mxu0 %v1745
    %2887 = vmatprep.subr.mxu0 0.0
    %2888 = vmatpush1.msra.mxu0 %v1744
    %2889 = vmatprep.subr.mxu0 0.0
    %2890 = vmatpush1.msra.mxu0 %v1743
    %2891 = vmatprep.subr.mxu0 0.0
    %2892 = vmatpush2.msra.mxu0 0.0
    %2893 = vmatprep.subr.mxu0 0.0
    %2894 = vmatpush2.msra.mxu0 0.0
    %2895 = vmatprep.subr.mxu0 0.0
    %2896 = vmatpush2.msra.mxu0 0.0
    %2897 = vmatprep.subr.mxu0 0.0
    %2898 = vmatpush2.msra.mxu0 0.0
    %2899 = vmatprep.subr.mxu0 0.0
    %2900 = vmatpush2.msra.mxu0 0.0
    %2901 = vmatprep.subr.mxu0 0.0
    %2902 = vmatpush2.msra.mxu0 0.0
    %2903 = vmatprep.subr.mxu0 0.0
    %2904 = vmatpush2.msra.mxu0 0.0
    %2905 = vmatprep.subr.mxu0 0.0
    %2906 = vmatpush2.msra.mxu0 0.0
    %2907 = vmatprep.subr.mxu0 0.0
    %2908 = vmatpush2.msra.mxu0 0.0
    %2909 = vmatprep.subr.mxu0 0.0
    %2910 = vmatpush2.msra.mxu0 0.0
    %2911 = vmatprep.subr.mxu0 0.0
    %2912 = vmatpush2.msra.mxu0 0.0
    %2913 = vmatprep.subr.mxu0 0.0
    %2914 = vmatpush2.msra.mxu0 0.0
    %2915 = vmatprep.subr.mxu0 0.0
    %2916 = vmatpush2.msra.mxu0 0.0
    %2917 = vmatprep.subr.mxu0 0.0
    %2918 = vmatpush2.msra.mxu0 0.0
    %2919 = vmatprep.subr.mxu0 0.0
    %2920 = vmatpush2.msra.mxu0 0.0
    %2921 = vmatprep.subr.mxu0 0.0
    %2922 = vmatpush2.msra.mxu0 0.0
    %2923 = vmatprep.mubr.f32.mxu0 0.0
    %2924 = vmatmul.mubr.f32.gmra.mxu0 %v2857
    %v2925 = vpop.f32.mrf.mxu0
    %v2926 = vadd.f32 0.0, %v2925
    %v2927 = vpop.f32.mrf.mxu0
    %2928 = vdwg.mxu0
    %v2929 = vadd.f32 %v2855, %v2926
    %v2930 = vld [vmem:[%s2] sm:$0x3]
    %v2931 = vld [vmem:[%s10] sm:$0x7f]
    %vm2932 = vcmask 56320
    %v2934 = vsel %vm2932, %v2930, 0
    %vm2936 = vcmask 1046528
    %v2938 = vsel %vm2936, %v2931, 0
    %2940 = vmatprep.subr.mxu0 0.0
    %2941 = vmatpush1.msra.mxu0 0.0
    %2942 = vmatprep.subr.mxu0 0.0
    %2943 = vmatpush1.msra.mxu0 0.0
    %2944 = vmatprep.subr.mxu0 0.0
    %2945 = vmatpush1.msra.mxu0 0.0
    %2946 = vmatprep.subr.mxu0 0.0
    %2947 = vmatpush1.msra.mxu0 0.0
    %2948 = vmatprep.subr.mxu0 0.0
    %2949 = vmatpush1.msra.mxu0 0.0
    %2950 = vmatprep.subr.mxu0 0.0
    %2951 = vmatpush1.msra.mxu0 0.0
    %2952 = vmatprep.subr.mxu0 0.0
    %2953 = vmatpush1.msra.mxu0 0.0
    %2954 = vmatprep.subr.mxu0 0.0
    %2955 = vmatpush1.msra.mxu0 0.0
    %2956 = vmatprep.subr.mxu0 0.0
    %2957 = vmatpush1.msra.mxu0 0.0
    %2958 = vmatprep.subr.mxu0 0.0
    %2959 = vmatpush1.msra.mxu0 0.0
    %2960 = vmatprep.subr.mxu0 0.0
    %2961 = vmatpush1.msra.mxu0 0.0
    %2962 = vmatprep.subr.mxu0 0.0
    %2963 = vmatpush1.msra.mxu0 0.0
    %2964 = vmatprep.subr.mxu0 0.0
    %2965 = vmatpush1.msra.mxu0 0.0
    %2966 = vmatprep.subr.mxu0 0.0
    %2967 = vmatpush1.msra.mxu0 0.0
    %2968 = vmatprep.subr.mxu0 0.0
    %2969 = vmatpush1.msra.mxu0 0.0
    %2970 = vmatprep.subr.mxu0 0.0
    %2971 = vmatpush1.msra.mxu0 %v2938
    %2972 = vmatprep.subr.mxu0 0.0
    %2973 = vmatpush2.msra.mxu0 0.0
    %2974 = vmatprep.subr.mxu0 0.0
    %2975 = vmatpush2.msra.mxu0 0.0
    %2976 = vmatprep.subr.mxu0 0.0
    %2977 = vmatpush2.msra.mxu0 0.0
    %2978 = vmatprep.subr.mxu0 0.0
    %2979 = vmatpush2.msra.mxu0 0.0
    %2980 = vmatprep.subr.mxu0 0.0
    %2981 = vmatpush2.msra.mxu0 0.0
    %2982 = vmatprep.subr.mxu0 0.0
    %2983 = vmatpush2.msra.mxu0 0.0
    %2984 = vmatprep.subr.mxu0 0.0
    %2985 = vmatpush2.msra.mxu0 0.0
    %2986 = vmatprep.subr.mxu0 0.0
    %2987 = vmatpush2.msra.mxu0 0.0
    %2988 = vmatprep.subr.mxu0 0.0
    %2989 = vmatpush2.msra.mxu0 0.0
    %2990 = vmatprep.subr.mxu0 0.0
    %2991 = vmatpush2.msra.mxu0 0.0
    %2992 = vmatprep.subr.mxu0 0.0
    %2993 = vmatpush2.msra.mxu0 0.0
    %2994 = vmatprep.subr.mxu0 0.0
    %2995 = vmatpush2.msra.mxu0 0.0
    %2996 = vmatprep.subr.mxu0 0.0
    %2997 = vmatpush2.msra.mxu0 0.0
    %2998 = vmatprep.subr.mxu0 0.0
    %2999 = vmatpush2.msra.mxu0 0.0
    %3000 = vmatprep.subr.mxu0 0.0
    %3001 = vmatpush2.msra.mxu0 0.0
    %3002 = vmatprep.subr.mxu0 0.0
    %3003 = vmatpush2.msra.mxu0 0.0
    %3004 = vmatprep.mubr.f32.mxu0 0.0
    %3005 = vmatmul.mubr.f32.gmra.mxu0 %v2934
    %v3006 = vpop.f32.mrf.mxu0
    %v3007 = vadd.f32 0.0, %v3006
    %v3008 = vpop.f32.mrf.mxu0
    %3009 = vdwg.mxu0
    %v3010 = vadd.f32 %v2929, %v3007
    %v3011 = vld [vmem:[%s3] sm:$0x3]
    %v3012 = vld [vmem:[%s11] sm:$0xff]
    %v3013 = vld [vmem:[%s11 + $0x8] sm:$0xff]
    %v3014 = vld [vmem:[%s11 + $0x10] sm:$0x1f]
    %vm3015 = vcmask 171008
    %v3017 = vsel %vm3015, %v3011, 0
    %vm3019 = vcmask 1044480
    %v3021 = vsel %vm3019, %v3014, 0
    %3023 = vmatprep.subr.mxu0 0.0
    %3024 = vmatpush1.msra.mxu0 0.0
    %3025 = vmatprep.subr.mxu0 0.0
    %3026 = vmatpush1.msra.mxu0 0.0
    %3027 = vmatprep.subr.mxu0 0.0
    %3028 = vmatpush1.msra.mxu0 0.0
    %3029 = vmatprep.subr.mxu0 0.0
    %3030 = vmatpush1.msra.mxu0 0.0
    %3031 = vmatprep.subr.mxu0 0.0
    %3032 = vmatpush1.msra.mxu0 0.0
    %3033 = vmatprep.subr.mxu0 0.0
    %3034 = vmatpush1.msra.mxu0 0.0
    %3035 = vmatprep.subr.mxu0 0.0
    %3036 = vmatpush1.msra.mxu0 0.0
    %3037 = vmatprep.subr.mxu0 0.0
    %3038 = vmatpush1.msra.mxu0 0.0
    %3039 = vmatprep.subr.mxu0 0.0
    %3040 = vmatpush1.msra.mxu0 0.0
    %3041 = vmatprep.subr.mxu0 0.0
    %3042 = vmatpush1.msra.mxu0 0.0
    %3043 = vmatprep.subr.mxu0 0.0
    %3044 = vmatpush1.msra.mxu0 0.0
    %3045 = vmatprep.subr.mxu0 0.0
    %3046 = vmatpush1.msra.mxu0 0.0
    %3047 = vmatprep.subr.mxu0 0.0
    %3048 = vmatpush1.msra.mxu0 0.0
    %3049 = vmatprep.subr.mxu0 0.0
    %3050 = vmatpush1.msra.mxu0 %v3021
    %3051 = vmatprep.subr.mxu0 0.0
    %3052 = vmatpush1.msra.mxu0 %v3013
    %3053 = vmatprep.subr.mxu0 0.0
    %3054 = vmatpush1.msra.mxu0 %v3012
    %3055 = vmatprep.subr.mxu0 0.0
    %3056 = vmatpush2.msra.mxu0 0.0
    %3057 = vmatprep.subr.mxu0 0.0
    %3058 = vmatpush2.msra.mxu0 0.0
    %3059 = vmatprep.subr.mxu0 0.0
    %3060 = vmatpush2.msra.mxu0 0.0
    %3061 = vmatprep.subr.mxu0 0.0
    %3062 = vmatpush2.msra.mxu0 0.0
    %3063 = vmatprep.subr.mxu0 0.0
    %3064 = vmatpush2.msra.mxu0 0.0
    %3065 = vmatprep.subr.mxu0 0.0
    %3066 = vmatpush2.msra.mxu0 0.0
    %3067 = vmatprep.subr.mxu0 0.0
    %3068 = vmatpush2.msra.mxu0 0.0
    %3069 = vmatprep.subr.mxu0 0.0
    %3070 = vmatpush2.msra.mxu0 0.0
    %3071 = vmatprep.subr.mxu0 0.0
    %3072 = vmatpush2.msra.mxu0 0.0
    %3073 = vmatprep.subr.mxu0 0.0
    %3074 = vmatpush2.msra.mxu0 0.0
    %3075 = vmatprep.subr.mxu0 0.0
    %3076 = vmatpush2.msra.mxu0 0.0
    %3077 = vmatprep.subr.mxu0 0.0
    %3078 = vmatpush2.msra.mxu0 0.0
    %3079 = vmatprep.subr.mxu0 0.0
    %3080 = vmatpush2.msra.mxu0 0.0
    %3081 = vmatprep.subr.mxu0 0.0
    %3082 = vmatpush2.msra.mxu0 0.0
    %3083 = vmatprep.subr.mxu0 0.0
    %3084 = vmatpush2.msra.mxu0 0.0
    %3085 = vmatprep.subr.mxu0 0.0
    %3086 = vmatpush2.msra.mxu0 0.0
    %3087 = vmatprep.mubr.f32.mxu0 0.0
    %3088 = vmatmul.mubr.f32.gmra.mxu0 %v3017
    %v3089 = vpop.f32.mrf.mxu0
    %v3090 = vadd.f32 0.0, %v3089
    %v3091 = vpop.f32.mrf.mxu0
    %3092 = vdwg.mxu0
    %v3093 = vadd.f32 %v3010, %v3090
    %v3094 = vld [vmem:[%s4] sm:$0x3]
    %v3095 = vld [vmem:[%s12] sm:$0x1]
    %3097 = vset.pattern.permute.xlu0 0
    %3098 = vperm.xlu0 %3097, %v3094
    %v3099 = vpop.permute.xlu0 %3098
    %v3102 = vlaneseq
    %v3103 = vshrl.u32 %v3102, 7
    %v3104 = vsub.s32 0, %v3103
    %v3105 = vrot.slane %v3095, %v3104
    %v3107 = vmul.f32 %v3099, %v3105
    %v3108 = vadd.f32 %v3093, %v3107
    %v3109 = vld [vmem:[%s13] sm:$0x1]
    %v3111 = vlaneseq
    %v3112 = vshrl.u32 %v3111, 7
    %v3113 = vsub.s32 0, %v3112
    %v3114 = vrot.slane %v3109, %v3113
    %v3116 = vadd.f32 %v3108, %v3114
    %v3117 = vmax.f32 %v3116, 0.0
    %v3118 = vld [vmem:[%s14] sm:$0xff]
    %v3119 = vld [vmem:[%s14 + $0x8] sm:$0xff]
    %v3120 = vld [vmem:[%s14 + $0x10] sm:$0xff]
    %v3121 = vld [vmem:[%s14 + $0x18] sm:$0xff]
    %v3122 = vld [vmem:[%s14 + $0x20] sm:$0xff]
    %v3123 = vld [vmem:[%s14 + $0x28] sm:$0xff]
    %v3124 = vld [vmem:[%s14 + $0x30] sm:$0xff]
    %v3125 = vld [vmem:[%s14 + $0x38] sm:$0xff]
    %v3126 = vld [vmem:[%s14 + $0x40] sm:$0xff]
    %v3127 = vld [vmem:[%s14 + $0x48] sm:$0xff]
    %v3128 = vld [vmem:[%s14 + $0x50] sm:$0xff]
    %v3129 = vld [vmem:[%s14 + $0x58] sm:$0xff]
    %v3130 = vld [vmem:[%s14 + $0x60] sm:$0xff]
    %v3131 = vld [vmem:[%s14 + $0x68] sm:$0xff]
    %v3132 = vld [vmem:[%s14 + $0x70] sm:$0xff]
    %v3133 = vld [vmem:[%s14 + $0x78] sm:$0xff]
    %v3134 = vld [vmem:[%s15] sm:$0x1]
    %v3136 = vlaneseq
    %v3137 = vshrl.u32 %v3136, 7
    %v3138 = vsub.s32 0, %v3137
    %v3139 = vrot.slane %v3134, %v3138
    %3141 = vmatprep.subr.mxu0 0.0
    %3142 = vmatpush1.msra.mxu0 %v3133
    %3143 = vmatprep.subr.mxu0 0.0
    %3144 = vmatpush1.msra.mxu0 %v3132
    %3145 = vmatprep.subr.mxu0 0.0
    %3146 = vmatpush1.msra.mxu0 %v3131
    %3147 = vmatprep.subr.mxu0 0.0
    %3148 = vmatpush1.msra.mxu0 %v3130
    %3149 = vmatprep.subr.mxu0 0.0
    %3150 = vmatpush1.msra.mxu0 %v3129
    %3151 = vmatprep.subr.mxu0 0.0
    %3152 = vmatpush1.msra.mxu0 %v3128
    %3153 = vmatprep.subr.mxu0 0.0
    %3154 = vmatpush1.msra.mxu0 %v3127
    %3155 = vmatprep.subr.mxu0 0.0
    %3156 = vmatpush1.msra.mxu0 %v3126
    %3157 = vmatprep.subr.mxu0 0.0
    %3158 = vmatpush1.msra.mxu0 %v3125
    %3159 = vmatprep.subr.mxu0 0.0
    %3160 = vmatpush1.msra.mxu0 %v3124
    %3161 = vmatprep.subr.mxu0 0.0
    %3162 = vmatpush1.msra.mxu0 %v3123
    %3163 = vmatprep.subr.mxu0 0.0
    %3164 = vmatpush1.msra.mxu0 %v3122
    %3165 = vmatprep.subr.mxu0 0.0
    %3166 = vmatpush1.msra.mxu0 %v3121
    %3167 = vmatprep.subr.mxu0 0.0
    %3168 = vmatpush1.msra.mxu0 %v3120
    %3169 = vmatprep.subr.mxu0 0.0
    %3170 = vmatpush1.msra.mxu0 %v3119
    %3171 = vmatprep.subr.mxu0 0.0
    %3172 = vmatpush1.msra.mxu0 %v3118
    %3173 = vmatprep.subr.mxu0 0.0
    %3174 = vmatpush2.msra.mxu0 0.0
    %3175 = vmatprep.subr.mxu0 0.0
    %3176 = vmatpush2.msra.mxu0 0.0
    %3177 = vmatprep.subr.mxu0 0.0
    %3178 = vmatpush2.msra.mxu0 0.0
    %3179 = vmatprep.subr.mxu0 0.0
    %3180 = vmatpush2.msra.mxu0 0.0
    %3181 = vmatprep.subr.mxu0 0.0
    %3182 = vmatpush2.msra.mxu0 0.0
    %3183 = vmatprep.subr.mxu0 0.0
    %3184 = vmatpush2.msra.mxu0 0.0
    %3185 = vmatprep.subr.mxu0 0.0
    %3186 = vmatpush2.msra.mxu0 0.0
    %3187 = vmatprep.subr.mxu0 0.0
    %3188 = vmatpush2.msra.mxu0 0.0
    %3189 = vmatprep.subr.mxu0 0.0
    %3190 = vmatpush2.msra.mxu0 0.0
    %3191 = vmatprep.subr.mxu0 0.0
    %3192 = vmatpush2.msra.mxu0 0.0
    %3193 = vmatprep.subr.mxu0 0.0
    %3194 = vmatpush2.msra.mxu0 0.0
    %3195 = vmatprep.subr.mxu0 0.0
    %3196 = vmatpush2.msra.mxu0 0.0
    %3197 = vmatprep.subr.mxu0 0.0
    %3198 = vmatpush2.msra.mxu0 0.0
    %3199 = vmatprep.subr.mxu0 0.0
    %3200 = vmatpush2.msra.mxu0 0.0
    %3201 = vmatprep.subr.mxu0 0.0
    %3202 = vmatpush2.msra.mxu0 0.0
    %3203 = vmatprep.subr.mxu0 0.0
    %3204 = vmatpush2.msra.mxu0 0.0
    %3205 = vmatprep.mubr.f32.mxu0 0.0
    %3206 = vmatmul.mubr.f32.gmra.mxu0 %v3117
    %v3207 = vpop.f32.mrf.mxu0
    %v3208 = vadd.f32 %v3139, %v3207
    %v3209 = vpop.f32.mrf.mxu0
    %3210 = vdwg.mxu0
    %3211 = vst [vmem:[#allocation2] sm:$0x3] %v3208
    // Predicated region
    $region66: #{dqn_forward.1} parent=1 // pred_check
      _
    $region67: #{dqn_forward.1} parent=1 // pred_check_branch
      %3213 = sbr.rel (0) target = $region69
    $region68: #{dqn_forward.1} parent=1 // pred_region
      %s3215 = ssub.s32 32, 32
      %3216 = vsyncadd [#allocation3], %s3215
      %s3218 = sshll.u32 [#allocation2], 4
      %s3219 = int_to_ptr.vmem [resolvable:$true] %s3218
      %3221 = dma.vmem_to_hbm [thread:$0]  %s3219, 32, %s16, [#allocation3]
    $region69: #{dqn_forward.1} parent=1 // pred_fallthru
      _
    // Predicated region
    $region70: #{dqn_forward.1} parent=1 // pred_check
      _
    $region71: #{dqn_forward.1} parent=1 // pred_check_branch
      %3223 = sbr.rel (0) target = $region73
    $region72: #{dqn_forward.1} parent=1 // pred_region
      %3224 = dma.done [#allocation3], 32
    $region73: #{dqn_forward.1} parent=1 // pred_fallthru
      _
    %3225 = vsyncpa [#allocation3], 1

</llo_original>
